<compile_context>
chip_gen: v6e
topology: v6e:2x2x1
jax: 0.10.0
libtpu: 0.0.40
codegen_flags: <defaults>
</compile_context>

<pallas_src>
import jax
import jax.numpy as jnp
from jax.experimental import pallas as pl
from jax.experimental.pallas import tpu as pltpu

H1, H2, D1 = 64, 32, 16      # hidden sizes fixed by the module: GRU(64), GRU(32), Linear(32->16)
BN_EPS = 1e-5


def _round_up(v, m):
    return ((v + m - 1) // m) * m


def _sigmoid(x):
    return 1.0 / (1.0 + jnp.exp(-x))


# -----------------------------------------------------------------------------
# Kernel
# -----------------------------------------------------------------------------
def forecast_kernel(x_ref,
                    wih1_ref, whh1_ref, bi1_ref, bhh1n_ref,
                    wih2_ref, whh2_ref, bi2_ref, bhh2n_ref,
                    w1_ref, b1_ref, w2_ref, b2_ref,
                    out_ref):
    """One batch tile.  x_ref: (T, Bt, F) time-major.  Gate order is [r | z | n]."""
    T, Bt, _ = x_ref.shape

    # ---- Layer 1: hoisted input projection (one batched matmul per gate) ----
    # (T, Bt, F) -> (T*Bt, F), t-major rows; Bt is a multiple of 8 so this is a cheap
    # sublane-aligned concatenation.
    x2 = jnp.concatenate([x_ref[t] for t in range(T)], axis=0)          # (T*Bt, F)
    gi1 = [jnp.dot(x2, wih1_ref[g], preferred_element_type=jnp.float32) + bi1_ref[g]
           for g in range(3)]                                           # 3 x (T*Bt, H1)

    whh1_r, whh1_z, whh1_n = whh1_ref[0], whh1_ref[1], whh1_ref[2]
    bhh1n = bhh1n_ref[...]

    h1 = jnp.zeros((Bt, H1), jnp.float32)
    h1_all = []
    for t in range(T):                                                  # unrolled recurrence
        s = t * Bt
        gh_r = jnp.dot(h1, whh1_r, preferred_element_type=jnp.float32)
        gh_z = jnp.dot(h1, whh1_z, preferred_element_type=jnp.float32)
        gh_n = jnp.dot(h1, whh1_n, preferred_element_type=jnp.float32) + bhh1n
        r = _sigmoid(gi1[0][s:s + Bt] + gh_r)
        z = _sigmoid(gi1[1][s:s + Bt] + gh_z)
        n = jnp.tanh(gi1[2][s:s + Bt] + r * gh_n)
        h1 = (1.0 - z) * n + z * h1
        h1_all.append(h1)

    # ---- Layer 2: hoisted input projection (BatchNorm1 already folded into wih2) ----
    h1_cat = jnp.concatenate(h1_all, axis=0)                            # (T*Bt, H1)
    gi2 = [jnp.dot(h1_cat, wih2_ref[g], preferred_element_type=jnp.float32) + bi2_ref[g]
           for g in range(3)]                                           # 3 x (T*Bt, H2)

    whh2_r, whh2_z, whh2_n = whh2_ref[0], whh2_ref[1], whh2_ref[2]
    bhh2n = bhh2n_ref[...]

    h2 = jnp.zeros((Bt, H2), jnp.float32)
    for t in range(T):                                                  # unrolled recurrence
        s = t * Bt
        gh_r = jnp.dot(h2, whh2_r, preferred_element_type=jnp.float32)
        gh_z = jnp.dot(h2, whh2_z, preferred_element_type=jnp.float32)
        gh_n = jnp.dot(h2, whh2_n, preferred_element_type=jnp.float32) + bhh2n
        r = _sigmoid(gi2[0][s:s + Bt] + gh_r)
        z = _sigmoid(gi2[1][s:s + Bt] + gh_z)
        n = jnp.tanh(gi2[2][s:s + Bt] + r * gh_n)
        h2 = (1.0 - z) * n + z * h2

    # ---- Head: BatchNorm2 folded into w1; output lane-padded to 128 ----
    d1 = jnp.maximum(
        jnp.dot(h2, w1_ref[...], preferred_element_type=jnp.float32) + b1_ref[...], 0.0)
    out_ref[...] = jnp.dot(d1, w2_ref[...], preferred_element_type=jnp.float32) + b2_ref[...]


# -----------------------------------------------------------------------------
# Wrapper: BN folding, per-gate weight layout, padding / batch tiling
# -----------------------------------------------------------------------------
def _fold_bn(gamma, beta, mean, var):
    scale = gamma / jnp.sqrt(var + BN_EPS)
    shift = beta - mean * scale
    return scale, shift                      # (C,), (C,)


def _split_w(w, H):
    """(K, 3H) -> (3, K, H) with gate order [r | z | n]."""
    return jnp.stack([w[:, g * H:(g + 1) * H] for g in range(3)], axis=0)


def _split_b(b, H):
    """(3H,) -> (3, H)."""
    return jnp.stack([b[g * H:(g + 1) * H] for g in range(3)], axis=0)


def load_forecast_forward(x, p):
    """x: (B, T, F) float32 -> (B, output_dim) float32 (eval-mode forward)."""
    B, T, F = x.shape
    out_dim = p["w2"].shape[1]
    OUT_PAD = _round_up(out_dim, 128)

    # ---- batch padding / tiling: pad to a multiple of 8, tile at <=128 rows ----
    Bp = _round_up(max(B, 8), 8)
    if Bp > 128:
        Bp = _round_up(Bp, 128)
        Bt = 128
    else:
        Bt = Bp
    n_tiles = Bp // Bt

    x_p = jnp.zeros((Bp, T, F), jnp.float32).at[:B].set(x.astype(jnp.float32))
    x_tmf = jnp.transpose(x_p, (1, 0, 2))                       # (T, Bp, F) time-major

    # ---- BN fold + per-gate weight preparation (done once in XLA, outside the kernel) ----
    sc1, sh1 = _fold_bn(p["bn1_gamma"], p["bn1_beta"], p["bn1_mean"], p["bn1_var"])   # (64,)
    sc2, sh2 = _fold_bn(p["bn2_gamma"], p["bn2_beta"], p["bn2_mean"], p["bn2_var"])   # (32,)

    # Layer 1
    wih1s = _split_w(p["wih1"], H1)                             # (3, F, 64)
    whh1s = _split_w(p["whh1"], H1)                             # (3, 64, 64)
    bih1s = _split_b(p["bih1"], H1)                             # (3, 64)
    bhh1s = _split_b(p["bhh1"], H1)
    bi1s = bih1s.at[0].add(bhh1s[0]).at[1].add(bhh1s[1])        # pre-sum r,z hidden biases
    bi1s = bi1s[:, None, :]                                     # (3, 1, 64)
    bhh1n = bhh1s[2][None, :]                                   # (1, 64)

    # Layer 2 with BN1 folded into its input path: y1 = h1*sc1 + sh1
    wih2s_raw = _split_w(p["wih2"], H2)                         # (3, 64, 32)
    whh2s = _split_w(p["whh2"], H2)                             # (3, 32, 32)
    bih2s = _split_b(p["bih2"], H2)
    bhh2s = _split_b(p["bhh2"], H2)
    wih2s = sc1[None, :, None] * wih2s_raw                      # fold scale into weights
    bi2s = jnp.einsum("h,ghk->gk", sh1, wih2s_raw) + bih2s      # fold shift into biases
    bi2s = bi2s.at[0].add(bhh2s[0]).at[1].add(bhh2s[1])         # pre-sum r,z hidden biases
    bi2s = bi2s[:, None, :]                                     # (3, 1, 32)
    bhh2n = bhh2s[2][None, :]                                   # (1, 32)

    # Head with BN2 folded into dense1: y2 = h2*sc2 + sh2
    w1f = sc2[:, None] * p["w1"]                                # (32, 16)
    b1f = (sh2 @ p["w1"] + p["b1"])[None, :]                    # (1, 16)
    w2p = jnp.zeros((D1, OUT_PAD), jnp.float32).at[:, :out_dim].set(p["w2"])
    b2p = jnp.zeros((1, OUT_PAD), jnp.float32).at[:, :out_dim].set(p["b2"][None, :])

    weights = (wih1s, whh1s, bi1s, bhh1n,
               wih2s, whh2s, bi2s, bhh2n,
               w1f, b1f, w2p, b2p)

    in_specs = [pl.BlockSpec((T, Bt, F), lambda i: (0, i, 0))]
    in_specs += [pl.BlockSpec(w.shape, lambda i, n=w.ndim: (0,) * n) for w in weights]

    out = pl.pallas_call(
        forecast_kernel,
        out_shape=jax.ShapeDtypeStruct((Bp, OUT_PAD), jnp.float32),
        grid=(n_tiles,),
        in_specs=in_specs,
        out_specs=pl.BlockSpec((Bt, OUT_PAD), lambda i: (i, 0)),
        compiler_params=pltpu.CompilerParams(dimension_semantics=("parallel",)),
    )(x_tmf, *weights)

    return out[:B, :out_dim]


# -----------------------------------------------------------------------------
# Pure-JAX reference (eval mode, unfused) — validates the BN/gate folding
# -----------------------------------------------------------------------------
def _gru_cell_ref(x, h, w_ih, w_hh, b_ih, b_hh, H):
    gi = jnp.dot(x, w_ih) + b_ih
    gh = jnp.dot(h, w_hh) + b_hh
    r = _sigmoid(gi[:, 0 * H:1 * H] + gh[:, 0 * H:1 * H])
    z = _sigmoid(gi[:, 1 * H:2 * H] + gh[:, 1 * H:2 * H])
    n = jnp.tanh(gi[:, 2 * H:3 * H] + r * gh[:, 2 * H:3 * H])
    return (1.0 - z) * n + z * h


def reference_forward(x, p):
    B, T, F = x.shape
    sc1, sh1 = _fold_bn(p["bn1_gamma"], p["bn1_beta"], p["bn1_mean"], p["bn1_var"])
    sc2, sh2 = _fold_bn(p["bn2_gamma"], p["bn2_beta"], p["bn2_mean"], p["bn2_var"])
    x_tmf = jnp.transpose(x, (1, 0, 2))

    def step(carry, x_t):
        h1, h2 = carry
        h1 = _gru_cell_ref(x_t, h1, p["wih1"], p["whh1"], p["bih1"][None, :], p["bhh1"][None, :], H1)
        y1 = h1 * sc1[None, :] + sh1[None, :]
        h2 = _gru_cell_ref(y1, h2, p["wih2"], p["whh2"], p["bih2"][None, :], p["bhh2"][None, :], H2)
        return (h1, h2), None

    (h1, h2), _ = jax.lax.scan(step, (jnp.zeros((B, H1)), jnp.zeros((B, H2))), x_tmf)
    y2 = h2 * sc2[None, :] + sh2[None, :]
    d1 = jnp.maximum(y2 @ p["w1"] + p["b1"][None, :], 0.0)
    return d1 @ p["w2"] + p["b2"][None, :]


# -----------------------------------------------------------------------------
# Parameter init (mirrors the PyTorch module's parameter shapes, pre-transposed)
# -----------------------------------------------------------------------------
def init_params(key, feat, out_dim):
    ks = jax.random.split(key, 12)

    def u(k, shape, fan):
        bound = 1.0 / jnp.sqrt(fan)
        return jax.random.uniform(k, shape, jnp.float32, -bound, bound)

    return {
        "wih1": u(ks[0], (feat, 3 * H1), H1),
        "whh1": u(ks[1], (H1, 3 * H1), H1),
        "bih1": u(ks[2], (3 * H1,), H1),
        "bhh1": u(ks[3], (3 * H1,), H1),
        "wih2": u(ks[4], (H1, 3 * H2), H2),
        "whh2": u(ks[5], (H2, 3 * H2), H2),
        "bih2": u(ks[6], (3 * H2,), H2),
        "bhh2": u(ks[7], (3 * H2,), H2),
        "w1": u(ks[8], (H2, D1), H2),
        "b1": u(ks[9], (D1,), H2),
        "w2": u(ks[10], (D1, out_dim), D1),
        "b2": u(ks[11], (out_dim,), D1),
        # BatchNorm1d defaults: weight=1, bias=0, running_mean=0, running_var=1
        "bn1_gamma": jnp.ones((H1,), jnp.float32),
        "bn1_beta": jnp.zeros((H1,), jnp.float32),
        "bn1_mean": jnp.zeros((H1,), jnp.float32),
        "bn1_var": jnp.ones((H1,), jnp.float32),
        "bn2_gamma": jnp.ones((H2,), jnp.float32),
        "bn2_beta": jnp.zeros((H2,), jnp.float32),
        "bn2_mean": jnp.zeros((H2,), jnp.float32),
        "bn2_var": jnp.ones((H2,), jnp.float32),
    }


if __name__ == "__main__":
    B, T, F, OUT = 4, 8, 8, 3          # input_shape=(time_steps=8, features=8), output_dim=3

    key = jax.random.PRNGKey(0)
    kx, kp = jax.random.split(key)
    x = jax.random.normal(kx, (B, T, F), jnp.float32)
    params = init_params(kp, F, OUT)

    out = jax.block_until_ready(load_forecast_forward(x, params))
    ref = jax.block_until_ready(reference_forward(x, params))

    assert out.shape == (B, OUT), out.shape
    assert jnp.allclose(out, ref, atol=1e-4, rtol=1e-4), (out, ref)
    print("KERNEL_OK")
</pallas_src>

<mosaic_0001>
module attributes {stable_mosaic.version = 11 : i64} {
  func.func @forecast_kernel(%arg0: i32, %arg1: memref<8x8x8xf32, #tpu.memory_space<vmem>>, %arg2: memref<3x8x64xf32, #tpu.memory_space<vmem>>, %arg3: memref<3x64x64xf32, #tpu.memory_space<vmem>>, %arg4: memref<3x1x64xf32, #tpu.memory_space<vmem>>, %arg5: memref<1x64xf32, #tpu.memory_space<vmem>>, %arg6: memref<3x64x32xf32, #tpu.memory_space<vmem>>, %arg7: memref<3x32x32xf32, #tpu.memory_space<vmem>>, %arg8: memref<3x1x32xf32, #tpu.memory_space<vmem>>, %arg9: memref<1x32xf32, #tpu.memory_space<vmem>>, %arg10: memref<32x16xf32, #tpu.memory_space<vmem>>, %arg11: memref<1x16xf32, #tpu.memory_space<vmem>>, %arg12: memref<16x128xf32, #tpu.memory_space<vmem>>, %arg13: memref<1x128xf32, #tpu.memory_space<vmem>>, %arg14: memref<8x128xf32, #tpu.memory_space<vmem>>) attributes {dimension_semantics = [#tpu.dimension_semantics<parallel>], iteration_bounds = array<i64: 1>, scalar_prefetch = 0 : i64, scratch_operands = 0 : i64, tpu.core_type = #tpu.core_type<tc>, window_params = [{transform_indices = @transform_0, window_bounds = array<i64: 8, 8, 8>}, {pipeline_mode = #tpu.pipeline_mode<synchronous>, transform_indices = @transform_1, window_bounds = array<i64: 3, 8, 64>}, {pipeline_mode = #tpu.pipeline_mode<synchronous>, transform_indices = @transform_2, window_bounds = array<i64: 3, 64, 64>}, {pipeline_mode = #tpu.pipeline_mode<synchronous>, transform_indices = @transform_3, window_bounds = array<i64: 3, 1, 64>}, {pipeline_mode = #tpu.pipeline_mode<synchronous>, transform_indices = @transform_4, window_bounds = array<i64: 1, 64>}, {pipeline_mode = #tpu.pipeline_mode<synchronous>, transform_indices = @transform_5, window_bounds = array<i64: 3, 64, 32>}, {pipeline_mode = #tpu.pipeline_mode<synchronous>, transform_indices = @transform_6, window_bounds = array<i64: 3, 32, 32>}, {pipeline_mode = #tpu.pipeline_mode<synchronous>, transform_indices = @transform_7, window_bounds = array<i64: 3, 1, 32>}, {pipeline_mode = #tpu.pipeline_mode<synchronous>, transform_indices = @transform_8, window_bounds = array<i64: 1, 32>}, {pipeline_mode = #tpu.pipeline_mode<synchronous>, transform_indices = @transform_9, window_bounds = array<i64: 32, 16>}, {pipeline_mode = #tpu.pipeline_mode<synchronous>, transform_indices = @transform_10, window_bounds = array<i64: 1, 16>}, {pipeline_mode = #tpu.pipeline_mode<synchronous>, transform_indices = @transform_11, window_bounds = array<i64: 16, 128>}, {pipeline_mode = #tpu.pipeline_mode<synchronous>, transform_indices = @transform_12, window_bounds = array<i64: 1, 128>}, {transform_indices = @transform_13, window_bounds = array<i64: 8, 128>}]} {
    %c0 = arith.constant 0 : index
    %c0_0 = arith.constant 0 : index
    %c0_1 = arith.constant 0 : index
    %0 = vector.load %arg1[%c0, %c0_0, %c0_1] : memref<8x8x8xf32, #tpu.memory_space<vmem>>, vector<1x8x8xf32>
    %1 = vector.shape_cast %0 : vector<1x8x8xf32> to vector<8x8xf32>
    %c1 = arith.constant 1 : index
    %c0_2 = arith.constant 0 : index
    %c0_3 = arith.constant 0 : index
    %2 = vector.load %arg1[%c1, %c0_2, %c0_3] : memref<8x8x8xf32, #tpu.memory_space<vmem>>, vector<1x8x8xf32>
    %3 = vector.shape_cast %2 : vector<1x8x8xf32> to vector<8x8xf32>
    %c2 = arith.constant 2 : index
    %c0_4 = arith.constant 0 : index
    %c0_5 = arith.constant 0 : index
    %4 = vector.load %arg1[%c2, %c0_4, %c0_5] : memref<8x8x8xf32, #tpu.memory_space<vmem>>, vector<1x8x8xf32>
    %5 = vector.shape_cast %4 : vector<1x8x8xf32> to vector<8x8xf32>
    %c3 = arith.constant 3 : index
    %c0_6 = arith.constant 0 : index
    %c0_7 = arith.constant 0 : index
    %6 = vector.load %arg1[%c3, %c0_6, %c0_7] : memref<8x8x8xf32, #tpu.memory_space<vmem>>, vector<1x8x8xf32>
    %7 = vector.shape_cast %6 : vector<1x8x8xf32> to vector<8x8xf32>
    %c4 = arith.constant 4 : index
    %c0_8 = arith.constant 0 : index
    %c0_9 = arith.constant 0 : index
    %8 = vector.load %arg1[%c4, %c0_8, %c0_9] : memref<8x8x8xf32, #tpu.memory_space<vmem>>, vector<1x8x8xf32>
    %9 = vector.shape_cast %8 : vector<1x8x8xf32> to vector<8x8xf32>
    %c5 = arith.constant 5 : index
    %c0_10 = arith.constant 0 : index
    %c0_11 = arith.constant 0 : index
    %10 = vector.load %arg1[%c5, %c0_10, %c0_11] : memref<8x8x8xf32, #tpu.memory_space<vmem>>, vector<1x8x8xf32>
    %11 = vector.shape_cast %10 : vector<1x8x8xf32> to vector<8x8xf32>
    %c6 = arith.constant 6 : index
    %c0_12 = arith.constant 0 : index
    %c0_13 = arith.constant 0 : index
    %12 = vector.load %arg1[%c6, %c0_12, %c0_13] : memref<8x8x8xf32, #tpu.memory_space<vmem>>, vector<1x8x8xf32>
    %13 = vector.shape_cast %12 : vector<1x8x8xf32> to vector<8x8xf32>
    %c7 = arith.constant 7 : index
    %c0_14 = arith.constant 0 : index
    %c0_15 = arith.constant 0 : index
    %14 = vector.load %arg1[%c7, %c0_14, %c0_15] : memref<8x8x8xf32, #tpu.memory_space<vmem>>, vector<1x8x8xf32>
    %15 = vector.shape_cast %14 : vector<1x8x8xf32> to vector<8x8xf32>
    %16 = tpu.concatenate %1, %3, %5, %7, %9, %11, %13, %15 in 0 : vector<8x8xf32>, vector<8x8xf32>, vector<8x8xf32>, vector<8x8xf32>, vector<8x8xf32>, vector<8x8xf32>, vector<8x8xf32>, vector<8x8xf32> -> vector<64x8xf32>
    %c0_16 = arith.constant 0 : index
    %c0_17 = arith.constant 0 : index
    %c0_18 = arith.constant 0 : index
    %17 = vector.load %arg2[%c0_16, %c0_17, %c0_18] : memref<3x8x64xf32, #tpu.memory_space<vmem>>, vector<1x8x64xf32>
    %18 = vector.shape_cast %17 : vector<1x8x64xf32> to vector<8x64xf32>
    %cst = arith.constant dense<0.000000e+00> : vector<64x64xf32>
    %19 = tpu.matmul %16, %18, %cst {dimension_numbers = #tpu.dot_dimension_numbers<[1], [0], [0], [1], [0, 0, 1, 1], [], []>} : vector<64x8xf32>, vector<8x64xf32>, vector<64x64xf32> -> vector<64x64xf32>
    %c0_19 = arith.constant 0 : index
    %c0_20 = arith.constant 0 : index
    %c0_21 = arith.constant 0 : index
    %20 = vector.load %arg4[%c0_19, %c0_20, %c0_21] : memref<3x1x64xf32, #tpu.memory_space<vmem>>, vector<1x1x64xf32>
    %21 = vector.shape_cast %20 : vector<1x1x64xf32> to vector<1x64xf32>
    %22 = vector.broadcast %21 : vector<1x64xf32> to vector<64x64xf32>
    %23 = arith.addf %19, %22 : vector<64x64xf32>
    %c1_22 = arith.constant 1 : index
    %c0_23 = arith.constant 0 : index
    %c0_24 = arith.constant 0 : index
    %24 = vector.load %arg2[%c1_22, %c0_23, %c0_24] : memref<3x8x64xf32, #tpu.memory_space<vmem>>, vector<1x8x64xf32>
    %25 = vector.shape_cast %24 : vector<1x8x64xf32> to vector<8x64xf32>
    %cst_25 = arith.constant dense<0.000000e+00> : vector<64x64xf32>
    %26 = tpu.matmul %16, %25, %cst_25 {dimension_numbers = #tpu.dot_dimension_numbers<[1], [0], [0], [1], [0, 0, 1, 1], [], []>} : vector<64x8xf32>, vector<8x64xf32>, vector<64x64xf32> -> vector<64x64xf32>
    %c1_26 = arith.constant 1 : index
    %c0_27 = arith.constant 0 : index
    %c0_28 = arith.constant 0 : index
    %27 = vector.load %arg4[%c1_26, %c0_27, %c0_28] : memref<3x1x64xf32, #tpu.memory_space<vmem>>, vector<1x1x64xf32>
    %28 = vector.shape_cast %27 : vector<1x1x64xf32> to vector<1x64xf32>
    %29 = vector.broadcast %28 : vector<1x64xf32> to vector<64x64xf32>
    %30 = arith.addf %26, %29 : vector<64x64xf32>
    %c2_29 = arith.constant 2 : index
    %c0_30 = arith.constant 0 : index
    %c0_31 = arith.constant 0 : index
    %31 = vector.load %arg2[%c2_29, %c0_30, %c0_31] : memref<3x8x64xf32, #tpu.memory_space<vmem>>, vector<1x8x64xf32>
    %32 = vector.shape_cast %31 : vector<1x8x64xf32> to vector<8x64xf32>
    %cst_32 = arith.constant dense<0.000000e+00> : vector<64x64xf32>
    %33 = tpu.matmul %16, %32, %cst_32 {dimension_numbers = #tpu.dot_dimension_numbers<[1], [0], [0], [1], [0, 0, 1, 1], [], []>} : vector<64x8xf32>, vector<8x64xf32>, vector<64x64xf32> -> vector<64x64xf32>
    %c2_33 = arith.constant 2 : index
    %c0_34 = arith.constant 0 : index
    %c0_35 = arith.constant 0 : index
    %34 = vector.load %arg4[%c2_33, %c0_34, %c0_35] : memref<3x1x64xf32, #tpu.memory_space<vmem>>, vector<1x1x64xf32>
    %35 = vector.shape_cast %34 : vector<1x1x64xf32> to vector<1x64xf32>
    %36 = vector.broadcast %35 : vector<1x64xf32> to vector<64x64xf32>
    %37 = arith.addf %33, %36 : vector<64x64xf32>
    %c0_36 = arith.constant 0 : index
    %c0_37 = arith.constant 0 : index
    %c0_38 = arith.constant 0 : index
    %38 = vector.load %arg3[%c0_36, %c0_37, %c0_38] : memref<3x64x64xf32, #tpu.memory_space<vmem>>, vector<1x64x64xf32>
    %39 = vector.shape_cast %38 : vector<1x64x64xf32> to vector<64x64xf32>
    %c1_39 = arith.constant 1 : index
    %c0_40 = arith.constant 0 : index
    %c0_41 = arith.constant 0 : index
    %40 = vector.load %arg3[%c1_39, %c0_40, %c0_41] : memref<3x64x64xf32, #tpu.memory_space<vmem>>, vector<1x64x64xf32>
    %41 = vector.shape_cast %40 : vector<1x64x64xf32> to vector<64x64xf32>
    %c2_42 = arith.constant 2 : index
    %c0_43 = arith.constant 0 : index
    %c0_44 = arith.constant 0 : index
    %42 = vector.load %arg3[%c2_42, %c0_43, %c0_44] : memref<3x64x64xf32, #tpu.memory_space<vmem>>, vector<1x64x64xf32>
    %43 = vector.shape_cast %42 : vector<1x64x64xf32> to vector<64x64xf32>
    %c0_45 = arith.constant 0 : index
    %c0_46 = arith.constant 0 : index
    %44 = vector.load %arg5[%c0_45, %c0_46] : memref<1x64xf32, #tpu.memory_space<vmem>>, vector<1x64xf32>
    %cst_47 = arith.constant 0.000000e+00 : f32
    %45 = vector.broadcast %cst_47 : f32 to vector<8x64xf32>
    %cst_48 = arith.constant dense<0.000000e+00> : vector<8x64xf32>
    %46 = tpu.matmul %45, %39, %cst_48 {dimension_numbers = #tpu.dot_dimension_numbers<[1], [0], [0], [1], [0, 0, 1, 1], [], []>} : vector<8x64xf32>, vector<64x64xf32>, vector<8x64xf32> -> vector<8x64xf32>
    %cst_49 = arith.constant dense<0.000000e+00> : vector<8x64xf32>
    %47 = tpu.matmul %45, %41, %cst_49 {dimension_numbers = #tpu.dot_dimension_numbers<[1], [0], [0], [1], [0, 0, 1, 1], [], []>} : vector<8x64xf32>, vector<64x64xf32>, vector<8x64xf32> -> vector<8x64xf32>
    %cst_50 = arith.constant dense<0.000000e+00> : vector<8x64xf32>
    %48 = tpu.matmul %45, %43, %cst_50 {dimension_numbers = #tpu.dot_dimension_numbers<[1], [0], [0], [1], [0, 0, 1, 1], [], []>} : vector<8x64xf32>, vector<64x64xf32>, vector<8x64xf32> -> vector<8x64xf32>
    %49 = vector.broadcast %44 : vector<1x64xf32> to vector<8x64xf32>
    %50 = arith.addf %48, %49 : vector<8x64xf32>
    %51 = vector.extract_strided_slice %23 {offsets = [0, 0], sizes = [8, 64], strides = [1, 1]} : vector<64x64xf32> to vector<8x64xf32>
    %52 = arith.addf %51, %46 : vector<8x64xf32>
    %cst_51 = arith.constant 0.000000e+00 : f32
    %53 = vector.broadcast %cst_51 : f32 to vector<8x64xf32>
    %54 = arith.subf %53, %52 : vector<8x64xf32>
    %55 = math.exp %54 : vector<8x64xf32>
    %cst_52 = arith.constant 1.000000e+00 : f32
    %56 = vector.broadcast %cst_52 : f32 to vector<8x64xf32>
    %57 = arith.addf %56, %55 : vector<8x64xf32>
    %cst_53 = arith.constant 1.000000e+00 : f32
    %58 = vector.broadcast %cst_53 : f32 to vector<8x64xf32>
    %59 = arith.divf %58, %57 : vector<8x64xf32>
    %60 = vector.extract_strided_slice %30 {offsets = [0, 0], sizes = [8, 64], strides = [1, 1]} : vector<64x64xf32> to vector<8x64xf32>
    %61 = arith.addf %60, %47 : vector<8x64xf32>
    %cst_54 = arith.constant 0.000000e+00 : f32
    %62 = vector.broadcast %cst_54 : f32 to vector<8x64xf32>
    %63 = arith.subf %62, %61 : vector<8x64xf32>
    %64 = math.exp %63 : vector<8x64xf32>
    %cst_55 = arith.constant 1.000000e+00 : f32
    %65 = vector.broadcast %cst_55 : f32 to vector<8x64xf32>
    %66 = arith.addf %65, %64 : vector<8x64xf32>
    %cst_56 = arith.constant 1.000000e+00 : f32
    %67 = vector.broadcast %cst_56 : f32 to vector<8x64xf32>
    %68 = arith.divf %67, %66 : vector<8x64xf32>
    %69 = vector.extract_strided_slice %37 {offsets = [0, 0], sizes = [8, 64], strides = [1, 1]} : vector<64x64xf32> to vector<8x64xf32>
    %70 = arith.mulf %59, %50 : vector<8x64xf32>
    %71 = arith.addf %69, %70 : vector<8x64xf32>
    %72 = math.tanh %71 : vector<8x64xf32>
    %cst_57 = arith.constant 1.000000e+00 : f32
    %73 = vector.broadcast %cst_57 : f32 to vector<8x64xf32>
    %74 = arith.subf %73, %68 : vector<8x64xf32>
    %75 = arith.mulf %74, %72 : vector<8x64xf32>
    %76 = arith.mulf %68, %45 : vector<8x64xf32>
    %77 = arith.addf %75, %76 : vector<8x64xf32>
    %cst_58 = arith.constant dense<0.000000e+00> : vector<8x64xf32>
    %78 = tpu.matmul %77, %39, %cst_58 {dimension_numbers = #tpu.dot_dimension_numbers<[1], [0], [0], [1], [0, 0, 1, 1], [], []>} : vector<8x64xf32>, vector<64x64xf32>, vector<8x64xf32> -> vector<8x64xf32>
    %cst_59 = arith.constant dense<0.000000e+00> : vector<8x64xf32>
    %79 = tpu.matmul %77, %41, %cst_59 {dimension_numbers = #tpu.dot_dimension_numbers<[1], [0], [0], [1], [0, 0, 1, 1], [], []>} : vector<8x64xf32>, vector<64x64xf32>, vector<8x64xf32> -> vector<8x64xf32>
    %cst_60 = arith.constant dense<0.000000e+00> : vector<8x64xf32>
    %80 = tpu.matmul %77, %43, %cst_60 {dimension_numbers = #tpu.dot_dimension_numbers<[1], [0], [0], [1], [0, 0, 1, 1], [], []>} : vector<8x64xf32>, vector<64x64xf32>, vector<8x64xf32> -> vector<8x64xf32>
    %81 = vector.broadcast %44 : vector<1x64xf32> to vector<8x64xf32>
    %82 = arith.addf %80, %81 : vector<8x64xf32>
    %83 = vector.extract_strided_slice %23 {offsets = [8, 0], sizes = [8, 64], strides = [1, 1]} : vector<64x64xf32> to vector<8x64xf32>
    %84 = arith.addf %83, %78 : vector<8x64xf32>
    %cst_61 = arith.constant 0.000000e+00 : f32
    %85 = vector.broadcast %cst_61 : f32 to vector<8x64xf32>
    %86 = arith.subf %85, %84 : vector<8x64xf32>
    %87 = math.exp %86 : vector<8x64xf32>
    %cst_62 = arith.constant 1.000000e+00 : f32
    %88 = vector.broadcast %cst_62 : f32 to vector<8x64xf32>
    %89 = arith.addf %88, %87 : vector<8x64xf32>
    %cst_63 = arith.constant 1.000000e+00 : f32
    %90 = vector.broadcast %cst_63 : f32 to vector<8x64xf32>
    %91 = arith.divf %90, %89 : vector<8x64xf32>
    %92 = vector.extract_strided_slice %30 {offsets = [8, 0], sizes = [8, 64], strides = [1, 1]} : vector<64x64xf32> to vector<8x64xf32>
    %93 = arith.addf %92, %79 : vector<8x64xf32>
    %cst_64 = arith.constant 0.000000e+00 : f32
    %94 = vector.broadcast %cst_64 : f32 to vector<8x64xf32>
    %95 = arith.subf %94, %93 : vector<8x64xf32>
    %96 = math.exp %95 : vector<8x64xf32>
    %cst_65 = arith.constant 1.000000e+00 : f32
    %97 = vector.broadcast %cst_65 : f32 to vector<8x64xf32>
    %98 = arith.addf %97, %96 : vector<8x64xf32>
    %cst_66 = arith.constant 1.000000e+00 : f32
    %99 = vector.broadcast %cst_66 : f32 to vector<8x64xf32>
    %100 = arith.divf %99, %98 : vector<8x64xf32>
    %101 = vector.extract_strided_slice %37 {offsets = [8, 0], sizes = [8, 64], strides = [1, 1]} : vector<64x64xf32> to vector<8x64xf32>
    %102 = arith.mulf %91, %82 : vector<8x64xf32>
    %103 = arith.addf %101, %102 : vector<8x64xf32>
    %104 = math.tanh %103 : vector<8x64xf32>
    %cst_67 = arith.constant 1.000000e+00 : f32
    %105 = vector.broadcast %cst_67 : f32 to vector<8x64xf32>
    %106 = arith.subf %105, %100 : vector<8x64xf32>
    %107 = arith.mulf %106, %104 : vector<8x64xf32>
    %108 = arith.mulf %100, %77 : vector<8x64xf32>
    %109 = arith.addf %107, %108 : vector<8x64xf32>
    %cst_68 = arith.constant dense<0.000000e+00> : vector<8x64xf32>
    %110 = tpu.matmul %109, %39, %cst_68 {dimension_numbers = #tpu.dot_dimension_numbers<[1], [0], [0], [1], [0, 0, 1, 1], [], []>} : vector<8x64xf32>, vector<64x64xf32>, vector<8x64xf32> -> vector<8x64xf32>
    %cst_69 = arith.constant dense<0.000000e+00> : vector<8x64xf32>
    %111 = tpu.matmul %109, %41, %cst_69 {dimension_numbers = #tpu.dot_dimension_numbers<[1], [0], [0], [1], [0, 0, 1, 1], [], []>} : vector<8x64xf32>, vector<64x64xf32>, vector<8x64xf32> -> vector<8x64xf32>
    %cst_70 = arith.constant dense<0.000000e+00> : vector<8x64xf32>
    %112 = tpu.matmul %109, %43, %cst_70 {dimension_numbers = #tpu.dot_dimension_numbers<[1], [0], [0], [1], [0, 0, 1, 1], [], []>} : vector<8x64xf32>, vector<64x64xf32>, vector<8x64xf32> -> vector<8x64xf32>
    %113 = vector.broadcast %44 : vector<1x64xf32> to vector<8x64xf32>
    %114 = arith.addf %112, %113 : vector<8x64xf32>
    %115 = vector.extract_strided_slice %23 {offsets = [16, 0], sizes = [8, 64], strides = [1, 1]} : vector<64x64xf32> to vector<8x64xf32>
    %116 = arith.addf %115, %110 : vector<8x64xf32>
    %cst_71 = arith.constant 0.000000e+00 : f32
    %117 = vector.broadcast %cst_71 : f32 to vector<8x64xf32>
    %118 = arith.subf %117, %116 : vector<8x64xf32>
    %119 = math.exp %118 : vector<8x64xf32>
    %cst_72 = arith.constant 1.000000e+00 : f32
    %120 = vector.broadcast %cst_72 : f32 to vector<8x64xf32>
    %121 = arith.addf %120, %119 : vector<8x64xf32>
    %cst_73 = arith.constant 1.000000e+00 : f32
    %122 = vector.broadcast %cst_73 : f32 to vector<8x64xf32>
    %123 = arith.divf %122, %121 : vector<8x64xf32>
    %124 = vector.extract_strided_slice %30 {offsets = [16, 0], sizes = [8, 64], strides = [1, 1]} : vector<64x64xf32> to vector<8x64xf32>
    %125 = arith.addf %124, %111 : vector<8x64xf32>
    %cst_74 = arith.constant 0.000000e+00 : f32
    %126 = vector.broadcast %cst_74 : f32 to vector<8x64xf32>
    %127 = arith.subf %126, %125 : vector<8x64xf32>
    %128 = math.exp %127 : vector<8x64xf32>
    %cst_75 = arith.constant 1.000000e+00 : f32
    %129 = vector.broadcast %cst_75 : f32 to vector<8x64xf32>
    %130 = arith.addf %129, %128 : vector<8x64xf32>
    %cst_76 = arith.constant 1.000000e+00 : f32
    %131 = vector.broadcast %cst_76 : f32 to vector<8x64xf32>
    %132 = arith.divf %131, %130 : vector<8x64xf32>
    %133 = vector.extract_strided_slice %37 {offsets = [16, 0], sizes = [8, 64], strides = [1, 1]} : vector<64x64xf32> to vector<8x64xf32>
    %134 = arith.mulf %123, %114 : vector<8x64xf32>
    %135 = arith.addf %133, %134 : vector<8x64xf32>
    %136 = math.tanh %135 : vector<8x64xf32>
    %cst_77 = arith.constant 1.000000e+00 : f32
    %137 = vector.broadcast %cst_77 : f32 to vector<8x64xf32>
    %138 = arith.subf %137, %132 : vector<8x64xf32>
    %139 = arith.mulf %138, %136 : vector<8x64xf32>
    %140 = arith.mulf %132, %109 : vector<8x64xf32>
    %141 = arith.addf %139, %140 : vector<8x64xf32>
    %cst_78 = arith.constant dense<0.000000e+00> : vector<8x64xf32>
    %142 = tpu.matmul %141, %39, %cst_78 {dimension_numbers = #tpu.dot_dimension_numbers<[1], [0], [0], [1], [0, 0, 1, 1], [], []>} : vector<8x64xf32>, vector<64x64xf32>, vector<8x64xf32> -> vector<8x64xf32>
    %cst_79 = arith.constant dense<0.000000e+00> : vector<8x64xf32>
    %143 = tpu.matmul %141, %41, %cst_79 {dimension_numbers = #tpu.dot_dimension_numbers<[1], [0], [0], [1], [0, 0, 1, 1], [], []>} : vector<8x64xf32>, vector<64x64xf32>, vector<8x64xf32> -> vector<8x64xf32>
    %cst_80 = arith.constant dense<0.000000e+00> : vector<8x64xf32>
    %144 = tpu.matmul %141, %43, %cst_80 {dimension_numbers = #tpu.dot_dimension_numbers<[1], [0], [0], [1], [0, 0, 1, 1], [], []>} : vector<8x64xf32>, vector<64x64xf32>, vector<8x64xf32> -> vector<8x64xf32>
    %145 = vector.broadcast %44 : vector<1x64xf32> to vector<8x64xf32>
    %146 = arith.addf %144, %145 : vector<8x64xf32>
    %147 = vector.extract_strided_slice %23 {offsets = [24, 0], sizes = [8, 64], strides = [1, 1]} : vector<64x64xf32> to vector<8x64xf32>
    %148 = arith.addf %147, %142 : vector<8x64xf32>
    %cst_81 = arith.constant 0.000000e+00 : f32
    %149 = vector.broadcast %cst_81 : f32 to vector<8x64xf32>
    %150 = arith.subf %149, %148 : vector<8x64xf32>
    %151 = math.exp %150 : vector<8x64xf32>
    %cst_82 = arith.constant 1.000000e+00 : f32
    %152 = vector.broadcast %cst_82 : f32 to vector<8x64xf32>
    %153 = arith.addf %152, %151 : vector<8x64xf32>
    %cst_83 = arith.constant 1.000000e+00 : f32
    %154 = vector.broadcast %cst_83 : f32 to vector<8x64xf32>
    %155 = arith.divf %154, %153 : vector<8x64xf32>
    %156 = vector.extract_strided_slice %30 {offsets = [24, 0], sizes = [8, 64], strides = [1, 1]} : vector<64x64xf32> to vector<8x64xf32>
    %157 = arith.addf %156, %143 : vector<8x64xf32>
    %cst_84 = arith.constant 0.000000e+00 : f32
    %158 = vector.broadcast %cst_84 : f32 to vector<8x64xf32>
    %159 = arith.subf %158, %157 : vector<8x64xf32>
    %160 = math.exp %159 : vector<8x64xf32>
    %cst_85 = arith.constant 1.000000e+00 : f32
    %161 = vector.broadcast %cst_85 : f32 to vector<8x64xf32>
    %162 = arith.addf %161, %160 : vector<8x64xf32>
    %cst_86 = arith.constant 1.000000e+00 : f32
    %163 = vector.broadcast %cst_86 : f32 to vector<8x64xf32>
    %164 = arith.divf %163, %162 : vector<8x64xf32>
    %165 = vector.extract_strided_slice %37 {offsets = [24, 0], sizes = [8, 64], strides = [1, 1]} : vector<64x64xf32> to vector<8x64xf32>
    %166 = arith.mulf %155, %146 : vector<8x64xf32>
    %167 = arith.addf %165, %166 : vector<8x64xf32>
    %168 = math.tanh %167 : vector<8x64xf32>
    %cst_87 = arith.constant 1.000000e+00 : f32
    %169 = vector.broadcast %cst_87 : f32 to vector<8x64xf32>
    %170 = arith.subf %169, %164 : vector<8x64xf32>
    %171 = arith.mulf %170, %168 : vector<8x64xf32>
    %172 = arith.mulf %164, %141 : vector<8x64xf32>
    %173 = arith.addf %171, %172 : vector<8x64xf32>
    %cst_88 = arith.constant dense<0.000000e+00> : vector<8x64xf32>
    %174 = tpu.matmul %173, %39, %cst_88 {dimension_numbers = #tpu.dot_dimension_numbers<[1], [0], [0], [1], [0, 0, 1, 1], [], []>} : vector<8x64xf32>, vector<64x64xf32>, vector<8x64xf32> -> vector<8x64xf32>
    %cst_89 = arith.constant dense<0.000000e+00> : vector<8x64xf32>
    %175 = tpu.matmul %173, %41, %cst_89 {dimension_numbers = #tpu.dot_dimension_numbers<[1], [0], [0], [1], [0, 0, 1, 1], [], []>} : vector<8x64xf32>, vector<64x64xf32>, vector<8x64xf32> -> vector<8x64xf32>
    %cst_90 = arith.constant dense<0.000000e+00> : vector<8x64xf32>
    %176 = tpu.matmul %173, %43, %cst_90 {dimension_numbers = #tpu.dot_dimension_numbers<[1], [0], [0], [1], [0, 0, 1, 1], [], []>} : vector<8x64xf32>, vector<64x64xf32>, vector<8x64xf32> -> vector<8x64xf32>
    %177 = vector.broadcast %44 : vector<1x64xf32> to vector<8x64xf32>
    %178 = arith.addf %176, %177 : vector<8x64xf32>
    %179 = vector.extract_strided_slice %23 {offsets = [32, 0], sizes = [8, 64], strides = [1, 1]} : vector<64x64xf32> to vector<8x64xf32>
    %180 = arith.addf %179, %174 : vector<8x64xf32>
    %cst_91 = arith.constant 0.000000e+00 : f32
    %181 = vector.broadcast %cst_91 : f32 to vector<8x64xf32>
    %182 = arith.subf %181, %180 : vector<8x64xf32>
    %183 = math.exp %182 : vector<8x64xf32>
    %cst_92 = arith.constant 1.000000e+00 : f32
    %184 = vector.broadcast %cst_92 : f32 to vector<8x64xf32>
    %185 = arith.addf %184, %183 : vector<8x64xf32>
    %cst_93 = arith.constant 1.000000e+00 : f32
    %186 = vector.broadcast %cst_93 : f32 to vector<8x64xf32>
    %187 = arith.divf %186, %185 : vector<8x64xf32>
    %188 = vector.extract_strided_slice %30 {offsets = [32, 0], sizes = [8, 64], strides = [1, 1]} : vector<64x64xf32> to vector<8x64xf32>
    %189 = arith.addf %188, %175 : vector<8x64xf32>
    %cst_94 = arith.constant 0.000000e+00 : f32
    %190 = vector.broadcast %cst_94 : f32 to vector<8x64xf32>
    %191 = arith.subf %190, %189 : vector<8x64xf32>
    %192 = math.exp %191 : vector<8x64xf32>
    %cst_95 = arith.constant 1.000000e+00 : f32
    %193 = vector.broadcast %cst_95 : f32 to vector<8x64xf32>
    %194 = arith.addf %193, %192 : vector<8x64xf32>
    %cst_96 = arith.constant 1.000000e+00 : f32
    %195 = vector.broadcast %cst_96 : f32 to vector<8x64xf32>
    %196 = arith.divf %195, %194 : vector<8x64xf32>
    %197 = vector.extract_strided_slice %37 {offsets = [32, 0], sizes = [8, 64], strides = [1, 1]} : vector<64x64xf32> to vector<8x64xf32>
    %198 = arith.mulf %187, %178 : vector<8x64xf32>
    %199 = arith.addf %197, %198 : vector<8x64xf32>
    %200 = math.tanh %199 : vector<8x64xf32>
    %cst_97 = arith.constant 1.000000e+00 : f32
    %201 = vector.broadcast %cst_97 : f32 to vector<8x64xf32>
    %202 = arith.subf %201, %196 : vector<8x64xf32>
    %203 = arith.mulf %202, %200 : vector<8x64xf32>
    %204 = arith.mulf %196, %173 : vector<8x64xf32>
    %205 = arith.addf %203, %204 : vector<8x64xf32>
    %cst_98 = arith.constant dense<0.000000e+00> : vector<8x64xf32>
    %206 = tpu.matmul %205, %39, %cst_98 {dimension_numbers = #tpu.dot_dimension_numbers<[1], [0], [0], [1], [0, 0, 1, 1], [], []>} : vector<8x64xf32>, vector<64x64xf32>, vector<8x64xf32> -> vector<8x64xf32>
    %cst_99 = arith.constant dense<0.000000e+00> : vector<8x64xf32>
    %207 = tpu.matmul %205, %41, %cst_99 {dimension_numbers = #tpu.dot_dimension_numbers<[1], [0], [0], [1], [0, 0, 1, 1], [], []>} : vector<8x64xf32>, vector<64x64xf32>, vector<8x64xf32> -> vector<8x64xf32>
    %cst_100 = arith.constant dense<0.000000e+00> : vector<8x64xf32>
    %208 = tpu.matmul %205, %43, %cst_100 {dimension_numbers = #tpu.dot_dimension_numbers<[1], [0], [0], [1], [0, 0, 1, 1], [], []>} : vector<8x64xf32>, vector<64x64xf32>, vector<8x64xf32> -> vector<8x64xf32>
    %209 = vector.broadcast %44 : vector<1x64xf32> to vector<8x64xf32>
    %210 = arith.addf %208, %209 : vector<8x64xf32>
    %211 = vector.extract_strided_slice %23 {offsets = [40, 0], sizes = [8, 64], strides = [1, 1]} : vector<64x64xf32> to vector<8x64xf32>
    %212 = arith.addf %211, %206 : vector<8x64xf32>
    %cst_101 = arith.constant 0.000000e+00 : f32
    %213 = vector.broadcast %cst_101 : f32 to vector<8x64xf32>
    %214 = arith.subf %213, %212 : vector<8x64xf32>
    %215 = math.exp %214 : vector<8x64xf32>
    %cst_102 = arith.constant 1.000000e+00 : f32
    %216 = vector.broadcast %cst_102 : f32 to vector<8x64xf32>
    %217 = arith.addf %216, %215 : vector<8x64xf32>
    %cst_103 = arith.constant 1.000000e+00 : f32
    %218 = vector.broadcast %cst_103 : f32 to vector<8x64xf32>
    %219 = arith.divf %218, %217 : vector<8x64xf32>
    %220 = vector.extract_strided_slice %30 {offsets = [40, 0], sizes = [8, 64], strides = [1, 1]} : vector<64x64xf32> to vector<8x64xf32>
    %221 = arith.addf %220, %207 : vector<8x64xf32>
    %cst_104 = arith.constant 0.000000e+00 : f32
    %222 = vector.broadcast %cst_104 : f32 to vector<8x64xf32>
    %223 = arith.subf %222, %221 : vector<8x64xf32>
    %224 = math.exp %223 : vector<8x64xf32>
    %cst_105 = arith.constant 1.000000e+00 : f32
    %225 = vector.broadcast %cst_105 : f32 to vector<8x64xf32>
    %226 = arith.addf %225, %224 : vector<8x64xf32>
    %cst_106 = arith.constant 1.000000e+00 : f32
    %227 = vector.broadcast %cst_106 : f32 to vector<8x64xf32>
    %228 = arith.divf %227, %226 : vector<8x64xf32>
    %229 = vector.extract_strided_slice %37 {offsets = [40, 0], sizes = [8, 64], strides = [1, 1]} : vector<64x64xf32> to vector<8x64xf32>
    %230 = arith.mulf %219, %210 : vector<8x64xf32>
    %231 = arith.addf %229, %230 : vector<8x64xf32>
    %232 = math.tanh %231 : vector<8x64xf32>
    %cst_107 = arith.constant 1.000000e+00 : f32
    %233 = vector.broadcast %cst_107 : f32 to vector<8x64xf32>
    %234 = arith.subf %233, %228 : vector<8x64xf32>
    %235 = arith.mulf %234, %232 : vector<8x64xf32>
    %236 = arith.mulf %228, %205 : vector<8x64xf32>
    %237 = arith.addf %235, %236 : vector<8x64xf32>
    %cst_108 = arith.constant dense<0.000000e+00> : vector<8x64xf32>
    %238 = tpu.matmul %237, %39, %cst_108 {dimension_numbers = #tpu.dot_dimension_numbers<[1], [0], [0], [1], [0, 0, 1, 1], [], []>} : vector<8x64xf32>, vector<64x64xf32>, vector<8x64xf32> -> vector<8x64xf32>
    %cst_109 = arith.constant dense<0.000000e+00> : vector<8x64xf32>
    %239 = tpu.matmul %237, %41, %cst_109 {dimension_numbers = #tpu.dot_dimension_numbers<[1], [0], [0], [1], [0, 0, 1, 1], [], []>} : vector<8x64xf32>, vector<64x64xf32>, vector<8x64xf32> -> vector<8x64xf32>
    %cst_110 = arith.constant dense<0.000000e+00> : vector<8x64xf32>
    %240 = tpu.matmul %237, %43, %cst_110 {dimension_numbers = #tpu.dot_dimension_numbers<[1], [0], [0], [1], [0, 0, 1, 1], [], []>} : vector<8x64xf32>, vector<64x64xf32>, vector<8x64xf32> -> vector<8x64xf32>
    %241 = vector.broadcast %44 : vector<1x64xf32> to vector<8x64xf32>
    %242 = arith.addf %240, %241 : vector<8x64xf32>
    %243 = vector.extract_strided_slice %23 {offsets = [48, 0], sizes = [8, 64], strides = [1, 1]} : vector<64x64xf32> to vector<8x64xf32>
    %244 = arith.addf %243, %238 : vector<8x64xf32>
    %cst_111 = arith.constant 0.000000e+00 : f32
    %245 = vector.broadcast %cst_111 : f32 to vector<8x64xf32>
    %246 = arith.subf %245, %244 : vector<8x64xf32>
    %247 = math.exp %246 : vector<8x64xf32>
    %cst_112 = arith.constant 1.000000e+00 : f32
    %248 = vector.broadcast %cst_112 : f32 to vector<8x64xf32>
    %249 = arith.addf %248, %247 : vector<8x64xf32>
    %cst_113 = arith.constant 1.000000e+00 : f32
    %250 = vector.broadcast %cst_113 : f32 to vector<8x64xf32>
    %251 = arith.divf %250, %249 : vector<8x64xf32>
    %252 = vector.extract_strided_slice %30 {offsets = [48, 0], sizes = [8, 64], strides = [1, 1]} : vector<64x64xf32> to vector<8x64xf32>
    %253 = arith.addf %252, %239 : vector<8x64xf32>
    %cst_114 = arith.constant 0.000000e+00 : f32
    %254 = vector.broadcast %cst_114 : f32 to vector<8x64xf32>
    %255 = arith.subf %254, %253 : vector<8x64xf32>
    %256 = math.exp %255 : vector<8x64xf32>
    %cst_115 = arith.constant 1.000000e+00 : f32
    %257 = vector.broadcast %cst_115 : f32 to vector<8x64xf32>
    %258 = arith.addf %257, %256 : vector<8x64xf32>
    %cst_116 = arith.constant 1.000000e+00 : f32
    %259 = vector.broadcast %cst_116 : f32 to vector<8x64xf32>
    %260 = arith.divf %259, %258 : vector<8x64xf32>
    %261 = vector.extract_strided_slice %37 {offsets = [48, 0], sizes = [8, 64], strides = [1, 1]} : vector<64x64xf32> to vector<8x64xf32>
    %262 = arith.mulf %251, %242 : vector<8x64xf32>
    %263 = arith.addf %261, %262 : vector<8x64xf32>
    %264 = math.tanh %263 : vector<8x64xf32>
    %cst_117 = arith.constant 1.000000e+00 : f32
    %265 = vector.broadcast %cst_117 : f32 to vector<8x64xf32>
    %266 = arith.subf %265, %260 : vector<8x64xf32>
    %267 = arith.mulf %266, %264 : vector<8x64xf32>
    %268 = arith.mulf %260, %237 : vector<8x64xf32>
    %269 = arith.addf %267, %268 : vector<8x64xf32>
    %cst_118 = arith.constant dense<0.000000e+00> : vector<8x64xf32>
    %270 = tpu.matmul %269, %39, %cst_118 {dimension_numbers = #tpu.dot_dimension_numbers<[1], [0], [0], [1], [0, 0, 1, 1], [], []>} : vector<8x64xf32>, vector<64x64xf32>, vector<8x64xf32> -> vector<8x64xf32>
    %cst_119 = arith.constant dense<0.000000e+00> : vector<8x64xf32>
    %271 = tpu.matmul %269, %41, %cst_119 {dimension_numbers = #tpu.dot_dimension_numbers<[1], [0], [0], [1], [0, 0, 1, 1], [], []>} : vector<8x64xf32>, vector<64x64xf32>, vector<8x64xf32> -> vector<8x64xf32>
    %cst_120 = arith.constant dense<0.000000e+00> : vector<8x64xf32>
    %272 = tpu.matmul %269, %43, %cst_120 {dimension_numbers = #tpu.dot_dimension_numbers<[1], [0], [0], [1], [0, 0, 1, 1], [], []>} : vector<8x64xf32>, vector<64x64xf32>, vector<8x64xf32> -> vector<8x64xf32>
    %273 = vector.broadcast %44 : vector<1x64xf32> to vector<8x64xf32>
    %274 = arith.addf %272, %273 : vector<8x64xf32>
    %275 = vector.extract_strided_slice %23 {offsets = [56, 0], sizes = [8, 64], strides = [1, 1]} : vector<64x64xf32> to vector<8x64xf32>
    %276 = arith.addf %275, %270 : vector<8x64xf32>
    %cst_121 = arith.constant 0.000000e+00 : f32
    %277 = vector.broadcast %cst_121 : f32 to vector<8x64xf32>
    %278 = arith.subf %277, %276 : vector<8x64xf32>
    %279 = math.exp %278 : vector<8x64xf32>
    %cst_122 = arith.constant 1.000000e+00 : f32
    %280 = vector.broadcast %cst_122 : f32 to vector<8x64xf32>
    %281 = arith.addf %280, %279 : vector<8x64xf32>
    %cst_123 = arith.constant 1.000000e+00 : f32
    %282 = vector.broadcast %cst_123 : f32 to vector<8x64xf32>
    %283 = arith.divf %282, %281 : vector<8x64xf32>
    %284 = vector.extract_strided_slice %30 {offsets = [56, 0], sizes = [8, 64], strides = [1, 1]} : vector<64x64xf32> to vector<8x64xf32>
    %285 = arith.addf %284, %271 : vector<8x64xf32>
    %cst_124 = arith.constant 0.000000e+00 : f32
    %286 = vector.broadcast %cst_124 : f32 to vector<8x64xf32>
    %287 = arith.subf %286, %285 : vector<8x64xf32>
    %288 = math.exp %287 : vector<8x64xf32>
    %cst_125 = arith.constant 1.000000e+00 : f32
    %289 = vector.broadcast %cst_125 : f32 to vector<8x64xf32>
    %290 = arith.addf %289, %288 : vector<8x64xf32>
    %cst_126 = arith.constant 1.000000e+00 : f32
    %291 = vector.broadcast %cst_126 : f32 to vector<8x64xf32>
    %292 = arith.divf %291, %290 : vector<8x64xf32>
    %293 = vector.extract_strided_slice %37 {offsets = [56, 0], sizes = [8, 64], strides = [1, 1]} : vector<64x64xf32> to vector<8x64xf32>
    %294 = arith.mulf %283, %274 : vector<8x64xf32>
    %295 = arith.addf %293, %294 : vector<8x64xf32>
    %296 = math.tanh %295 : vector<8x64xf32>
    %cst_127 = arith.constant 1.000000e+00 : f32
    %297 = vector.broadcast %cst_127 : f32 to vector<8x64xf32>
    %298 = arith.subf %297, %292 : vector<8x64xf32>
    %299 = arith.mulf %298, %296 : vector<8x64xf32>
    %300 = arith.mulf %292, %269 : vector<8x64xf32>
    %301 = arith.addf %299, %300 : vector<8x64xf32>
    %302 = tpu.concatenate %77, %109, %141, %173, %205, %237, %269, %301 in 0 : vector<8x64xf32>, vector<8x64xf32>, vector<8x64xf32>, vector<8x64xf32>, vector<8x64xf32>, vector<8x64xf32>, vector<8x64xf32>, vector<8x64xf32> -> vector<64x64xf32>
    %c0_128 = arith.constant 0 : index
    %c0_129 = arith.constant 0 : index
    %c0_130 = arith.constant 0 : index
    %303 = vector.load %arg6[%c0_128, %c0_129, %c0_130] : memref<3x64x32xf32, #tpu.memory_space<vmem>>, vector<1x64x32xf32>
    %304 = vector.shape_cast %303 : vector<1x64x32xf32> to vector<64x32xf32>
    %cst_131 = arith.constant dense<0.000000e+00> : vector<64x32xf32>
    %305 = tpu.matmul %302, %304, %cst_131 {dimension_numbers = #tpu.dot_dimension_numbers<[1], [0], [0], [1], [0, 0, 1, 1], [], []>} : vector<64x64xf32>, vector<64x32xf32>, vector<64x32xf32> -> vector<64x32xf32>
    %c0_132 = arith.constant 0 : index
    %c0_133 = arith.constant 0 : index
    %c0_134 = arith.constant 0 : index
    %306 = vector.load %arg8[%c0_132, %c0_133, %c0_134] : memref<3x1x32xf32, #tpu.memory_space<vmem>>, vector<1x1x32xf32>
    %307 = vector.shape_cast %306 : vector<1x1x32xf32> to vector<1x32xf32>
    %308 = vector.broadcast %307 : vector<1x32xf32> to vector<64x32xf32>
    %309 = arith.addf %305, %308 : vector<64x32xf32>
    %c1_135 = arith.constant 1 : index
    %c0_136 = arith.constant 0 : index
    %c0_137 = arith.constant 0 : index
    %310 = vector.load %arg6[%c1_135, %c0_136, %c0_137] : memref<3x64x32xf32, #tpu.memory_space<vmem>>, vector<1x64x32xf32>
    %311 = vector.shape_cast %310 : vector<1x64x32xf32> to vector<64x32xf32>
    %cst_138 = arith.constant dense<0.000000e+00> : vector<64x32xf32>
    %312 = tpu.matmul %302, %311, %cst_138 {dimension_numbers = #tpu.dot_dimension_numbers<[1], [0], [0], [1], [0, 0, 1, 1], [], []>} : vector<64x64xf32>, vector<64x32xf32>, vector<64x32xf32> -> vector<64x32xf32>
    %c1_139 = arith.constant 1 : index
    %c0_140 = arith.constant 0 : index
    %c0_141 = arith.constant 0 : index
    %313 = vector.load %arg8[%c1_139, %c0_140, %c0_141] : memref<3x1x32xf32, #tpu.memory_space<vmem>>, vector<1x1x32xf32>
    %314 = vector.shape_cast %313 : vector<1x1x32xf32> to vector<1x32xf32>
    %315 = vector.broadcast %314 : vector<1x32xf32> to vector<64x32xf32>
    %316 = arith.addf %312, %315 : vector<64x32xf32>
    %c2_142 = arith.constant 2 : index
    %c0_143 = arith.constant 0 : index
    %c0_144 = arith.constant 0 : index
    %317 = vector.load %arg6[%c2_142, %c0_143, %c0_144] : memref<3x64x32xf32, #tpu.memory_space<vmem>>, vector<1x64x32xf32>
    %318 = vector.shape_cast %317 : vector<1x64x32xf32> to vector<64x32xf32>
    %cst_145 = arith.constant dense<0.000000e+00> : vector<64x32xf32>
    %319 = tpu.matmul %302, %318, %cst_145 {dimension_numbers = #tpu.dot_dimension_numbers<[1], [0], [0], [1], [0, 0, 1, 1], [], []>} : vector<64x64xf32>, vector<64x32xf32>, vector<64x32xf32> -> vector<64x32xf32>
    %c2_146 = arith.constant 2 : index
    %c0_147 = arith.constant 0 : index
    %c0_148 = arith.constant 0 : index
    %320 = vector.load %arg8[%c2_146, %c0_147, %c0_148] : memref<3x1x32xf32, #tpu.memory_space<vmem>>, vector<1x1x32xf32>
    %321 = vector.shape_cast %320 : vector<1x1x32xf32> to vector<1x32xf32>
    %322 = vector.broadcast %321 : vector<1x32xf32> to vector<64x32xf32>
    %323 = arith.addf %319, %322 : vector<64x32xf32>
    %c0_149 = arith.constant 0 : index
    %c0_150 = arith.constant 0 : index
    %c0_151 = arith.constant 0 : index
    %324 = vector.load %arg7[%c0_149, %c0_150, %c0_151] : memref<3x32x32xf32, #tpu.memory_space<vmem>>, vector<1x32x32xf32>
    %325 = vector.shape_cast %324 : vector<1x32x32xf32> to vector<32x32xf32>
    %c1_152 = arith.constant 1 : index
    %c0_153 = arith.constant 0 : index
    %c0_154 = arith.constant 0 : index
    %326 = vector.load %arg7[%c1_152, %c0_153, %c0_154] : memref<3x32x32xf32, #tpu.memory_space<vmem>>, vector<1x32x32xf32>
    %327 = vector.shape_cast %326 : vector<1x32x32xf32> to vector<32x32xf32>
    %c2_155 = arith.constant 2 : index
    %c0_156 = arith.constant 0 : index
    %c0_157 = arith.constant 0 : index
    %328 = vector.load %arg7[%c2_155, %c0_156, %c0_157] : memref<3x32x32xf32, #tpu.memory_space<vmem>>, vector<1x32x32xf32>
    %329 = vector.shape_cast %328 : vector<1x32x32xf32> to vector<32x32xf32>
    %c0_158 = arith.constant 0 : index
    %c0_159 = arith.constant 0 : index
    %330 = vector.load %arg9[%c0_158, %c0_159] : memref<1x32xf32, #tpu.memory_space<vmem>>, vector<1x32xf32>
    %cst_160 = arith.constant 0.000000e+00 : f32
    %331 = vector.broadcast %cst_160 : f32 to vector<8x32xf32>
    %cst_161 = arith.constant dense<0.000000e+00> : vector<8x32xf32>
    %332 = tpu.matmul %331, %325, %cst_161 {dimension_numbers = #tpu.dot_dimension_numbers<[1], [0], [0], [1], [0, 0, 1, 1], [], []>} : vector<8x32xf32>, vector<32x32xf32>, vector<8x32xf32> -> vector<8x32xf32>
    %cst_162 = arith.constant dense<0.000000e+00> : vector<8x32xf32>
    %333 = tpu.matmul %331, %327, %cst_162 {dimension_numbers = #tpu.dot_dimension_numbers<[1], [0], [0], [1], [0, 0, 1, 1], [], []>} : vector<8x32xf32>, vector<32x32xf32>, vector<8x32xf32> -> vector<8x32xf32>
    %cst_163 = arith.constant dense<0.000000e+00> : vector<8x32xf32>
    %334 = tpu.matmul %331, %329, %cst_163 {dimension_numbers = #tpu.dot_dimension_numbers<[1], [0], [0], [1], [0, 0, 1, 1], [], []>} : vector<8x32xf32>, vector<32x32xf32>, vector<8x32xf32> -> vector<8x32xf32>
    %335 = vector.broadcast %330 : vector<1x32xf32> to vector<8x32xf32>
    %336 = arith.addf %334, %335 : vector<8x32xf32>
    %337 = vector.extract_strided_slice %309 {offsets = [0, 0], sizes = [8, 32], strides = [1, 1]} : vector<64x32xf32> to vector<8x32xf32>
    %338 = arith.addf %337, %332 : vector<8x32xf32>
    %cst_164 = arith.constant 0.000000e+00 : f32
    %339 = vector.broadcast %cst_164 : f32 to vector<8x32xf32>
    %340 = arith.subf %339, %338 : vector<8x32xf32>
    %341 = math.exp %340 : vector<8x32xf32>
    %cst_165 = arith.constant 1.000000e+00 : f32
    %342 = vector.broadcast %cst_165 : f32 to vector<8x32xf32>
    %343 = arith.addf %342, %341 : vector<8x32xf32>
    %cst_166 = arith.constant 1.000000e+00 : f32
    %344 = vector.broadcast %cst_166 : f32 to vector<8x32xf32>
    %345 = arith.divf %344, %343 : vector<8x32xf32>
    %346 = vector.extract_strided_slice %316 {offsets = [0, 0], sizes = [8, 32], strides = [1, 1]} : vector<64x32xf32> to vector<8x32xf32>
    %347 = arith.addf %346, %333 : vector<8x32xf32>
    %cst_167 = arith.constant 0.000000e+00 : f32
    %348 = vector.broadcast %cst_167 : f32 to vector<8x32xf32>
    %349 = arith.subf %348, %347 : vector<8x32xf32>
    %350 = math.exp %349 : vector<8x32xf32>
    %cst_168 = arith.constant 1.000000e+00 : f32
    %351 = vector.broadcast %cst_168 : f32 to vector<8x32xf32>
    %352 = arith.addf %351, %350 : vector<8x32xf32>
    %cst_169 = arith.constant 1.000000e+00 : f32
    %353 = vector.broadcast %cst_169 : f32 to vector<8x32xf32>
    %354 = arith.divf %353, %352 : vector<8x32xf32>
    %355 = vector.extract_strided_slice %323 {offsets = [0, 0], sizes = [8, 32], strides = [1, 1]} : vector<64x32xf32> to vector<8x32xf32>
    %356 = arith.mulf %345, %336 : vector<8x32xf32>
    %357 = arith.addf %355, %356 : vector<8x32xf32>
    %358 = math.tanh %357 : vector<8x32xf32>
    %cst_170 = arith.constant 1.000000e+00 : f32
    %359 = vector.broadcast %cst_170 : f32 to vector<8x32xf32>
    %360 = arith.subf %359, %354 : vector<8x32xf32>
    %361 = arith.mulf %360, %358 : vector<8x32xf32>
    %362 = arith.mulf %354, %331 : vector<8x32xf32>
    %363 = arith.addf %361, %362 : vector<8x32xf32>
    %cst_171 = arith.constant dense<0.000000e+00> : vector<8x32xf32>
    %364 = tpu.matmul %363, %325, %cst_171 {dimension_numbers = #tpu.dot_dimension_numbers<[1], [0], [0], [1], [0, 0, 1, 1], [], []>} : vector<8x32xf32>, vector<32x32xf32>, vector<8x32xf32> -> vector<8x32xf32>
    %cst_172 = arith.constant dense<0.000000e+00> : vector<8x32xf32>
    %365 = tpu.matmul %363, %327, %cst_172 {dimension_numbers = #tpu.dot_dimension_numbers<[1], [0], [0], [1], [0, 0, 1, 1], [], []>} : vector<8x32xf32>, vector<32x32xf32>, vector<8x32xf32> -> vector<8x32xf32>
    %cst_173 = arith.constant dense<0.000000e+00> : vector<8x32xf32>
    %366 = tpu.matmul %363, %329, %cst_173 {dimension_numbers = #tpu.dot_dimension_numbers<[1], [0], [0], [1], [0, 0, 1, 1], [], []>} : vector<8x32xf32>, vector<32x32xf32>, vector<8x32xf32> -> vector<8x32xf32>
    %367 = vector.broadcast %330 : vector<1x32xf32> to vector<8x32xf32>
    %368 = arith.addf %366, %367 : vector<8x32xf32>
    %369 = vector.extract_strided_slice %309 {offsets = [8, 0], sizes = [8, 32], strides = [1, 1]} : vector<64x32xf32> to vector<8x32xf32>
    %370 = arith.addf %369, %364 : vector<8x32xf32>
    %cst_174 = arith.constant 0.000000e+00 : f32
    %371 = vector.broadcast %cst_174 : f32 to vector<8x32xf32>
    %372 = arith.subf %371, %370 : vector<8x32xf32>
    %373 = math.exp %372 : vector<8x32xf32>
    %cst_175 = arith.constant 1.000000e+00 : f32
    %374 = vector.broadcast %cst_175 : f32 to vector<8x32xf32>
    %375 = arith.addf %374, %373 : vector<8x32xf32>
    %cst_176 = arith.constant 1.000000e+00 : f32
    %376 = vector.broadcast %cst_176 : f32 to vector<8x32xf32>
    %377 = arith.divf %376, %375 : vector<8x32xf32>
    %378 = vector.extract_strided_slice %316 {offsets = [8, 0], sizes = [8, 32], strides = [1, 1]} : vector<64x32xf32> to vector<8x32xf32>
    %379 = arith.addf %378, %365 : vector<8x32xf32>
    %cst_177 = arith.constant 0.000000e+00 : f32
    %380 = vector.broadcast %cst_177 : f32 to vector<8x32xf32>
    %381 = arith.subf %380, %379 : vector<8x32xf32>
    %382 = math.exp %381 : vector<8x32xf32>
    %cst_178 = arith.constant 1.000000e+00 : f32
    %383 = vector.broadcast %cst_178 : f32 to vector<8x32xf32>
    %384 = arith.addf %383, %382 : vector<8x32xf32>
    %cst_179 = arith.constant 1.000000e+00 : f32
    %385 = vector.broadcast %cst_179 : f32 to vector<8x32xf32>
    %386 = arith.divf %385, %384 : vector<8x32xf32>
    %387 = vector.extract_strided_slice %323 {offsets = [8, 0], sizes = [8, 32], strides = [1, 1]} : vector<64x32xf32> to vector<8x32xf32>
    %388 = arith.mulf %377, %368 : vector<8x32xf32>
    %389 = arith.addf %387, %388 : vector<8x32xf32>
    %390 = math.tanh %389 : vector<8x32xf32>
    %cst_180 = arith.constant 1.000000e+00 : f32
    %391 = vector.broadcast %cst_180 : f32 to vector<8x32xf32>
    %392 = arith.subf %391, %386 : vector<8x32xf32>
    %393 = arith.mulf %392, %390 : vector<8x32xf32>
    %394 = arith.mulf %386, %363 : vector<8x32xf32>
    %395 = arith.addf %393, %394 : vector<8x32xf32>
    %cst_181 = arith.constant dense<0.000000e+00> : vector<8x32xf32>
    %396 = tpu.matmul %395, %325, %cst_181 {dimension_numbers = #tpu.dot_dimension_numbers<[1], [0], [0], [1], [0, 0, 1, 1], [], []>} : vector<8x32xf32>, vector<32x32xf32>, vector<8x32xf32> -> vector<8x32xf32>
    %cst_182 = arith.constant dense<0.000000e+00> : vector<8x32xf32>
    %397 = tpu.matmul %395, %327, %cst_182 {dimension_numbers = #tpu.dot_dimension_numbers<[1], [0], [0], [1], [0, 0, 1, 1], [], []>} : vector<8x32xf32>, vector<32x32xf32>, vector<8x32xf32> -> vector<8x32xf32>
    %cst_183 = arith.constant dense<0.000000e+00> : vector<8x32xf32>
    %398 = tpu.matmul %395, %329, %cst_183 {dimension_numbers = #tpu.dot_dimension_numbers<[1], [0], [0], [1], [0, 0, 1, 1], [], []>} : vector<8x32xf32>, vector<32x32xf32>, vector<8x32xf32> -> vector<8x32xf32>
    %399 = vector.broadcast %330 : vector<1x32xf32> to vector<8x32xf32>
    %400 = arith.addf %398, %399 : vector<8x32xf32>
    %401 = vector.extract_strided_slice %309 {offsets = [16, 0], sizes = [8, 32], strides = [1, 1]} : vector<64x32xf32> to vector<8x32xf32>
    %402 = arith.addf %401, %396 : vector<8x32xf32>
    %cst_184 = arith.constant 0.000000e+00 : f32
    %403 = vector.broadcast %cst_184 : f32 to vector<8x32xf32>
    %404 = arith.subf %403, %402 : vector<8x32xf32>
    %405 = math.exp %404 : vector<8x32xf32>
    %cst_185 = arith.constant 1.000000e+00 : f32
    %406 = vector.broadcast %cst_185 : f32 to vector<8x32xf32>
    %407 = arith.addf %406, %405 : vector<8x32xf32>
    %cst_186 = arith.constant 1.000000e+00 : f32
    %408 = vector.broadcast %cst_186 : f32 to vector<8x32xf32>
    %409 = arith.divf %408, %407 : vector<8x32xf32>
    %410 = vector.extract_strided_slice %316 {offsets = [16, 0], sizes = [8, 32], strides = [1, 1]} : vector<64x32xf32> to vector<8x32xf32>
    %411 = arith.addf %410, %397 : vector<8x32xf32>
    %cst_187 = arith.constant 0.000000e+00 : f32
    %412 = vector.broadcast %cst_187 : f32 to vector<8x32xf32>
    %413 = arith.subf %412, %411 : vector<8x32xf32>
    %414 = math.exp %413 : vector<8x32xf32>
    %cst_188 = arith.constant 1.000000e+00 : f32
    %415 = vector.broadcast %cst_188 : f32 to vector<8x32xf32>
    %416 = arith.addf %415, %414 : vector<8x32xf32>
    %cst_189 = arith.constant 1.000000e+00 : f32
    %417 = vector.broadcast %cst_189 : f32 to vector<8x32xf32>
    %418 = arith.divf %417, %416 : vector<8x32xf32>
    %419 = vector.extract_strided_slice %323 {offsets = [16, 0], sizes = [8, 32], strides = [1, 1]} : vector<64x32xf32> to vector<8x32xf32>
    %420 = arith.mulf %409, %400 : vector<8x32xf32>
    %421 = arith.addf %419, %420 : vector<8x32xf32>
    %422 = math.tanh %421 : vector<8x32xf32>
    %cst_190 = arith.constant 1.000000e+00 : f32
    %423 = vector.broadcast %cst_190 : f32 to vector<8x32xf32>
    %424 = arith.subf %423, %418 : vector<8x32xf32>
    %425 = arith.mulf %424, %422 : vector<8x32xf32>
    %426 = arith.mulf %418, %395 : vector<8x32xf32>
    %427 = arith.addf %425, %426 : vector<8x32xf32>
    %cst_191 = arith.constant dense<0.000000e+00> : vector<8x32xf32>
    %428 = tpu.matmul %427, %325, %cst_191 {dimension_numbers = #tpu.dot_dimension_numbers<[1], [0], [0], [1], [0, 0, 1, 1], [], []>} : vector<8x32xf32>, vector<32x32xf32>, vector<8x32xf32> -> vector<8x32xf32>
    %cst_192 = arith.constant dense<0.000000e+00> : vector<8x32xf32>
    %429 = tpu.matmul %427, %327, %cst_192 {dimension_numbers = #tpu.dot_dimension_numbers<[1], [0], [0], [1], [0, 0, 1, 1], [], []>} : vector<8x32xf32>, vector<32x32xf32>, vector<8x32xf32> -> vector<8x32xf32>
    %cst_193 = arith.constant dense<0.000000e+00> : vector<8x32xf32>
    %430 = tpu.matmul %427, %329, %cst_193 {dimension_numbers = #tpu.dot_dimension_numbers<[1], [0], [0], [1], [0, 0, 1, 1], [], []>} : vector<8x32xf32>, vector<32x32xf32>, vector<8x32xf32> -> vector<8x32xf32>
    %431 = vector.broadcast %330 : vector<1x32xf32> to vector<8x32xf32>
    %432 = arith.addf %430, %431 : vector<8x32xf32>
    %433 = vector.extract_strided_slice %309 {offsets = [24, 0], sizes = [8, 32], strides = [1, 1]} : vector<64x32xf32> to vector<8x32xf32>
    %434 = arith.addf %433, %428 : vector<8x32xf32>
    %cst_194 = arith.constant 0.000000e+00 : f32
    %435 = vector.broadcast %cst_194 : f32 to vector<8x32xf32>
    %436 = arith.subf %435, %434 : vector<8x32xf32>
    %437 = math.exp %436 : vector<8x32xf32>
    %cst_195 = arith.constant 1.000000e+00 : f32
    %438 = vector.broadcast %cst_195 : f32 to vector<8x32xf32>
    %439 = arith.addf %438, %437 : vector<8x32xf32>
    %cst_196 = arith.constant 1.000000e+00 : f32
    %440 = vector.broadcast %cst_196 : f32 to vector<8x32xf32>
    %441 = arith.divf %440, %439 : vector<8x32xf32>
    %442 = vector.extract_strided_slice %316 {offsets = [24, 0], sizes = [8, 32], strides = [1, 1]} : vector<64x32xf32> to vector<8x32xf32>
    %443 = arith.addf %442, %429 : vector<8x32xf32>
    %cst_197 = arith.constant 0.000000e+00 : f32
    %444 = vector.broadcast %cst_197 : f32 to vector<8x32xf32>
    %445 = arith.subf %444, %443 : vector<8x32xf32>
    %446 = math.exp %445 : vector<8x32xf32>
    %cst_198 = arith.constant 1.000000e+00 : f32
    %447 = vector.broadcast %cst_198 : f32 to vector<8x32xf32>
    %448 = arith.addf %447, %446 : vector<8x32xf32>
    %cst_199 = arith.constant 1.000000e+00 : f32
    %449 = vector.broadcast %cst_199 : f32 to vector<8x32xf32>
    %450 = arith.divf %449, %448 : vector<8x32xf32>
    %451 = vector.extract_strided_slice %323 {offsets = [24, 0], sizes = [8, 32], strides = [1, 1]} : vector<64x32xf32> to vector<8x32xf32>
    %452 = arith.mulf %441, %432 : vector<8x32xf32>
    %453 = arith.addf %451, %452 : vector<8x32xf32>
    %454 = math.tanh %453 : vector<8x32xf32>
    %cst_200 = arith.constant 1.000000e+00 : f32
    %455 = vector.broadcast %cst_200 : f32 to vector<8x32xf32>
    %456 = arith.subf %455, %450 : vector<8x32xf32>
    %457 = arith.mulf %456, %454 : vector<8x32xf32>
    %458 = arith.mulf %450, %427 : vector<8x32xf32>
    %459 = arith.addf %457, %458 : vector<8x32xf32>
    %cst_201 = arith.constant dense<0.000000e+00> : vector<8x32xf32>
    %460 = tpu.matmul %459, %325, %cst_201 {dimension_numbers = #tpu.dot_dimension_numbers<[1], [0], [0], [1], [0, 0, 1, 1], [], []>} : vector<8x32xf32>, vector<32x32xf32>, vector<8x32xf32> -> vector<8x32xf32>
    %cst_202 = arith.constant dense<0.000000e+00> : vector<8x32xf32>
    %461 = tpu.matmul %459, %327, %cst_202 {dimension_numbers = #tpu.dot_dimension_numbers<[1], [0], [0], [1], [0, 0, 1, 1], [], []>} : vector<8x32xf32>, vector<32x32xf32>, vector<8x32xf32> -> vector<8x32xf32>
    %cst_203 = arith.constant dense<0.000000e+00> : vector<8x32xf32>
    %462 = tpu.matmul %459, %329, %cst_203 {dimension_numbers = #tpu.dot_dimension_numbers<[1], [0], [0], [1], [0, 0, 1, 1], [], []>} : vector<8x32xf32>, vector<32x32xf32>, vector<8x32xf32> -> vector<8x32xf32>
    %463 = vector.broadcast %330 : vector<1x32xf32> to vector<8x32xf32>
    %464 = arith.addf %462, %463 : vector<8x32xf32>
    %465 = vector.extract_strided_slice %309 {offsets = [32, 0], sizes = [8, 32], strides = [1, 1]} : vector<64x32xf32> to vector<8x32xf32>
    %466 = arith.addf %465, %460 : vector<8x32xf32>
    %cst_204 = arith.constant 0.000000e+00 : f32
    %467 = vector.broadcast %cst_204 : f32 to vector<8x32xf32>
    %468 = arith.subf %467, %466 : vector<8x32xf32>
    %469 = math.exp %468 : vector<8x32xf32>
    %cst_205 = arith.constant 1.000000e+00 : f32
    %470 = vector.broadcast %cst_205 : f32 to vector<8x32xf32>
    %471 = arith.addf %470, %469 : vector<8x32xf32>
    %cst_206 = arith.constant 1.000000e+00 : f32
    %472 = vector.broadcast %cst_206 : f32 to vector<8x32xf32>
    %473 = arith.divf %472, %471 : vector<8x32xf32>
    %474 = vector.extract_strided_slice %316 {offsets = [32, 0], sizes = [8, 32], strides = [1, 1]} : vector<64x32xf32> to vector<8x32xf32>
    %475 = arith.addf %474, %461 : vector<8x32xf32>
    %cst_207 = arith.constant 0.000000e+00 : f32
    %476 = vector.broadcast %cst_207 : f32 to vector<8x32xf32>
    %477 = arith.subf %476, %475 : vector<8x32xf32>
    %478 = math.exp %477 : vector<8x32xf32>
    %cst_208 = arith.constant 1.000000e+00 : f32
    %479 = vector.broadcast %cst_208 : f32 to vector<8x32xf32>
    %480 = arith.addf %479, %478 : vector<8x32xf32>
    %cst_209 = arith.constant 1.000000e+00 : f32
    %481 = vector.broadcast %cst_209 : f32 to vector<8x32xf32>
    %482 = arith.divf %481, %480 : vector<8x32xf32>
    %483 = vector.extract_strided_slice %323 {offsets = [32, 0], sizes = [8, 32], strides = [1, 1]} : vector<64x32xf32> to vector<8x32xf32>
    %484 = arith.mulf %473, %464 : vector<8x32xf32>
    %485 = arith.addf %483, %484 : vector<8x32xf32>
    %486 = math.tanh %485 : vector<8x32xf32>
    %cst_210 = arith.constant 1.000000e+00 : f32
    %487 = vector.broadcast %cst_210 : f32 to vector<8x32xf32>
    %488 = arith.subf %487, %482 : vector<8x32xf32>
    %489 = arith.mulf %488, %486 : vector<8x32xf32>
    %490 = arith.mulf %482, %459 : vector<8x32xf32>
    %491 = arith.addf %489, %490 : vector<8x32xf32>
    %cst_211 = arith.constant dense<0.000000e+00> : vector<8x32xf32>
    %492 = tpu.matmul %491, %325, %cst_211 {dimension_numbers = #tpu.dot_dimension_numbers<[1], [0], [0], [1], [0, 0, 1, 1], [], []>} : vector<8x32xf32>, vector<32x32xf32>, vector<8x32xf32> -> vector<8x32xf32>
    %cst_212 = arith.constant dense<0.000000e+00> : vector<8x32xf32>
    %493 = tpu.matmul %491, %327, %cst_212 {dimension_numbers = #tpu.dot_dimension_numbers<[1], [0], [0], [1], [0, 0, 1, 1], [], []>} : vector<8x32xf32>, vector<32x32xf32>, vector<8x32xf32> -> vector<8x32xf32>
    %cst_213 = arith.constant dense<0.000000e+00> : vector<8x32xf32>
    %494 = tpu.matmul %491, %329, %cst_213 {dimension_numbers = #tpu.dot_dimension_numbers<[1], [0], [0], [1], [0, 0, 1, 1], [], []>} : vector<8x32xf32>, vector<32x32xf32>, vector<8x32xf32> -> vector<8x32xf32>
    %495 = vector.broadcast %330 : vector<1x32xf32> to vector<8x32xf32>
    %496 = arith.addf %494, %495 : vector<8x32xf32>
    %497 = vector.extract_strided_slice %309 {offsets = [40, 0], sizes = [8, 32], strides = [1, 1]} : vector<64x32xf32> to vector<8x32xf32>
    %498 = arith.addf %497, %492 : vector<8x32xf32>
    %cst_214 = arith.constant 0.000000e+00 : f32
    %499 = vector.broadcast %cst_214 : f32 to vector<8x32xf32>
    %500 = arith.subf %499, %498 : vector<8x32xf32>
    %501 = math.exp %500 : vector<8x32xf32>
    %cst_215 = arith.constant 1.000000e+00 : f32
    %502 = vector.broadcast %cst_215 : f32 to vector<8x32xf32>
    %503 = arith.addf %502, %501 : vector<8x32xf32>
    %cst_216 = arith.constant 1.000000e+00 : f32
    %504 = vector.broadcast %cst_216 : f32 to vector<8x32xf32>
    %505 = arith.divf %504, %503 : vector<8x32xf32>
    %506 = vector.extract_strided_slice %316 {offsets = [40, 0], sizes = [8, 32], strides = [1, 1]} : vector<64x32xf32> to vector<8x32xf32>
    %507 = arith.addf %506, %493 : vector<8x32xf32>
    %cst_217 = arith.constant 0.000000e+00 : f32
    %508 = vector.broadcast %cst_217 : f32 to vector<8x32xf32>
    %509 = arith.subf %508, %507 : vector<8x32xf32>
    %510 = math.exp %509 : vector<8x32xf32>
    %cst_218 = arith.constant 1.000000e+00 : f32
    %511 = vector.broadcast %cst_218 : f32 to vector<8x32xf32>
    %512 = arith.addf %511, %510 : vector<8x32xf32>
    %cst_219 = arith.constant 1.000000e+00 : f32
    %513 = vector.broadcast %cst_219 : f32 to vector<8x32xf32>
    %514 = arith.divf %513, %512 : vector<8x32xf32>
    %515 = vector.extract_strided_slice %323 {offsets = [40, 0], sizes = [8, 32], strides = [1, 1]} : vector<64x32xf32> to vector<8x32xf32>
    %516 = arith.mulf %505, %496 : vector<8x32xf32>
    %517 = arith.addf %515, %516 : vector<8x32xf32>
    %518 = math.tanh %517 : vector<8x32xf32>
    %cst_220 = arith.constant 1.000000e+00 : f32
    %519 = vector.broadcast %cst_220 : f32 to vector<8x32xf32>
    %520 = arith.subf %519, %514 : vector<8x32xf32>
    %521 = arith.mulf %520, %518 : vector<8x32xf32>
    %522 = arith.mulf %514, %491 : vector<8x32xf32>
    %523 = arith.addf %521, %522 : vector<8x32xf32>
    %cst_221 = arith.constant dense<0.000000e+00> : vector<8x32xf32>
    %524 = tpu.matmul %523, %325, %cst_221 {dimension_numbers = #tpu.dot_dimension_numbers<[1], [0], [0], [1], [0, 0, 1, 1], [], []>} : vector<8x32xf32>, vector<32x32xf32>, vector<8x32xf32> -> vector<8x32xf32>
    %cst_222 = arith.constant dense<0.000000e+00> : vector<8x32xf32>
    %525 = tpu.matmul %523, %327, %cst_222 {dimension_numbers = #tpu.dot_dimension_numbers<[1], [0], [0], [1], [0, 0, 1, 1], [], []>} : vector<8x32xf32>, vector<32x32xf32>, vector<8x32xf32> -> vector<8x32xf32>
    %cst_223 = arith.constant dense<0.000000e+00> : vector<8x32xf32>
    %526 = tpu.matmul %523, %329, %cst_223 {dimension_numbers = #tpu.dot_dimension_numbers<[1], [0], [0], [1], [0, 0, 1, 1], [], []>} : vector<8x32xf32>, vector<32x32xf32>, vector<8x32xf32> -> vector<8x32xf32>
    %527 = vector.broadcast %330 : vector<1x32xf32> to vector<8x32xf32>
    %528 = arith.addf %526, %527 : vector<8x32xf32>
    %529 = vector.extract_strided_slice %309 {offsets = [48, 0], sizes = [8, 32], strides = [1, 1]} : vector<64x32xf32> to vector<8x32xf32>
    %530 = arith.addf %529, %524 : vector<8x32xf32>
    %cst_224 = arith.constant 0.000000e+00 : f32
    %531 = vector.broadcast %cst_224 : f32 to vector<8x32xf32>
    %532 = arith.subf %531, %530 : vector<8x32xf32>
    %533 = math.exp %532 : vector<8x32xf32>
    %cst_225 = arith.constant 1.000000e+00 : f32
    %534 = vector.broadcast %cst_225 : f32 to vector<8x32xf32>
    %535 = arith.addf %534, %533 : vector<8x32xf32>
    %cst_226 = arith.constant 1.000000e+00 : f32
    %536 = vector.broadcast %cst_226 : f32 to vector<8x32xf32>
    %537 = arith.divf %536, %535 : vector<8x32xf32>
    %538 = vector.extract_strided_slice %316 {offsets = [48, 0], sizes = [8, 32], strides = [1, 1]} : vector<64x32xf32> to vector<8x32xf32>
    %539 = arith.addf %538, %525 : vector<8x32xf32>
    %cst_227 = arith.constant 0.000000e+00 : f32
    %540 = vector.broadcast %cst_227 : f32 to vector<8x32xf32>
    %541 = arith.subf %540, %539 : vector<8x32xf32>
    %542 = math.exp %541 : vector<8x32xf32>
    %cst_228 = arith.constant 1.000000e+00 : f32
    %543 = vector.broadcast %cst_228 : f32 to vector<8x32xf32>
    %544 = arith.addf %543, %542 : vector<8x32xf32>
    %cst_229 = arith.constant 1.000000e+00 : f32
    %545 = vector.broadcast %cst_229 : f32 to vector<8x32xf32>
    %546 = arith.divf %545, %544 : vector<8x32xf32>
    %547 = vector.extract_strided_slice %323 {offsets = [48, 0], sizes = [8, 32], strides = [1, 1]} : vector<64x32xf32> to vector<8x32xf32>
    %548 = arith.mulf %537, %528 : vector<8x32xf32>
    %549 = arith.addf %547, %548 : vector<8x32xf32>
    %550 = math.tanh %549 : vector<8x32xf32>
    %cst_230 = arith.constant 1.000000e+00 : f32
    %551 = vector.broadcast %cst_230 : f32 to vector<8x32xf32>
    %552 = arith.subf %551, %546 : vector<8x32xf32>
    %553 = arith.mulf %552, %550 : vector<8x32xf32>
    %554 = arith.mulf %546, %523 : vector<8x32xf32>
    %555 = arith.addf %553, %554 : vector<8x32xf32>
    %cst_231 = arith.constant dense<0.000000e+00> : vector<8x32xf32>
    %556 = tpu.matmul %555, %325, %cst_231 {dimension_numbers = #tpu.dot_dimension_numbers<[1], [0], [0], [1], [0, 0, 1, 1], [], []>} : vector<8x32xf32>, vector<32x32xf32>, vector<8x32xf32> -> vector<8x32xf32>
    %cst_232 = arith.constant dense<0.000000e+00> : vector<8x32xf32>
    %557 = tpu.matmul %555, %327, %cst_232 {dimension_numbers = #tpu.dot_dimension_numbers<[1], [0], [0], [1], [0, 0, 1, 1], [], []>} : vector<8x32xf32>, vector<32x32xf32>, vector<8x32xf32> -> vector<8x32xf32>
    %cst_233 = arith.constant dense<0.000000e+00> : vector<8x32xf32>
    %558 = tpu.matmul %555, %329, %cst_233 {dimension_numbers = #tpu.dot_dimension_numbers<[1], [0], [0], [1], [0, 0, 1, 1], [], []>} : vector<8x32xf32>, vector<32x32xf32>, vector<8x32xf32> -> vector<8x32xf32>
    %559 = vector.broadcast %330 : vector<1x32xf32> to vector<8x32xf32>
    %560 = arith.addf %558, %559 : vector<8x32xf32>
    %561 = vector.extract_strided_slice %309 {offsets = [56, 0], sizes = [8, 32], strides = [1, 1]} : vector<64x32xf32> to vector<8x32xf32>
    %562 = arith.addf %561, %556 : vector<8x32xf32>
    %cst_234 = arith.constant 0.000000e+00 : f32
    %563 = vector.broadcast %cst_234 : f32 to vector<8x32xf32>
    %564 = arith.subf %563, %562 : vector<8x32xf32>
    %565 = math.exp %564 : vector<8x32xf32>
    %cst_235 = arith.constant 1.000000e+00 : f32
    %566 = vector.broadcast %cst_235 : f32 to vector<8x32xf32>
    %567 = arith.addf %566, %565 : vector<8x32xf32>
    %cst_236 = arith.constant 1.000000e+00 : f32
    %568 = vector.broadcast %cst_236 : f32 to vector<8x32xf32>
    %569 = arith.divf %568, %567 : vector<8x32xf32>
    %570 = vector.extract_strided_slice %316 {offsets = [56, 0], sizes = [8, 32], strides = [1, 1]} : vector<64x32xf32> to vector<8x32xf32>
    %571 = arith.addf %570, %557 : vector<8x32xf32>
    %cst_237 = arith.constant 0.000000e+00 : f32
    %572 = vector.broadcast %cst_237 : f32 to vector<8x32xf32>
    %573 = arith.subf %572, %571 : vector<8x32xf32>
    %574 = math.exp %573 : vector<8x32xf32>
    %cst_238 = arith.constant 1.000000e+00 : f32
    %575 = vector.broadcast %cst_238 : f32 to vector<8x32xf32>
    %576 = arith.addf %575, %574 : vector<8x32xf32>
    %cst_239 = arith.constant 1.000000e+00 : f32
    %577 = vector.broadcast %cst_239 : f32 to vector<8x32xf32>
    %578 = arith.divf %577, %576 : vector<8x32xf32>
    %579 = vector.extract_strided_slice %323 {offsets = [56, 0], sizes = [8, 32], strides = [1, 1]} : vector<64x32xf32> to vector<8x32xf32>
    %580 = arith.mulf %569, %560 : vector<8x32xf32>
    %581 = arith.addf %579, %580 : vector<8x32xf32>
    %582 = math.tanh %581 : vector<8x32xf32>
    %cst_240 = arith.constant 1.000000e+00 : f32
    %583 = vector.broadcast %cst_240 : f32 to vector<8x32xf32>
    %584 = arith.subf %583, %578 : vector<8x32xf32>
    %585 = arith.mulf %584, %582 : vector<8x32xf32>
    %586 = arith.mulf %578, %555 : vector<8x32xf32>
    %587 = arith.addf %585, %586 : vector<8x32xf32>
    %c0_241 = arith.constant 0 : index
    %c0_242 = arith.constant 0 : index
    %588 = vector.load %arg10[%c0_241, %c0_242] : memref<32x16xf32, #tpu.memory_space<vmem>>, vector<32x16xf32>
    %cst_243 = arith.constant dense<0.000000e+00> : vector<8x16xf32>
    %589 = tpu.matmul %587, %588, %cst_243 {dimension_numbers = #tpu.dot_dimension_numbers<[1], [0], [0], [1], [0, 0, 1, 1], [], []>} : vector<8x32xf32>, vector<32x16xf32>, vector<8x16xf32> -> vector<8x16xf32>
    %c0_244 = arith.constant 0 : index
    %c0_245 = arith.constant 0 : index
    %590 = vector.load %arg11[%c0_244, %c0_245] : memref<1x16xf32, #tpu.memory_space<vmem>>, vector<1x16xf32>
    %591 = vector.broadcast %590 : vector<1x16xf32> to vector<8x16xf32>
    %592 = arith.addf %589, %591 : vector<8x16xf32>
    %cst_246 = arith.constant 0.000000e+00 : f32
    %593 = vector.broadcast %cst_246 : f32 to vector<8x16xf32>
    %594 = arith.maximumf %592, %593 : vector<8x16xf32>
    %c0_247 = arith.constant 0 : index
    %c0_248 = arith.constant 0 : index
    %595 = vector.load %arg12[%c0_247, %c0_248] : memref<16x128xf32, #tpu.memory_space<vmem>>, vector<16x128xf32>
    %cst_249 = arith.constant dense<0.000000e+00> : vector<8x128xf32>
    %596 = tpu.matmul %594, %595, %cst_249 {dimension_numbers = #tpu.dot_dimension_numbers<[1], [0], [0], [1], [0, 0, 1, 1], [], []>} : vector<8x16xf32>, vector<16x128xf32>, vector<8x128xf32> -> vector<8x128xf32>
    %c0_250 = arith.constant 0 : index
    %c0_251 = arith.constant 0 : index
    %597 = vector.load %arg13[%c0_250, %c0_251] : memref<1x128xf32, #tpu.memory_space<vmem>>, vector<1x128xf32>
    %598 = vector.broadcast %597 : vector<1x128xf32> to vector<8x128xf32>
    %599 = arith.addf %596, %598 : vector<8x128xf32>
    %c0_252 = arith.constant 0 : index
    %c0_253 = arith.constant 0 : index
    %600 = vector.load %arg14[%c0_252, %c0_253] : memref<8x128xf32, #tpu.memory_space<vmem>>, vector<8x128xf32>
    tpu.vector_store %arg14[%c0_252, %c0_253], %599 {strides = array<i32>} : memref<8x128xf32, #tpu.memory_space<vmem>>, vector<8x128xf32>,
    return
  }
  func.func @transform_0(%arg0: i32) -> (i32, i32, i32) {
    %c0_i32 = arith.constant 0 : i32
    %c0_i32_0 = arith.constant 0 : i32
    %c0_i32_1 = arith.constant 0 : i32
    return %c0_i32, %arg0, %c0_i32_0 : i32, i32, i32
  }
  func.func @transform_1(%arg0: i32) -> (i32, i32, i32) {
    %c0_i32 = arith.constant 0 : i32
    %c0_i32_0 = arith.constant 0 : i32
    %c0_i32_1 = arith.constant 0 : i32
    %c0_i32_2 = arith.constant 0 : i32
    return %c0_i32, %c0_i32_0, %c0_i32_1 : i32, i32, i32
  }
  func.func @transform_2(%arg0: i32) -> (i32, i32, i32) {
    %c0_i32 = arith.constant 0 : i32
    %c0_i32_0 = arith.constant 0 : i32
    %c0_i32_1 = arith.constant 0 : i32
    %c0_i32_2 = arith.constant 0 : i32
    return %c0_i32, %c0_i32_0, %c0_i32_1 : i32, i32, i32
  }
  func.func @transform_3(%arg0: i32) -> (i32, i32, i32) {
    %c0_i32 = arith.constant 0 : i32
    %c0_i32_0 = arith.constant 0 : i32
    %c0_i32_1 = arith.constant 0 : i32
    %c0_i32_2 = arith.constant 0 : i32
    return %c0_i32, %c0_i32_0, %c0_i32_1 : i32, i32, i32
  }
  func.func @transform_4(%arg0: i32) -> (i32, i32) {
    %c0_i32 = arith.constant 0 : i32
    %c0_i32_0 = arith.constant 0 : i32
    %c0_i32_1 = arith.constant 0 : i32
    return %c0_i32, %c0_i32_0 : i32, i32
  }
  func.func @transform_5(%arg0: i32) -> (i32, i32, i32) {
    %c0_i32 = arith.constant 0 : i32
    %c0_i32_0 = arith.constant 0 : i32
    %c0_i32_1 = arith.constant 0 : i32
    %c0_i32_2 = arith.constant 0 : i32
    return %c0_i32, %c0_i32_0, %c0_i32_1 : i32, i32, i32
  }
  func.func @transform_6(%arg0: i32) -> (i32, i32, i32) {
    %c0_i32 = arith.constant 0 : i32
    %c0_i32_0 = arith.constant 0 : i32
    %c0_i32_1 = arith.constant 0 : i32
    %c0_i32_2 = arith.constant 0 : i32
    return %c0_i32, %c0_i32_0, %c0_i32_1 : i32, i32, i32
  }
  func.func @transform_7(%arg0: i32) -> (i32, i32, i32) {
    %c0_i32 = arith.constant 0 : i32
    %c0_i32_0 = arith.constant 0 : i32
    %c0_i32_1 = arith.constant 0 : i32
    %c0_i32_2 = arith.constant 0 : i32
    return %c0_i32, %c0_i32_0, %c0_i32_1 : i32, i32, i32
  }
  func.func @transform_8(%arg0: i32) -> (i32, i32) {
    %c0_i32 = arith.constant 0 : i32
    %c0_i32_0 = arith.constant 0 : i32
    %c0_i32_1 = arith.constant 0 : i32
    return %c0_i32, %c0_i32_0 : i32, i32
  }
  func.func @transform_9(%arg0: i32) -> (i32, i32) {
    %c0_i32 = arith.constant 0 : i32
    %c0_i32_0 = arith.constant 0 : i32
    %c0_i32_1 = arith.constant 0 : i32
    return %c0_i32, %c0_i32_0 : i32, i32
  }
  func.func @transform_10(%arg0: i32) -> (i32, i32) {
    %c0_i32 = arith.constant 0 : i32
    %c0_i32_0 = arith.constant 0 : i32
    %c0_i32_1 = arith.constant 0 : i32
    return %c0_i32, %c0_i32_0 : i32, i32
  }
  func.func @transform_11(%arg0: i32) -> (i32, i32) {
    %c0_i32 = arith.constant 0 : i32
    %c0_i32_0 = arith.constant 0 : i32
    %c0_i32_1 = arith.constant 0 : i32
    return %c0_i32, %c0_i32_0 : i32, i32
  }
  func.func @transform_12(%arg0: i32) -> (i32, i32) {
    %c0_i32 = arith.constant 0 : i32
    %c0_i32_0 = arith.constant 0 : i32
    %c0_i32_1 = arith.constant 0 : i32
    return %c0_i32, %c0_i32_0 : i32, i32
  }
  func.func @transform_13(%arg0: i32) -> (i32, i32) {
    %c0_i32 = arith.constant 0 : i32
    %c0_i32_0 = arith.constant 0 : i32
    return %arg0, %c0_i32 : i32, i32
  }
}

</mosaic_0001>

<llo_original>
// kernel: tpu_custom_call.1
$region0: #{tpu_custom_call.1}
  #allocation0 [shape = 'u32[]', space=smem, size = 0x4, offset = 0x4, fixed_abs, tag = 'smem constant byte address 0x4 - core index']
  #allocation1 [shape = 'u32[144,128]{1,0:T(1,128)}', space=vmem, size = 0x12000, scoped, tag = 'internal scratch']
  %s0 = inlined_call_operand.hbm [shape: f32[8,8,8], index: 0, kind: input, shape index: {}]
  %s1 = inlined_call_operand.vmem [shape: f32[3,8,64], index: 1, kind: input, shape index: {}]
  %s2 = inlined_call_operand.vmem [shape: f32[3,64,64], index: 2, kind: input, shape index: {}]
  %s3 = inlined_call_operand.vmem [shape: f32[3,1,64], index: 3, kind: input, shape index: {}]
  %s4 = inlined_call_operand.vmem [shape: f32[1,64], index: 4, kind: input, shape index: {}]
  %s5 = inlined_call_operand.vmem [shape: f32[3,64,32], index: 5, kind: input, shape index: {}]
  %s6 = inlined_call_operand.vmem [shape: f32[3,32,32], index: 6, kind: input, shape index: {}]
  %s7 = inlined_call_operand.vmem [shape: f32[3,1,32], index: 7, kind: input, shape index: {}]
  %s8 = inlined_call_operand.vmem [shape: f32[1,32], index: 8, kind: input, shape index: {}]
  %s9 = inlined_call_operand.vmem [shape: f32[32,16], index: 9, kind: input, shape index: {}]
  %s10 = inlined_call_operand.vmem [shape: f32[1,16], index: 10, kind: input, shape index: {}]
  %s11 = inlined_call_operand.vmem [shape: f32[16,128], index: 11, kind: input, shape index: {}]
  %s12 = inlined_call_operand.vmem [shape: f32[1,128], index: 12, kind: input, shape index: {}]
  %s13 = inlined_call_operand.hbm [shape: f32[8,128], index: 13, kind: output, shape index: {}]
  %s14 = sld [smem:[#allocation0]]
  $region66: #{tpu_custom_call.1} parent=0
    _
  %s16 = ssub.s32 1, %s14
  %s17 = scalar_select 0, %s16, %s14
  $region1: #{tpu_custom_call.1} parent=0
    #allocation2 [shape = 'u8[32768]{0}', space=vmem, size = 0x8000, scoped, tag = 'input window, operand 0, single buffered']
    #allocation3 [shape = 's32[1]{0}', space=sflag, size = 0x4, scoped, tag = 'scoped memory for tpu_custom_call.1']
    #allocation4 [shape = 's32[1]{0}', space=sflag, size = 0x4, scoped, tag = 'scoped memory for tpu_custom_call.1']
    #allocation5 [shape = 'u8[4096]{0}', space=vmem, size = 0x1000, scoped, tag = 'output window, operand 0, single buffered']
    %18 = vsyncpa [#allocation3], 0
    %19 = vsyncpa [#allocation4], 0
    // Predicated region
    $region2: #{tpu_custom_call.1} parent=1 // pred_check
      _
    $region3: #{tpu_custom_call.1} parent=1 // pred_check_branch
      %21 = sbr.rel (0) target = $region5
    $region4: #{tpu_custom_call.1} parent=1 // pred_region
      %s23 = ssub.s32 1024, 1024
      %24 = vsyncadd [#allocation3], %s23
      %s25 = sshll.u32 [#allocation2], 4
      %s26 = int_to_ptr.vmem [resolvable:$true] %s25
      %31 = dma.hbm_to_vmem [thread:$0]  %s0, 1024, %s26, [#allocation3], 128, 128, 8
    $region5: #{tpu_custom_call.1} parent=1 // pred_fallthru
      _
    // Predicated region
    $region6: #{tpu_custom_call.1} parent=1 // pred_check
      _
    $region7: #{tpu_custom_call.1} parent=1 // pred_check_branch
      %33 = sbr.rel (0) target = $region9
    $region8: #{tpu_custom_call.1} parent=1 // pred_region
      _
    $region9: #{tpu_custom_call.1} parent=1 // pred_fallthru
      _
    // Predicated region
    $region10: #{tpu_custom_call.1} parent=1 // pred_check
      _
    $region11: #{tpu_custom_call.1} parent=1 // pred_check_branch
      %35 = sbr.rel (0) target = $region13
    $region12: #{tpu_custom_call.1} parent=1 // pred_region
      _
    $region13: #{tpu_custom_call.1} parent=1 // pred_fallthru
      _
    // Predicated region
    $region14: #{tpu_custom_call.1} parent=1 // pred_check
      _
    $region15: #{tpu_custom_call.1} parent=1 // pred_check_branch
      %37 = sbr.rel (0) target = $region17
    $region16: #{tpu_custom_call.1} parent=1 // pred_region
      _
    $region17: #{tpu_custom_call.1} parent=1 // pred_fallthru
      _
    // Predicated region
    $region18: #{tpu_custom_call.1} parent=1 // pred_check
      _
    $region19: #{tpu_custom_call.1} parent=1 // pred_check_branch
      %39 = sbr.rel (0) target = $region21
    $region20: #{tpu_custom_call.1} parent=1 // pred_region
      _
    $region21: #{tpu_custom_call.1} parent=1 // pred_fallthru
      _
    // Predicated region
    $region22: #{tpu_custom_call.1} parent=1 // pred_check
      _
    $region23: #{tpu_custom_call.1} parent=1 // pred_check_branch
      %41 = sbr.rel (0) target = $region25
    $region24: #{tpu_custom_call.1} parent=1 // pred_region
      _
    $region25: #{tpu_custom_call.1} parent=1 // pred_fallthru
      _
    // Predicated region
    $region26: #{tpu_custom_call.1} parent=1 // pred_check
      _
    $region27: #{tpu_custom_call.1} parent=1 // pred_check_branch
      %43 = sbr.rel (0) target = $region29
    $region28: #{tpu_custom_call.1} parent=1 // pred_region
      _
    $region29: #{tpu_custom_call.1} parent=1 // pred_fallthru
      _
    // Predicated region
    $region30: #{tpu_custom_call.1} parent=1 // pred_check
      _
    $region31: #{tpu_custom_call.1} parent=1 // pred_check_branch
      %45 = sbr.rel (0) target = $region33
    $region32: #{tpu_custom_call.1} parent=1 // pred_region
      _
    $region33: #{tpu_custom_call.1} parent=1 // pred_fallthru
      _
    // Predicated region
    $region34: #{tpu_custom_call.1} parent=1 // pred_check
      _
    $region35: #{tpu_custom_call.1} parent=1 // pred_check_branch
      %47 = sbr.rel (0) target = $region37
    $region36: #{tpu_custom_call.1} parent=1 // pred_region
      _
    $region37: #{tpu_custom_call.1} parent=1 // pred_fallthru
      _
    // Predicated region
    $region38: #{tpu_custom_call.1} parent=1 // pred_check
      _
    $region39: #{tpu_custom_call.1} parent=1 // pred_check_branch
      %49 = sbr.rel (0) target = $region41
    $region40: #{tpu_custom_call.1} parent=1 // pred_region
      _
    $region41: #{tpu_custom_call.1} parent=1 // pred_fallthru
      _
    // Predicated region
    $region42: #{tpu_custom_call.1} parent=1 // pred_check
      _
    $region43: #{tpu_custom_call.1} parent=1 // pred_check_branch
      %51 = sbr.rel (0) target = $region45
    $region44: #{tpu_custom_call.1} parent=1 // pred_region
      _
    $region45: #{tpu_custom_call.1} parent=1 // pred_fallthru
      _
    // Predicated region
    $region46: #{tpu_custom_call.1} parent=1 // pred_check
      _
    $region47: #{tpu_custom_call.1} parent=1 // pred_check_branch
      %53 = sbr.rel (0) target = $region49
    $region48: #{tpu_custom_call.1} parent=1 // pred_region
      _
    $region49: #{tpu_custom_call.1} parent=1 // pred_fallthru
      _
    // Predicated region
    $region50: #{tpu_custom_call.1} parent=1 // pred_check
      _
    $region51: #{tpu_custom_call.1} parent=1 // pred_check_branch
      %55 = sbr.rel (0) target = $region53
    $region52: #{tpu_custom_call.1} parent=1 // pred_region
      _
    $region53: #{tpu_custom_call.1} parent=1 // pred_fallthru
      _
    // Predicated region
    $region54: #{tpu_custom_call.1} parent=1 // pred_check
      _
    $region55: #{tpu_custom_call.1} parent=1 // pred_check_branch
      %57 = sbr.rel (0) target = $region57
    $region56: #{tpu_custom_call.1} parent=1 // pred_region
      %58 = dma.done [#allocation3], 1024
    $region57: #{tpu_custom_call.1} parent=1 // pred_fallthru
      _
    %v59 = vld [vmem:[#allocation2] sm:$0xff]
    %s60 = scalar_lea.vmem [#allocation2], 8
    %v61 = vld [vmem:[%s60] sm:$0xff]
    %s62 = scalar_lea.vmem [#allocation2], 16
    %v63 = vld [vmem:[%s62] sm:$0xff]
    %s64 = scalar_lea.vmem [#allocation2], 24
    %v65 = vld [vmem:[%s64] sm:$0xff]
    %s66 = scalar_lea.vmem [#allocation2], 32
    %v67 = vld [vmem:[%s66] sm:$0xff]
    %s68 = scalar_lea.vmem [#allocation2], 40
    %v69 = vld [vmem:[%s68] sm:$0xff]
    %s70 = scalar_lea.vmem [#allocation2], 48
    %v71 = vld [vmem:[%s70] sm:$0xff]
    %s72 = scalar_lea.vmem [#allocation2], 56
    %v73 = vld [vmem:[%s72] sm:$0xff]
    %v74 = vld [vmem:[%s1] sm:$0xff]
    %v75 = vld [vmem:[%s3] sm:$0x1]
    %v77 = vlaneseq
    %v78 = vshrl.u32 %v77, 7
    %v79 = vsub.s32 0, %v78
    %v80 = vrot.slane %v75, %v79
    %vm82 = vcmask 64512
    %v84 = vsel %vm82, %v59, 0
    %v87 = vsel %vm82, %v61, 0
    %v90 = vsel %vm82, %v63, 0
    %v93 = vsel %vm82, %v65, 0
    %v96 = vsel %vm82, %v67, 0
    %v99 = vsel %vm82, %v69, 0
    %v102 = vsel %vm82, %v71, 0
    %v105 = vsel %vm82, %v73, 0
    %107 = vmatprep.subr.mxu0 0.0
    %108 = vmatpush1.msra.mxu0 0.0
    %109 = vmatprep.subr.mxu0 0.0
    %110 = vmatpush1.msra.mxu0 0.0
    %111 = vmatprep.subr.mxu0 0.0
    %112 = vmatpush1.msra.mxu0 0.0
    %113 = vmatprep.subr.mxu0 0.0
    %114 = vmatpush1.msra.mxu0 0.0
    %115 = vmatprep.subr.mxu0 0.0
    %116 = vmatpush1.msra.mxu0 0.0
    %117 = vmatprep.subr.mxu0 0.0
    %118 = vmatpush1.msra.mxu0 0.0
    %119 = vmatprep.subr.mxu0 0.0
    %120 = vmatpush1.msra.mxu0 0.0
    %121 = vmatprep.subr.mxu0 0.0
    %122 = vmatpush1.msra.mxu0 0.0
    %123 = vmatprep.subr.mxu0 0.0
    %124 = vmatpush1.msra.mxu0 0.0
    %125 = vmatprep.subr.mxu0 0.0
    %126 = vmatpush1.msra.mxu0 0.0
    %127 = vmatprep.subr.mxu0 0.0
    %128 = vmatpush1.msra.mxu0 0.0
    %129 = vmatprep.subr.mxu0 0.0
    %130 = vmatpush1.msra.mxu0 0.0
    %131 = vmatprep.subr.mxu0 0.0
    %132 = vmatpush1.msra.mxu0 0.0
    %133 = vmatprep.subr.mxu0 0.0
    %134 = vmatpush1.msra.mxu0 0.0
    %135 = vmatprep.subr.mxu0 0.0
    %136 = vmatpush1.msra.mxu0 0.0
    %137 = vmatprep.subr.mxu0 0.0
    %138 = vmatpush1.msra.mxu0 %v74
    %139 = vmatprep.subr.mxu0 0.0
    %140 = vmatpush2.msra.mxu0 0.0
    %141 = vmatprep.subr.mxu0 0.0
    %142 = vmatpush2.msra.mxu0 0.0
    %143 = vmatprep.subr.mxu0 0.0
    %144 = vmatpush2.msra.mxu0 0.0
    %145 = vmatprep.subr.mxu0 0.0
    %146 = vmatpush2.msra.mxu0 0.0
    %147 = vmatprep.subr.mxu0 0.0
    %148 = vmatpush2.msra.mxu0 0.0
    %149 = vmatprep.subr.mxu0 0.0
    %150 = vmatpush2.msra.mxu0 0.0
    %151 = vmatprep.subr.mxu0 0.0
    %152 = vmatpush2.msra.mxu0 0.0
    %153 = vmatprep.subr.mxu0 0.0
    %154 = vmatpush2.msra.mxu0 0.0
    %155 = vmatprep.subr.mxu0 0.0
    %156 = vmatpush2.msra.mxu0 0.0
    %157 = vmatprep.subr.mxu0 0.0
    %158 = vmatpush2.msra.mxu0 0.0
    %159 = vmatprep.subr.mxu0 0.0
    %160 = vmatpush2.msra.mxu0 0.0
    %161 = vmatprep.subr.mxu0 0.0
    %162 = vmatpush2.msra.mxu0 0.0
    %163 = vmatprep.subr.mxu0 0.0
    %164 = vmatpush2.msra.mxu0 0.0
    %165 = vmatprep.subr.mxu0 0.0
    %166 = vmatpush2.msra.mxu0 0.0
    %167 = vmatprep.subr.mxu0 0.0
    %168 = vmatpush2.msra.mxu0 0.0
    %169 = vmatprep.subr.mxu0 0.0
    %170 = vmatpush2.msra.mxu0 0.0
    %171 = vmatprep.mubr.f32.mxu0 0.0
    %172 = vmatmul.mubr.f32.gmra.mxu0 %v84
    %v173 = vpop.f32.mrf.mxu0
    %v174 = vadd.f32 %v80, %v173
    %v175 = vpop.f32.mrf.mxu0
    %176 = vmatprep.mubr.f32.mxu0 0.0
    %177 = vmatmul.mubr.f32.gmra.mxu0 %v87
    %v178 = vpop.f32.mrf.mxu0
    %v179 = vadd.f32 %v80, %v178
    %v180 = vpop.f32.mrf.mxu0
    %181 = vmatprep.mubr.f32.mxu0 0.0
    %182 = vmatmul.mubr.f32.gmra.mxu0 %v90
    %v183 = vpop.f32.mrf.mxu0
    %v184 = vadd.f32 %v80, %v183
    %v185 = vpop.f32.mrf.mxu0
    %186 = vmatprep.mubr.f32.mxu0 0.0
    %187 = vmatmul.mubr.f32.gmra.mxu0 %v93
    %v188 = vpop.f32.mrf.mxu0
    %v189 = vadd.f32 %v80, %v188
    %v190 = vpop.f32.mrf.mxu0
    %191 = vmatprep.mubr.f32.mxu0 0.0
    %192 = vmatmul.mubr.f32.gmra.mxu0 %v96
    %v193 = vpop.f32.mrf.mxu0
    %v194 = vadd.f32 %v80, %v193
    %v195 = vpop.f32.mrf.mxu0
    %196 = vmatprep.mubr.f32.mxu0 0.0
    %197 = vmatmul.mubr.f32.gmra.mxu0 %v99
    %v198 = vpop.f32.mrf.mxu0
    %v199 = vadd.f32 %v80, %v198
    %v200 = vpop.f32.mrf.mxu0
    %201 = vmatprep.mubr.f32.mxu0 0.0
    %202 = vmatmul.mubr.f32.gmra.mxu0 %v102
    %v203 = vpop.f32.mrf.mxu0
    %v204 = vadd.f32 %v80, %v203
    %v205 = vpop.f32.mrf.mxu0
    %206 = vmatprep.mubr.f32.mxu0 0.0
    %207 = vmatmul.mubr.f32.gmra.mxu0 %v105
    %v208 = vpop.f32.mrf.mxu0
    %v209 = vadd.f32 %v80, %v208
    %v210 = vpop.f32.mrf.mxu0
    %211 = vdwg.mxu0
    %s212 = scalar_lea.vmem %s1, 8
    %v213 = vld [vmem:[%s212] sm:$0xff]
    %s214 = scalar_lea.vmem %s3, 1
    %v215 = vld [vmem:[%s214] sm:$0x1]
    %v217 = vlaneseq
    %v218 = vshrl.u32 %v217, 7
    %v219 = vsub.s32 0, %v218
    %v220 = vrot.slane %v215, %v219
    %222 = vmatprep.subr.mxu0 0.0
    %223 = vmatpush1.msra.mxu0 0.0
    %224 = vmatprep.subr.mxu0 0.0
    %225 = vmatpush1.msra.mxu0 0.0
    %226 = vmatprep.subr.mxu0 0.0
    %227 = vmatpush1.msra.mxu0 0.0
    %228 = vmatprep.subr.mxu0 0.0
    %229 = vmatpush1.msra.mxu0 0.0
    %230 = vmatprep.subr.mxu0 0.0
    %231 = vmatpush1.msra.mxu0 0.0
    %232 = vmatprep.subr.mxu0 0.0
    %233 = vmatpush1.msra.mxu0 0.0
    %234 = vmatprep.subr.mxu0 0.0
    %235 = vmatpush1.msra.mxu0 0.0
    %236 = vmatprep.subr.mxu0 0.0
    %237 = vmatpush1.msra.mxu0 0.0
    %238 = vmatprep.subr.mxu0 0.0
    %239 = vmatpush1.msra.mxu0 0.0
    %240 = vmatprep.subr.mxu0 0.0
    %241 = vmatpush1.msra.mxu0 0.0
    %242 = vmatprep.subr.mxu0 0.0
    %243 = vmatpush1.msra.mxu0 0.0
    %244 = vmatprep.subr.mxu0 0.0
    %245 = vmatpush1.msra.mxu0 0.0
    %246 = vmatprep.subr.mxu0 0.0
    %247 = vmatpush1.msra.mxu0 0.0
    %248 = vmatprep.subr.mxu0 0.0
    %249 = vmatpush1.msra.mxu0 0.0
    %250 = vmatprep.subr.mxu0 0.0
    %251 = vmatpush1.msra.mxu0 0.0
    %252 = vmatprep.subr.mxu0 0.0
    %253 = vmatpush1.msra.mxu0 %v213
    %254 = vmatprep.subr.mxu0 0.0
    %255 = vmatpush2.msra.mxu0 0.0
    %256 = vmatprep.subr.mxu0 0.0
    %257 = vmatpush2.msra.mxu0 0.0
    %258 = vmatprep.subr.mxu0 0.0
    %259 = vmatpush2.msra.mxu0 0.0
    %260 = vmatprep.subr.mxu0 0.0
    %261 = vmatpush2.msra.mxu0 0.0
    %262 = vmatprep.subr.mxu0 0.0
    %263 = vmatpush2.msra.mxu0 0.0
    %264 = vmatprep.subr.mxu0 0.0
    %265 = vmatpush2.msra.mxu0 0.0
    %266 = vmatprep.subr.mxu0 0.0
    %267 = vmatpush2.msra.mxu0 0.0
    %268 = vmatprep.subr.mxu0 0.0
    %269 = vmatpush2.msra.mxu0 0.0
    %270 = vmatprep.subr.mxu0 0.0
    %271 = vmatpush2.msra.mxu0 0.0
    %272 = vmatprep.subr.mxu0 0.0
    %273 = vmatpush2.msra.mxu0 0.0
    %274 = vmatprep.subr.mxu0 0.0
    %275 = vmatpush2.msra.mxu0 0.0
    %276 = vmatprep.subr.mxu0 0.0
    %277 = vmatpush2.msra.mxu0 0.0
    %278 = vmatprep.subr.mxu0 0.0
    %279 = vmatpush2.msra.mxu0 0.0
    %280 = vmatprep.subr.mxu0 0.0
    %281 = vmatpush2.msra.mxu0 0.0
    %282 = vmatprep.subr.mxu0 0.0
    %283 = vmatpush2.msra.mxu0 0.0
    %284 = vmatprep.subr.mxu0 0.0
    %285 = vmatpush2.msra.mxu0 0.0
    %286 = vmatprep.mubr.f32.mxu0 0.0
    %287 = vmatmul.mubr.f32.gmra.mxu0 %v84
    %v288 = vpop.f32.mrf.mxu0
    %v289 = vadd.f32 %v220, %v288
    %v290 = vpop.f32.mrf.mxu0
    %291 = vmatprep.mubr.f32.mxu0 0.0
    %292 = vmatmul.mubr.f32.gmra.mxu0 %v87
    %v293 = vpop.f32.mrf.mxu0
    %v294 = vadd.f32 %v220, %v293
    %v295 = vpop.f32.mrf.mxu0
    %296 = vmatprep.mubr.f32.mxu0 0.0
    %297 = vmatmul.mubr.f32.gmra.mxu0 %v90
    %v298 = vpop.f32.mrf.mxu0
    %v299 = vadd.f32 %v220, %v298
    %v300 = vpop.f32.mrf.mxu0
    %301 = vmatprep.mubr.f32.mxu0 0.0
    %302 = vmatmul.mubr.f32.gmra.mxu0 %v93
    %v303 = vpop.f32.mrf.mxu0
    %v304 = vadd.f32 %v220, %v303
    %v305 = vpop.f32.mrf.mxu0
    %306 = vmatprep.mubr.f32.mxu0 0.0
    %307 = vmatmul.mubr.f32.gmra.mxu0 %v96
    %v308 = vpop.f32.mrf.mxu0
    %v309 = vadd.f32 %v220, %v308
    %v310 = vpop.f32.mrf.mxu0
    %311 = vmatprep.mubr.f32.mxu0 0.0
    %312 = vmatmul.mubr.f32.gmra.mxu0 %v99
    %v313 = vpop.f32.mrf.mxu0
    %v314 = vadd.f32 %v220, %v313
    %v315 = vpop.f32.mrf.mxu0
    %316 = vmatprep.mubr.f32.mxu0 0.0
    %317 = vmatmul.mubr.f32.gmra.mxu0 %v102
    %v318 = vpop.f32.mrf.mxu0
    %v319 = vadd.f32 %v220, %v318
    %v320 = vpop.f32.mrf.mxu0
    %321 = vmatprep.mubr.f32.mxu0 0.0
    %322 = vmatmul.mubr.f32.gmra.mxu0 %v105
    %v323 = vpop.f32.mrf.mxu0
    %v324 = vadd.f32 %v220, %v323
    %v325 = vpop.f32.mrf.mxu0
    %326 = vdwg.mxu0
    %s327 = scalar_lea.vmem %s1, 16
    %v328 = vld [vmem:[%s327] sm:$0xff]
    %s329 = scalar_lea.vmem %s3, 2
    %v330 = vld [vmem:[%s329] sm:$0x1]
    %v332 = vlaneseq
    %v333 = vshrl.u32 %v332, 7
    %v334 = vsub.s32 0, %v333
    %v335 = vrot.slane %v330, %v334
    %337 = vmatprep.subr.mxu0 0.0
    %338 = vmatpush1.msra.mxu0 0.0
    %339 = vmatprep.subr.mxu0 0.0
    %340 = vmatpush1.msra.mxu0 0.0
    %341 = vmatprep.subr.mxu0 0.0
    %342 = vmatpush1.msra.mxu0 0.0
    %343 = vmatprep.subr.mxu0 0.0
    %344 = vmatpush1.msra.mxu0 0.0
    %345 = vmatprep.subr.mxu0 0.0
    %346 = vmatpush1.msra.mxu0 0.0
    %347 = vmatprep.subr.mxu0 0.0
    %348 = vmatpush1.msra.mxu0 0.0
    %349 = vmatprep.subr.mxu0 0.0
    %350 = vmatpush1.msra.mxu0 0.0
    %351 = vmatprep.subr.mxu0 0.0
    %352 = vmatpush1.msra.mxu0 0.0
    %353 = vmatprep.subr.mxu0 0.0
    %354 = vmatpush1.msra.mxu0 0.0
    %355 = vmatprep.subr.mxu0 0.0
    %356 = vmatpush1.msra.mxu0 0.0
    %357 = vmatprep.subr.mxu0 0.0
    %358 = vmatpush1.msra.mxu0 0.0
    %359 = vmatprep.subr.mxu0 0.0
    %360 = vmatpush1.msra.mxu0 0.0
    %361 = vmatprep.subr.mxu0 0.0
    %362 = vmatpush1.msra.mxu0 0.0
    %363 = vmatprep.subr.mxu0 0.0
    %364 = vmatpush1.msra.mxu0 0.0
    %365 = vmatprep.subr.mxu0 0.0
    %366 = vmatpush1.msra.mxu0 0.0
    %367 = vmatprep.subr.mxu0 0.0
    %368 = vmatpush1.msra.mxu0 %v328
    %369 = vmatprep.subr.mxu0 0.0
    %370 = vmatpush2.msra.mxu0 0.0
    %371 = vmatprep.subr.mxu0 0.0
    %372 = vmatpush2.msra.mxu0 0.0
    %373 = vmatprep.subr.mxu0 0.0
    %374 = vmatpush2.msra.mxu0 0.0
    %375 = vmatprep.subr.mxu0 0.0
    %376 = vmatpush2.msra.mxu0 0.0
    %377 = vmatprep.subr.mxu0 0.0
    %378 = vmatpush2.msra.mxu0 0.0
    %379 = vmatprep.subr.mxu0 0.0
    %380 = vmatpush2.msra.mxu0 0.0
    %381 = vmatprep.subr.mxu0 0.0
    %382 = vmatpush2.msra.mxu0 0.0
    %383 = vmatprep.subr.mxu0 0.0
    %384 = vmatpush2.msra.mxu0 0.0
    %385 = vmatprep.subr.mxu0 0.0
    %386 = vmatpush2.msra.mxu0 0.0
    %387 = vmatprep.subr.mxu0 0.0
    %388 = vmatpush2.msra.mxu0 0.0
    %389 = vmatprep.subr.mxu0 0.0
    %390 = vmatpush2.msra.mxu0 0.0
    %391 = vmatprep.subr.mxu0 0.0
    %392 = vmatpush2.msra.mxu0 0.0
    %393 = vmatprep.subr.mxu0 0.0
    %394 = vmatpush2.msra.mxu0 0.0
    %395 = vmatprep.subr.mxu0 0.0
    %396 = vmatpush2.msra.mxu0 0.0
    %397 = vmatprep.subr.mxu0 0.0
    %398 = vmatpush2.msra.mxu0 0.0
    %399 = vmatprep.subr.mxu0 0.0
    %400 = vmatpush2.msra.mxu0 0.0
    %401 = vmatprep.mubr.f32.mxu0 0.0
    %402 = vmatmul.mubr.f32.gmra.mxu0 %v84
    %v403 = vpop.f32.mrf.mxu0
    %v404 = vadd.f32 %v335, %v403
    %v405 = vpop.f32.mrf.mxu0
    %406 = vmatprep.mubr.f32.mxu0 0.0
    %407 = vmatmul.mubr.f32.gmra.mxu0 %v87
    %v408 = vpop.f32.mrf.mxu0
    %v409 = vadd.f32 %v335, %v408
    %v410 = vpop.f32.mrf.mxu0
    %411 = vmatprep.mubr.f32.mxu0 0.0
    %412 = vmatmul.mubr.f32.gmra.mxu0 %v90
    %v413 = vpop.f32.mrf.mxu0
    %v414 = vadd.f32 %v335, %v413
    %v415 = vpop.f32.mrf.mxu0
    %416 = vmatprep.mubr.f32.mxu0 0.0
    %417 = vmatmul.mubr.f32.gmra.mxu0 %v93
    %v418 = vpop.f32.mrf.mxu0
    %v419 = vadd.f32 %v335, %v418
    %v420 = vpop.f32.mrf.mxu0
    %421 = vmatprep.mubr.f32.mxu0 0.0
    %422 = vmatmul.mubr.f32.gmra.mxu0 %v96
    %v423 = vpop.f32.mrf.mxu0
    %v424 = vadd.f32 %v335, %v423
    %v425 = vpop.f32.mrf.mxu0
    %426 = vmatprep.mubr.f32.mxu0 0.0
    %427 = vmatmul.mubr.f32.gmra.mxu0 %v99
    %v428 = vpop.f32.mrf.mxu0
    %v429 = vadd.f32 %v335, %v428
    %v430 = vpop.f32.mrf.mxu0
    %431 = vmatprep.mubr.f32.mxu0 0.0
    %432 = vmatmul.mubr.f32.gmra.mxu0 %v102
    %v433 = vpop.f32.mrf.mxu0
    %v434 = vadd.f32 %v335, %v433
    %v435 = vpop.f32.mrf.mxu0
    %436 = vmatprep.mubr.f32.mxu0 0.0
    %437 = vmatmul.mubr.f32.gmra.mxu0 %v105
    %v438 = vpop.f32.mrf.mxu0
    %v439 = vadd.f32 %v335, %v438
    %v440 = vpop.f32.mrf.mxu0
    %441 = vdwg.mxu0
    %v442 = vld [vmem:[%s2] sm:$0xff]
    %v443 = vld [vmem:[%s2 + $0x8] sm:$0xff]
    %v444 = vld [vmem:[%s2 + $0x10] sm:$0xff]
    %v445 = vld [vmem:[%s2 + $0x18] sm:$0xff]
    %v446 = vld [vmem:[%s2 + $0x20] sm:$0xff]
    %v447 = vld [vmem:[%s2 + $0x28] sm:$0xff]
    %v448 = vld [vmem:[%s2 + $0x30] sm:$0xff]
    %v449 = vld [vmem:[%s2 + $0x38] sm:$0xff]
    %s450 = scalar_lea.vmem %s2, 64
    %v451 = vld [vmem:[%s450] sm:$0xff]
    %v452 = vld [vmem:[%s450 + $0x8] sm:$0xff]
    %v453 = vld [vmem:[%s450 + $0x10] sm:$0xff]
    %v454 = vld [vmem:[%s450 + $0x18] sm:$0xff]
    %v455 = vld [vmem:[%s450 + $0x20] sm:$0xff]
    %v456 = vld [vmem:[%s450 + $0x28] sm:$0xff]
    %v457 = vld [vmem:[%s450 + $0x30] sm:$0xff]
    %v458 = vld [vmem:[%s450 + $0x38] sm:$0xff]
    %s459 = scalar_lea.vmem %s2, 128
    %v460 = vld [vmem:[%s459] sm:$0xff]
    %v461 = vld [vmem:[%s459 + $0x8] sm:$0xff]
    %v462 = vld [vmem:[%s459 + $0x10] sm:$0xff]
    %v463 = vld [vmem:[%s459 + $0x18] sm:$0xff]
    %v464 = vld [vmem:[%s459 + $0x20] sm:$0xff]
    %v465 = vld [vmem:[%s459 + $0x28] sm:$0xff]
    %v466 = vld [vmem:[%s459 + $0x30] sm:$0xff]
    %v467 = vld [vmem:[%s459 + $0x38] sm:$0xff]
    %v468 = vld [vmem:[%s4] sm:$0x1]
    %vm469 = vcmask 523264
    %v471 = vsel %vm469, 0.0, 0
    %473 = vmatprep.subr.mxu0 0.0
    %474 = vmatpush1.msra.mxu0 0.0
    %475 = vmatprep.subr.mxu0 0.0
    %476 = vmatpush1.msra.mxu0 0.0
    %477 = vmatprep.subr.mxu0 0.0
    %478 = vmatpush1.msra.mxu0 0.0
    %479 = vmatprep.subr.mxu0 0.0
    %480 = vmatpush1.msra.mxu0 0.0
    %481 = vmatprep.subr.mxu0 0.0
    %482 = vmatpush1.msra.mxu0 0.0
    %483 = vmatprep.subr.mxu0 0.0
    %484 = vmatpush1.msra.mxu0 0.0
    %485 = vmatprep.subr.mxu0 0.0
    %486 = vmatpush1.msra.mxu0 0.0
    %487 = vmatprep.subr.mxu0 0.0
    %488 = vmatpush1.msra.mxu0 0.0
    %489 = vmatprep.subr.mxu0 0.0
    %490 = vmatpush1.msra.mxu0 %v449
    %491 = vmatprep.subr.mxu0 0.0
    %492 = vmatpush1.msra.mxu0 %v448
    %493 = vmatprep.subr.mxu0 0.0
    %494 = vmatpush1.msra.mxu0 %v447
    %495 = vmatprep.subr.mxu0 0.0
    %496 = vmatpush1.msra.mxu0 %v446
    %497 = vmatprep.subr.mxu0 0.0
    %498 = vmatpush1.msra.mxu0 %v445
    %499 = vmatprep.subr.mxu0 0.0
    %500 = vmatpush1.msra.mxu0 %v444
    %501 = vmatprep.subr.mxu0 0.0
    %502 = vmatpush1.msra.mxu0 %v443
    %503 = vmatprep.subr.mxu0 0.0
    %504 = vmatpush1.msra.mxu0 %v442
    %505 = vmatprep.subr.mxu0 0.0
    %506 = vmatpush2.msra.mxu0 0.0
    %507 = vmatprep.subr.mxu0 0.0
    %508 = vmatpush2.msra.mxu0 0.0
    %509 = vmatprep.subr.mxu0 0.0
    %510 = vmatpush2.msra.mxu0 0.0
    %511 = vmatprep.subr.mxu0 0.0
    %512 = vmatpush2.msra.mxu0 0.0
    %513 = vmatprep.subr.mxu0 0.0
    %514 = vmatpush2.msra.mxu0 0.0
    %515 = vmatprep.subr.mxu0 0.0
    %516 = vmatpush2.msra.mxu0 0.0
    %517 = vmatprep.subr.mxu0 0.0
    %518 = vmatpush2.msra.mxu0 0.0
    %519 = vmatprep.subr.mxu0 0.0
    %520 = vmatpush2.msra.mxu0 0.0
    %521 = vmatprep.subr.mxu0 0.0
    %522 = vmatpush2.msra.mxu0 0.0
    %523 = vmatprep.subr.mxu0 0.0
    %524 = vmatpush2.msra.mxu0 0.0
    %525 = vmatprep.subr.mxu0 0.0
    %526 = vmatpush2.msra.mxu0 0.0
    %527 = vmatprep.subr.mxu0 0.0
    %528 = vmatpush2.msra.mxu0 0.0
    %529 = vmatprep.subr.mxu0 0.0
    %530 = vmatpush2.msra.mxu0 0.0
    %531 = vmatprep.subr.mxu0 0.0
    %532 = vmatpush2.msra.mxu0 0.0
    %533 = vmatprep.subr.mxu0 0.0
    %534 = vmatpush2.msra.mxu0 0.0
    %535 = vmatprep.subr.mxu0 0.0
    %536 = vmatpush2.msra.mxu0 0.0
    %537 = vmatprep.mubr.f32.mxu0 0.0
    %538 = vmatmul.mubr.f32.gmra.mxu0 %v471
    %v539 = vpop.f32.mrf.mxu0
    %v540 = vadd.f32 0.0, %v539
    %v541 = vpop.f32.mrf.mxu0
    %542 = vdwg.mxu0
    %543 = vmatprep.subr.mxu0 0.0
    %544 = vmatpush1.msra.mxu0 0.0
    %545 = vmatprep.subr.mxu0 0.0
    %546 = vmatpush1.msra.mxu0 0.0
    %547 = vmatprep.subr.mxu0 0.0
    %548 = vmatpush1.msra.mxu0 0.0
    %549 = vmatprep.subr.mxu0 0.0
    %550 = vmatpush1.msra.mxu0 0.0
    %551 = vmatprep.subr.mxu0 0.0
    %552 = vmatpush1.msra.mxu0 0.0
    %553 = vmatprep.subr.mxu0 0.0
    %554 = vmatpush1.msra.mxu0 0.0
    %555 = vmatprep.subr.mxu0 0.0
    %556 = vmatpush1.msra.mxu0 0.0
    %557 = vmatprep.subr.mxu0 0.0
    %558 = vmatpush1.msra.mxu0 0.0
    %559 = vmatprep.subr.mxu0 0.0
    %560 = vmatpush1.msra.mxu0 %v458
    %561 = vmatprep.subr.mxu0 0.0
    %562 = vmatpush1.msra.mxu0 %v457
    %563 = vmatprep.subr.mxu0 0.0
    %564 = vmatpush1.msra.mxu0 %v456
    %565 = vmatprep.subr.mxu0 0.0
    %566 = vmatpush1.msra.mxu0 %v455
    %567 = vmatprep.subr.mxu0 0.0
    %568 = vmatpush1.msra.mxu0 %v454
    %569 = vmatprep.subr.mxu0 0.0
    %570 = vmatpush1.msra.mxu0 %v453
    %571 = vmatprep.subr.mxu0 0.0
    %572 = vmatpush1.msra.mxu0 %v452
    %573 = vmatprep.subr.mxu0 0.0
    %574 = vmatpush1.msra.mxu0 %v451
    %575 = vmatprep.subr.mxu0 0.0
    %576 = vmatpush2.msra.mxu0 0.0
    %577 = vmatprep.subr.mxu0 0.0
    %578 = vmatpush2.msra.mxu0 0.0
    %579 = vmatprep.subr.mxu0 0.0
    %580 = vmatpush2.msra.mxu0 0.0
    %581 = vmatprep.subr.mxu0 0.0
    %582 = vmatpush2.msra.mxu0 0.0
    %583 = vmatprep.subr.mxu0 0.0
    %584 = vmatpush2.msra.mxu0 0.0
    %585 = vmatprep.subr.mxu0 0.0
    %586 = vmatpush2.msra.mxu0 0.0
    %587 = vmatprep.subr.mxu0 0.0
    %588 = vmatpush2.msra.mxu0 0.0
    %589 = vmatprep.subr.mxu0 0.0
    %590 = vmatpush2.msra.mxu0 0.0
    %591 = vmatprep.subr.mxu0 0.0
    %592 = vmatpush2.msra.mxu0 0.0
    %593 = vmatprep.subr.mxu0 0.0
    %594 = vmatpush2.msra.mxu0 0.0
    %595 = vmatprep.subr.mxu0 0.0
    %596 = vmatpush2.msra.mxu0 0.0
    %597 = vmatprep.subr.mxu0 0.0
    %598 = vmatpush2.msra.mxu0 0.0
    %599 = vmatprep.subr.mxu0 0.0
    %600 = vmatpush2.msra.mxu0 0.0
    %601 = vmatprep.subr.mxu0 0.0
    %602 = vmatpush2.msra.mxu0 0.0
    %603 = vmatprep.subr.mxu0 0.0
    %604 = vmatpush2.msra.mxu0 0.0
    %605 = vmatprep.subr.mxu0 0.0
    %606 = vmatpush2.msra.mxu0 0.0
    %607 = vmatprep.mubr.f32.mxu0 0.0
    %608 = vmatmul.mubr.f32.gmra.mxu0 %v471
    %v609 = vpop.f32.mrf.mxu0
    %v610 = vadd.f32 0.0, %v609
    %v611 = vpop.f32.mrf.mxu0
    %612 = vdwg.mxu0
    %v614 = vlaneseq
    %v615 = vshrl.u32 %v614, 7
    %v616 = vsub.s32 0, %v615
    %v617 = vrot.slane %v468, %v616
    %619 = vmatprep.subr.mxu0 0.0
    %620 = vmatpush1.msra.mxu0 0.0
    %621 = vmatprep.subr.mxu0 0.0
    %622 = vmatpush1.msra.mxu0 0.0
    %623 = vmatprep.subr.mxu0 0.0
    %624 = vmatpush1.msra.mxu0 0.0
    %625 = vmatprep.subr.mxu0 0.0
    %626 = vmatpush1.msra.mxu0 0.0
    %627 = vmatprep.subr.mxu0 0.0
    %628 = vmatpush1.msra.mxu0 0.0
    %629 = vmatprep.subr.mxu0 0.0
    %630 = vmatpush1.msra.mxu0 0.0
    %631 = vmatprep.subr.mxu0 0.0
    %632 = vmatpush1.msra.mxu0 0.0
    %633 = vmatprep.subr.mxu0 0.0
    %634 = vmatpush1.msra.mxu0 0.0
    %635 = vmatprep.subr.mxu0 0.0
    %636 = vmatpush1.msra.mxu0 %v467
    %637 = vmatprep.subr.mxu0 0.0
    %638 = vmatpush1.msra.mxu0 %v466
    %639 = vmatprep.subr.mxu0 0.0
    %640 = vmatpush1.msra.mxu0 %v465
    %641 = vmatprep.subr.mxu0 0.0
    %642 = vmatpush1.msra.mxu0 %v464
    %643 = vmatprep.subr.mxu0 0.0
    %644 = vmatpush1.msra.mxu0 %v463
    %645 = vmatprep.subr.mxu0 0.0
    %646 = vmatpush1.msra.mxu0 %v462
    %647 = vmatprep.subr.mxu0 0.0
    %648 = vmatpush1.msra.mxu0 %v461
    %649 = vmatprep.subr.mxu0 0.0
    %650 = vmatpush1.msra.mxu0 %v460
    %651 = vmatprep.subr.mxu0 0.0
    %652 = vmatpush2.msra.mxu0 0.0
    %653 = vmatprep.subr.mxu0 0.0
    %654 = vmatpush2.msra.mxu0 0.0
    %655 = vmatprep.subr.mxu0 0.0
    %656 = vmatpush2.msra.mxu0 0.0
    %657 = vmatprep.subr.mxu0 0.0
    %658 = vmatpush2.msra.mxu0 0.0
    %659 = vmatprep.subr.mxu0 0.0
    %660 = vmatpush2.msra.mxu0 0.0
    %661 = vmatprep.subr.mxu0 0.0
    %662 = vmatpush2.msra.mxu0 0.0
    %663 = vmatprep.subr.mxu0 0.0
    %664 = vmatpush2.msra.mxu0 0.0
    %665 = vmatprep.subr.mxu0 0.0
    %666 = vmatpush2.msra.mxu0 0.0
    %667 = vmatprep.subr.mxu0 0.0
    %668 = vmatpush2.msra.mxu0 0.0
    %669 = vmatprep.subr.mxu0 0.0
    %670 = vmatpush2.msra.mxu0 0.0
    %671 = vmatprep.subr.mxu0 0.0
    %672 = vmatpush2.msra.mxu0 0.0
    %673 = vmatprep.subr.mxu0 0.0
    %674 = vmatpush2.msra.mxu0 0.0
    %675 = vmatprep.subr.mxu0 0.0
    %676 = vmatpush2.msra.mxu0 0.0
    %677 = vmatprep.subr.mxu0 0.0
    %678 = vmatpush2.msra.mxu0 0.0
    %679 = vmatprep.subr.mxu0 0.0
    %680 = vmatpush2.msra.mxu0 0.0
    %681 = vmatprep.subr.mxu0 0.0
    %682 = vmatpush2.msra.mxu0 0.0
    %683 = vmatprep.mubr.f32.mxu0 0.0
    %684 = vmatmul.mubr.f32.gmra.mxu0 %v471
    %v685 = vpop.f32.mrf.mxu0
    %v686 = vadd.f32 %v617, %v685
    %v687 = vpop.f32.mrf.mxu0
    %688 = vdwg.mxu0
    %v689 = vadd.f32 %v174, %v540
    %v690 = vsub.f32 0.0, %v689
    %v691 = vmul.f32 %v690, 1.442695
    %v692 = vpow.pop %v691
    %v693 = vadd.f32 %v692, 1.0
    %v694 = vrcp.pop %v693
    %v695 = vmul.f32 1.0, %v694
    %v696 = vadd.f32 %v289, %v610
    %v697 = vsub.f32 0.0, %v696
    %v698 = vmul.f32 %v697, 1.442695
    %v699 = vpow.pop %v698
    %v700 = vadd.f32 %v699, 1.0
    %v701 = vrcp.pop %v700
    %v702 = vmul.f32 1.0, %v701
    %v703 = vmul.f32 %v695, %v686
    %v704 = vadd.f32 %v404, %v703
    %v705 = vtanh.pop %v704
    %v706 = vsub.f32 1.0, %v702
    %v707 = vmul.f32 %v706, %v705
    %v708 = vmul.f32 %v702, 0.0
    %v709 = vadd.f32 %v707, %v708
    %v711 = vsel %vm469, %v709, 0
    %713 = vmatprep.subr.mxu0 0.0
    %714 = vmatpush1.msra.mxu0 0.0
    %715 = vmatprep.subr.mxu0 0.0
    %716 = vmatpush1.msra.mxu0 0.0
    %717 = vmatprep.subr.mxu0 0.0
    %718 = vmatpush1.msra.mxu0 0.0
    %719 = vmatprep.subr.mxu0 0.0
    %720 = vmatpush1.msra.mxu0 0.0
    %721 = vmatprep.subr.mxu0 0.0
    %722 = vmatpush1.msra.mxu0 0.0
    %723 = vmatprep.subr.mxu0 0.0
    %724 = vmatpush1.msra.mxu0 0.0
    %725 = vmatprep.subr.mxu0 0.0
    %726 = vmatpush1.msra.mxu0 0.0
    %727 = vmatprep.subr.mxu0 0.0
    %728 = vmatpush1.msra.mxu0 0.0
    %729 = vmatprep.subr.mxu0 0.0
    %730 = vmatpush1.msra.mxu0 %v449
    %731 = vmatprep.subr.mxu0 0.0
    %732 = vmatpush1.msra.mxu0 %v448
    %733 = vmatprep.subr.mxu0 0.0
    %734 = vmatpush1.msra.mxu0 %v447
    %735 = vmatprep.subr.mxu0 0.0
    %736 = vmatpush1.msra.mxu0 %v446
    %737 = vmatprep.subr.mxu0 0.0
    %738 = vmatpush1.msra.mxu0 %v445
    %739 = vmatprep.subr.mxu0 0.0
    %740 = vmatpush1.msra.mxu0 %v444
    %741 = vmatprep.subr.mxu0 0.0
    %742 = vmatpush1.msra.mxu0 %v443
    %743 = vmatprep.subr.mxu0 0.0
    %744 = vmatpush1.msra.mxu0 %v442
    %745 = vmatprep.subr.mxu0 0.0
    %746 = vmatpush2.msra.mxu0 0.0
    %747 = vmatprep.subr.mxu0 0.0
    %748 = vmatpush2.msra.mxu0 0.0
    %749 = vmatprep.subr.mxu0 0.0
    %750 = vmatpush2.msra.mxu0 0.0
    %751 = vmatprep.subr.mxu0 0.0
    %752 = vmatpush2.msra.mxu0 0.0
    %753 = vmatprep.subr.mxu0 0.0
    %754 = vmatpush2.msra.mxu0 0.0
    %755 = vmatprep.subr.mxu0 0.0
    %756 = vmatpush2.msra.mxu0 0.0
    %757 = vmatprep.subr.mxu0 0.0
    %758 = vmatpush2.msra.mxu0 0.0
    %759 = vmatprep.subr.mxu0 0.0
    %760 = vmatpush2.msra.mxu0 0.0
    %761 = vmatprep.subr.mxu0 0.0
    %762 = vmatpush2.msra.mxu0 0.0
    %763 = vmatprep.subr.mxu0 0.0
    %764 = vmatpush2.msra.mxu0 0.0
    %765 = vmatprep.subr.mxu0 0.0
    %766 = vmatpush2.msra.mxu0 0.0
    %767 = vmatprep.subr.mxu0 0.0
    %768 = vmatpush2.msra.mxu0 0.0
    %769 = vmatprep.subr.mxu0 0.0
    %770 = vmatpush2.msra.mxu0 0.0
    %771 = vmatprep.subr.mxu0 0.0
    %772 = vmatpush2.msra.mxu0 0.0
    %773 = vmatprep.subr.mxu0 0.0
    %774 = vmatpush2.msra.mxu0 0.0
    %775 = vmatprep.subr.mxu0 0.0
    %776 = vmatpush2.msra.mxu0 0.0
    %777 = vmatprep.mubr.f32.mxu0 0.0
    %778 = vmatmul.mubr.f32.gmra.mxu0 %v711
    %v779 = vpop.f32.mrf.mxu0
    %v780 = vadd.f32 0.0, %v779
    %v781 = vpop.f32.mrf.mxu0
    %782 = vdwg.mxu0
    %783 = vmatprep.subr.mxu0 0.0
    %784 = vmatpush1.msra.mxu0 0.0
    %785 = vmatprep.subr.mxu0 0.0
    %786 = vmatpush1.msra.mxu0 0.0
    %787 = vmatprep.subr.mxu0 0.0
    %788 = vmatpush1.msra.mxu0 0.0
    %789 = vmatprep.subr.mxu0 0.0
    %790 = vmatpush1.msra.mxu0 0.0
    %791 = vmatprep.subr.mxu0 0.0
    %792 = vmatpush1.msra.mxu0 0.0
    %793 = vmatprep.subr.mxu0 0.0
    %794 = vmatpush1.msra.mxu0 0.0
    %795 = vmatprep.subr.mxu0 0.0
    %796 = vmatpush1.msra.mxu0 0.0
    %797 = vmatprep.subr.mxu0 0.0
    %798 = vmatpush1.msra.mxu0 0.0
    %799 = vmatprep.subr.mxu0 0.0
    %800 = vmatpush1.msra.mxu0 %v458
    %801 = vmatprep.subr.mxu0 0.0
    %802 = vmatpush1.msra.mxu0 %v457
    %803 = vmatprep.subr.mxu0 0.0
    %804 = vmatpush1.msra.mxu0 %v456
    %805 = vmatprep.subr.mxu0 0.0
    %806 = vmatpush1.msra.mxu0 %v455
    %807 = vmatprep.subr.mxu0 0.0
    %808 = vmatpush1.msra.mxu0 %v454
    %809 = vmatprep.subr.mxu0 0.0
    %810 = vmatpush1.msra.mxu0 %v453
    %811 = vmatprep.subr.mxu0 0.0
    %812 = vmatpush1.msra.mxu0 %v452
    %813 = vmatprep.subr.mxu0 0.0
    %814 = vmatpush1.msra.mxu0 %v451
    %815 = vmatprep.subr.mxu0 0.0
    %816 = vmatpush2.msra.mxu0 0.0
    %817 = vmatprep.subr.mxu0 0.0
    %818 = vmatpush2.msra.mxu0 0.0
    %819 = vmatprep.subr.mxu0 0.0
    %820 = vmatpush2.msra.mxu0 0.0
    %821 = vmatprep.subr.mxu0 0.0
    %822 = vmatpush2.msra.mxu0 0.0
    %823 = vmatprep.subr.mxu0 0.0
    %824 = vmatpush2.msra.mxu0 0.0
    %825 = vmatprep.subr.mxu0 0.0
    %826 = vmatpush2.msra.mxu0 0.0
    %827 = vmatprep.subr.mxu0 0.0
    %828 = vmatpush2.msra.mxu0 0.0
    %829 = vmatprep.subr.mxu0 0.0
    %830 = vmatpush2.msra.mxu0 0.0
    %831 = vmatprep.subr.mxu0 0.0
    %832 = vmatpush2.msra.mxu0 0.0
    %833 = vmatprep.subr.mxu0 0.0
    %834 = vmatpush2.msra.mxu0 0.0
    %835 = vmatprep.subr.mxu0 0.0
    %836 = vmatpush2.msra.mxu0 0.0
    %837 = vmatprep.subr.mxu0 0.0
    %838 = vmatpush2.msra.mxu0 0.0
    %839 = vmatprep.subr.mxu0 0.0
    %840 = vmatpush2.msra.mxu0 0.0
    %841 = vmatprep.subr.mxu0 0.0
    %842 = vmatpush2.msra.mxu0 0.0
    %843 = vmatprep.subr.mxu0 0.0
    %844 = vmatpush2.msra.mxu0 0.0
    %845 = vmatprep.subr.mxu0 0.0
    %846 = vmatpush2.msra.mxu0 0.0
    %847 = vmatprep.mubr.f32.mxu0 0.0
    %848 = vmatmul.mubr.f32.gmra.mxu0 %v711
    %v849 = vpop.f32.mrf.mxu0
    %v850 = vadd.f32 0.0, %v849
    %v851 = vpop.f32.mrf.mxu0
    %852 = vdwg.mxu0
    %853 = vmatprep.subr.mxu0 0.0
    %854 = vmatpush1.msra.mxu0 0.0
    %855 = vmatprep.subr.mxu0 0.0
    %856 = vmatpush1.msra.mxu0 0.0
    %857 = vmatprep.subr.mxu0 0.0
    %858 = vmatpush1.msra.mxu0 0.0
    %859 = vmatprep.subr.mxu0 0.0
    %860 = vmatpush1.msra.mxu0 0.0
    %861 = vmatprep.subr.mxu0 0.0
    %862 = vmatpush1.msra.mxu0 0.0
    %863 = vmatprep.subr.mxu0 0.0
    %864 = vmatpush1.msra.mxu0 0.0
    %865 = vmatprep.subr.mxu0 0.0
    %866 = vmatpush1.msra.mxu0 0.0
    %867 = vmatprep.subr.mxu0 0.0
    %868 = vmatpush1.msra.mxu0 0.0
    %869 = vmatprep.subr.mxu0 0.0
    %870 = vmatpush1.msra.mxu0 %v467
    %871 = vmatprep.subr.mxu0 0.0
    %872 = vmatpush1.msra.mxu0 %v466
    %873 = vmatprep.subr.mxu0 0.0
    %874 = vmatpush1.msra.mxu0 %v465
    %875 = vmatprep.subr.mxu0 0.0
    %876 = vmatpush1.msra.mxu0 %v464
    %877 = vmatprep.subr.mxu0 0.0
    %878 = vmatpush1.msra.mxu0 %v463
    %879 = vmatprep.subr.mxu0 0.0
    %880 = vmatpush1.msra.mxu0 %v462
    %881 = vmatprep.subr.mxu0 0.0
    %882 = vmatpush1.msra.mxu0 %v461
    %883 = vmatprep.subr.mxu0 0.0
    %884 = vmatpush1.msra.mxu0 %v460
    %885 = vmatprep.subr.mxu0 0.0
    %886 = vmatpush2.msra.mxu0 0.0
    %887 = vmatprep.subr.mxu0 0.0
    %888 = vmatpush2.msra.mxu0 0.0
    %889 = vmatprep.subr.mxu0 0.0
    %890 = vmatpush2.msra.mxu0 0.0
    %891 = vmatprep.subr.mxu0 0.0
    %892 = vmatpush2.msra.mxu0 0.0
    %893 = vmatprep.subr.mxu0 0.0
    %894 = vmatpush2.msra.mxu0 0.0
    %895 = vmatprep.subr.mxu0 0.0
    %896 = vmatpush2.msra.mxu0 0.0
    %897 = vmatprep.subr.mxu0 0.0
    %898 = vmatpush2.msra.mxu0 0.0
    %899 = vmatprep.subr.mxu0 0.0
    %900 = vmatpush2.msra.mxu0 0.0
    %901 = vmatprep.subr.mxu0 0.0
    %902 = vmatpush2.msra.mxu0 0.0
    %903 = vmatprep.subr.mxu0 0.0
    %904 = vmatpush2.msra.mxu0 0.0
    %905 = vmatprep.subr.mxu0 0.0
    %906 = vmatpush2.msra.mxu0 0.0
    %907 = vmatprep.subr.mxu0 0.0
    %908 = vmatpush2.msra.mxu0 0.0
    %909 = vmatprep.subr.mxu0 0.0
    %910 = vmatpush2.msra.mxu0 0.0
    %911 = vmatprep.subr.mxu0 0.0
    %912 = vmatpush2.msra.mxu0 0.0
    %913 = vmatprep.subr.mxu0 0.0
    %914 = vmatpush2.msra.mxu0 0.0
    %915 = vmatprep.subr.mxu0 0.0
    %916 = vmatpush2.msra.mxu0 0.0
    %917 = vmatprep.mubr.f32.mxu0 0.0
    %918 = vmatmul.mubr.f32.gmra.mxu0 %v711
    %v919 = vpop.f32.mrf.mxu0
    %v920 = vadd.f32 %v617, %v919
    %v921 = vpop.f32.mrf.mxu0
    %922 = vdwg.mxu0
    %v923 = vadd.f32 %v179, %v780
    %v924 = vsub.f32 0.0, %v923
    %v925 = vmul.f32 %v924, 1.442695
    %v926 = vpow.pop %v925
    %v927 = vadd.f32 %v926, 1.0
    %v928 = vrcp.pop %v927
    %v929 = vmul.f32 1.0, %v928
    %v930 = vadd.f32 %v294, %v850
    %v931 = vsub.f32 0.0, %v930
    %v932 = vmul.f32 %v931, 1.442695
    %v933 = vpow.pop %v932
    %v934 = vadd.f32 %v933, 1.0
    %v935 = vrcp.pop %v934
    %v936 = vmul.f32 1.0, %v935
    %v937 = vmul.f32 %v929, %v920
    %v938 = vadd.f32 %v409, %v937
    %v939 = vtanh.pop %v938
    %v940 = vsub.f32 1.0, %v936
    %v941 = vmul.f32 %v940, %v939
    %v942 = vmul.f32 %v936, %v709
    %v943 = vadd.f32 %v941, %v942
    %v945 = vsel %vm469, %v943, 0
    %947 = vmatprep.subr.mxu0 0.0
    %948 = vmatpush1.msra.mxu0 0.0
    %949 = vmatprep.subr.mxu0 0.0
    %950 = vmatpush1.msra.mxu0 0.0
    %951 = vmatprep.subr.mxu0 0.0
    %952 = vmatpush1.msra.mxu0 0.0
    %953 = vmatprep.subr.mxu0 0.0
    %954 = vmatpush1.msra.mxu0 0.0
    %955 = vmatprep.subr.mxu0 0.0
    %956 = vmatpush1.msra.mxu0 0.0
    %957 = vmatprep.subr.mxu0 0.0
    %958 = vmatpush1.msra.mxu0 0.0
    %959 = vmatprep.subr.mxu0 0.0
    %960 = vmatpush1.msra.mxu0 0.0
    %961 = vmatprep.subr.mxu0 0.0
    %962 = vmatpush1.msra.mxu0 0.0
    %963 = vmatprep.subr.mxu0 0.0
    %964 = vmatpush1.msra.mxu0 %v449
    %965 = vmatprep.subr.mxu0 0.0
    %966 = vmatpush1.msra.mxu0 %v448
    %967 = vmatprep.subr.mxu0 0.0
    %968 = vmatpush1.msra.mxu0 %v447
    %969 = vmatprep.subr.mxu0 0.0
    %970 = vmatpush1.msra.mxu0 %v446
    %971 = vmatprep.subr.mxu0 0.0
    %972 = vmatpush1.msra.mxu0 %v445
    %973 = vmatprep.subr.mxu0 0.0
    %974 = vmatpush1.msra.mxu0 %v444
    %975 = vmatprep.subr.mxu0 0.0
    %976 = vmatpush1.msra.mxu0 %v443
    %977 = vmatprep.subr.mxu0 0.0
    %978 = vmatpush1.msra.mxu0 %v442
    %979 = vmatprep.subr.mxu0 0.0
    %980 = vmatpush2.msra.mxu0 0.0
    %981 = vmatprep.subr.mxu0 0.0
    %982 = vmatpush2.msra.mxu0 0.0
    %983 = vmatprep.subr.mxu0 0.0
    %984 = vmatpush2.msra.mxu0 0.0
    %985 = vmatprep.subr.mxu0 0.0
    %986 = vmatpush2.msra.mxu0 0.0
    %987 = vmatprep.subr.mxu0 0.0
    %988 = vmatpush2.msra.mxu0 0.0
    %989 = vmatprep.subr.mxu0 0.0
    %990 = vmatpush2.msra.mxu0 0.0
    %991 = vmatprep.subr.mxu0 0.0
    %992 = vmatpush2.msra.mxu0 0.0
    %993 = vmatprep.subr.mxu0 0.0
    %994 = vmatpush2.msra.mxu0 0.0
    %995 = vmatprep.subr.mxu0 0.0
    %996 = vmatpush2.msra.mxu0 0.0
    %997 = vmatprep.subr.mxu0 0.0
    %998 = vmatpush2.msra.mxu0 0.0
    %999 = vmatprep.subr.mxu0 0.0
    %1000 = vmatpush2.msra.mxu0 0.0
    %1001 = vmatprep.subr.mxu0 0.0
    %1002 = vmatpush2.msra.mxu0 0.0
    %1003 = vmatprep.subr.mxu0 0.0
    %1004 = vmatpush2.msra.mxu0 0.0
    %1005 = vmatprep.subr.mxu0 0.0
    %1006 = vmatpush2.msra.mxu0 0.0
    %1007 = vmatprep.subr.mxu0 0.0
    %1008 = vmatpush2.msra.mxu0 0.0
    %1009 = vmatprep.subr.mxu0 0.0
    %1010 = vmatpush2.msra.mxu0 0.0
    %1011 = vmatprep.mubr.f32.mxu0 0.0
    %1012 = vmatmul.mubr.f32.gmra.mxu0 %v945
    %v1013 = vpop.f32.mrf.mxu0
    %v1014 = vadd.f32 0.0, %v1013
    %v1015 = vpop.f32.mrf.mxu0
    %1016 = vdwg.mxu0
    %1017 = vmatprep.subr.mxu0 0.0
    %1018 = vmatpush1.msra.mxu0 0.0
    %1019 = vmatprep.subr.mxu0 0.0
    %1020 = vmatpush1.msra.mxu0 0.0
    %1021 = vmatprep.subr.mxu0 0.0
    %1022 = vmatpush1.msra.mxu0 0.0
    %1023 = vmatprep.subr.mxu0 0.0
    %1024 = vmatpush1.msra.mxu0 0.0
    %1025 = vmatprep.subr.mxu0 0.0
    %1026 = vmatpush1.msra.mxu0 0.0
    %1027 = vmatprep.subr.mxu0 0.0
    %1028 = vmatpush1.msra.mxu0 0.0
    %1029 = vmatprep.subr.mxu0 0.0
    %1030 = vmatpush1.msra.mxu0 0.0
    %1031 = vmatprep.subr.mxu0 0.0
    %1032 = vmatpush1.msra.mxu0 0.0
    %1033 = vmatprep.subr.mxu0 0.0
    %1034 = vmatpush1.msra.mxu0 %v458
    %1035 = vmatprep.subr.mxu0 0.0
    %1036 = vmatpush1.msra.mxu0 %v457
    %1037 = vmatprep.subr.mxu0 0.0
    %1038 = vmatpush1.msra.mxu0 %v456
    %1039 = vmatprep.subr.mxu0 0.0
    %1040 = vmatpush1.msra.mxu0 %v455
    %1041 = vmatprep.subr.mxu0 0.0
    %1042 = vmatpush1.msra.mxu0 %v454
    %1043 = vmatprep.subr.mxu0 0.0
    %1044 = vmatpush1.msra.mxu0 %v453
    %1045 = vmatprep.subr.mxu0 0.0
    %1046 = vmatpush1.msra.mxu0 %v452
    %1047 = vmatprep.subr.mxu0 0.0
    %1048 = vmatpush1.msra.mxu0 %v451
    %1049 = vmatprep.subr.mxu0 0.0
    %1050 = vmatpush2.msra.mxu0 0.0
    %1051 = vmatprep.subr.mxu0 0.0
    %1052 = vmatpush2.msra.mxu0 0.0
    %1053 = vmatprep.subr.mxu0 0.0
    %1054 = vmatpush2.msra.mxu0 0.0
    %1055 = vmatprep.subr.mxu0 0.0
    %1056 = vmatpush2.msra.mxu0 0.0
    %1057 = vmatprep.subr.mxu0 0.0
    %1058 = vmatpush2.msra.mxu0 0.0
    %1059 = vmatprep.subr.mxu0 0.0
    %1060 = vmatpush2.msra.mxu0 0.0
    %1061 = vmatprep.subr.mxu0 0.0
    %1062 = vmatpush2.msra.mxu0 0.0
    %1063 = vmatprep.subr.mxu0 0.0
    %1064 = vmatpush2.msra.mxu0 0.0
    %1065 = vmatprep.subr.mxu0 0.0
    %1066 = vmatpush2.msra.mxu0 0.0
    %1067 = vmatprep.subr.mxu0 0.0
    %1068 = vmatpush2.msra.mxu0 0.0
    %1069 = vmatprep.subr.mxu0 0.0
    %1070 = vmatpush2.msra.mxu0 0.0
    %1071 = vmatprep.subr.mxu0 0.0
    %1072 = vmatpush2.msra.mxu0 0.0
    %1073 = vmatprep.subr.mxu0 0.0
    %1074 = vmatpush2.msra.mxu0 0.0
    %1075 = vmatprep.subr.mxu0 0.0
    %1076 = vmatpush2.msra.mxu0 0.0
    %1077 = vmatprep.subr.mxu0 0.0
    %1078 = vmatpush2.msra.mxu0 0.0
    %1079 = vmatprep.subr.mxu0 0.0
    %1080 = vmatpush2.msra.mxu0 0.0
    %1081 = vmatprep.mubr.f32.mxu0 0.0
    %1082 = vmatmul.mubr.f32.gmra.mxu0 %v945
    %v1083 = vpop.f32.mrf.mxu0
    %v1084 = vadd.f32 0.0, %v1083
    %v1085 = vpop.f32.mrf.mxu0
    %1086 = vdwg.mxu0
    %1087 = vmatprep.subr.mxu0 0.0
    %1088 = vmatpush1.msra.mxu0 0.0
    %1089 = vmatprep.subr.mxu0 0.0
    %1090 = vmatpush1.msra.mxu0 0.0
    %1091 = vmatprep.subr.mxu0 0.0
    %1092 = vmatpush1.msra.mxu0 0.0
    %1093 = vmatprep.subr.mxu0 0.0
    %1094 = vmatpush1.msra.mxu0 0.0
    %1095 = vmatprep.subr.mxu0 0.0
    %1096 = vmatpush1.msra.mxu0 0.0
    %1097 = vmatprep.subr.mxu0 0.0
    %1098 = vmatpush1.msra.mxu0 0.0
    %1099 = vmatprep.subr.mxu0 0.0
    %1100 = vmatpush1.msra.mxu0 0.0
    %1101 = vmatprep.subr.mxu0 0.0
    %1102 = vmatpush1.msra.mxu0 0.0
    %1103 = vmatprep.subr.mxu0 0.0
    %1104 = vmatpush1.msra.mxu0 %v467
    %1105 = vmatprep.subr.mxu0 0.0
    %1106 = vmatpush1.msra.mxu0 %v466
    %1107 = vmatprep.subr.mxu0 0.0
    %1108 = vmatpush1.msra.mxu0 %v465
    %1109 = vmatprep.subr.mxu0 0.0
    %1110 = vmatpush1.msra.mxu0 %v464
    %1111 = vmatprep.subr.mxu0 0.0
    %1112 = vmatpush1.msra.mxu0 %v463
    %1113 = vmatprep.subr.mxu0 0.0
    %1114 = vmatpush1.msra.mxu0 %v462
    %1115 = vmatprep.subr.mxu0 0.0
    %1116 = vmatpush1.msra.mxu0 %v461
    %1117 = vmatprep.subr.mxu0 0.0
    %1118 = vmatpush1.msra.mxu0 %v460
    %1119 = vmatprep.subr.mxu0 0.0
    %1120 = vmatpush2.msra.mxu0 0.0
    %1121 = vmatprep.subr.mxu0 0.0
    %1122 = vmatpush2.msra.mxu0 0.0
    %1123 = vmatprep.subr.mxu0 0.0
    %1124 = vmatpush2.msra.mxu0 0.0
    %1125 = vmatprep.subr.mxu0 0.0
    %1126 = vmatpush2.msra.mxu0 0.0
    %1127 = vmatprep.subr.mxu0 0.0
    %1128 = vmatpush2.msra.mxu0 0.0
    %1129 = vmatprep.subr.mxu0 0.0
    %1130 = vmatpush2.msra.mxu0 0.0
    %1131 = vmatprep.subr.mxu0 0.0
    %1132 = vmatpush2.msra.mxu0 0.0
    %1133 = vmatprep.subr.mxu0 0.0
    %1134 = vmatpush2.msra.mxu0 0.0
    %1135 = vmatprep.subr.mxu0 0.0
    %1136 = vmatpush2.msra.mxu0 0.0
    %1137 = vmatprep.subr.mxu0 0.0
    %1138 = vmatpush2.msra.mxu0 0.0
    %1139 = vmatprep.subr.mxu0 0.0
    %1140 = vmatpush2.msra.mxu0 0.0
    %1141 = vmatprep.subr.mxu0 0.0
    %1142 = vmatpush2.msra.mxu0 0.0
    %1143 = vmatprep.subr.mxu0 0.0
    %1144 = vmatpush2.msra.mxu0 0.0
    %1145 = vmatprep.subr.mxu0 0.0
    %1146 = vmatpush2.msra.mxu0 0.0
    %1147 = vmatprep.subr.mxu0 0.0
    %1148 = vmatpush2.msra.mxu0 0.0
    %1149 = vmatprep.subr.mxu0 0.0
    %1150 = vmatpush2.msra.mxu0 0.0
    %1151 = vmatprep.mubr.f32.mxu0 0.0
    %1152 = vmatmul.mubr.f32.gmra.mxu0 %v945
    %v1153 = vpop.f32.mrf.mxu0
    %v1154 = vadd.f32 %v617, %v1153
    %v1155 = vpop.f32.mrf.mxu0
    %1156 = vdwg.mxu0
    %v1157 = vadd.f32 %v184, %v1014
    %v1158 = vsub.f32 0.0, %v1157
    %v1159 = vmul.f32 %v1158, 1.442695
    %v1160 = vpow.pop %v1159
    %v1161 = vadd.f32 %v1160, 1.0
    %v1162 = vrcp.pop %v1161
    %v1163 = vmul.f32 1.0, %v1162
    %v1164 = vadd.f32 %v299, %v1084
    %v1165 = vsub.f32 0.0, %v1164
    %v1166 = vmul.f32 %v1165, 1.442695
    %v1167 = vpow.pop %v1166
    %v1168 = vadd.f32 %v1167, 1.0
    %v1169 = vrcp.pop %v1168
    %v1170 = vmul.f32 1.0, %v1169
    %v1171 = vmul.f32 %v1163, %v1154
    %v1172 = vadd.f32 %v414, %v1171
    %v1173 = vtanh.pop %v1172
    %v1174 = vsub.f32 1.0, %v1170
    %v1175 = vmul.f32 %v1174, %v1173
    %v1176 = vmul.f32 %v1170, %v943
    %v1177 = vadd.f32 %v1175, %v1176
    %v1179 = vsel %vm469, %v1177, 0
    %1181 = vmatprep.subr.mxu0 0.0
    %1182 = vmatpush1.msra.mxu0 0.0
    %1183 = vmatprep.subr.mxu0 0.0
    %1184 = vmatpush1.msra.mxu0 0.0
    %1185 = vmatprep.subr.mxu0 0.0
    %1186 = vmatpush1.msra.mxu0 0.0
    %1187 = vmatprep.subr.mxu0 0.0
    %1188 = vmatpush1.msra.mxu0 0.0
    %1189 = vmatprep.subr.mxu0 0.0
    %1190 = vmatpush1.msra.mxu0 0.0
    %1191 = vmatprep.subr.mxu0 0.0
    %1192 = vmatpush1.msra.mxu0 0.0
    %1193 = vmatprep.subr.mxu0 0.0
    %1194 = vmatpush1.msra.mxu0 0.0
    %1195 = vmatprep.subr.mxu0 0.0
    %1196 = vmatpush1.msra.mxu0 0.0
    %1197 = vmatprep.subr.mxu0 0.0
    %1198 = vmatpush1.msra.mxu0 %v449
    %1199 = vmatprep.subr.mxu0 0.0
    %1200 = vmatpush1.msra.mxu0 %v448
    %1201 = vmatprep.subr.mxu0 0.0
    %1202 = vmatpush1.msra.mxu0 %v447
    %1203 = vmatprep.subr.mxu0 0.0
    %1204 = vmatpush1.msra.mxu0 %v446
    %1205 = vmatprep.subr.mxu0 0.0
    %1206 = vmatpush1.msra.mxu0 %v445
    %1207 = vmatprep.subr.mxu0 0.0
    %1208 = vmatpush1.msra.mxu0 %v444
    %1209 = vmatprep.subr.mxu0 0.0
    %1210 = vmatpush1.msra.mxu0 %v443
    %1211 = vmatprep.subr.mxu0 0.0
    %1212 = vmatpush1.msra.mxu0 %v442
    %1213 = vmatprep.subr.mxu0 0.0
    %1214 = vmatpush2.msra.mxu0 0.0
    %1215 = vmatprep.subr.mxu0 0.0
    %1216 = vmatpush2.msra.mxu0 0.0
    %1217 = vmatprep.subr.mxu0 0.0
    %1218 = vmatpush2.msra.mxu0 0.0
    %1219 = vmatprep.subr.mxu0 0.0
    %1220 = vmatpush2.msra.mxu0 0.0
    %1221 = vmatprep.subr.mxu0 0.0
    %1222 = vmatpush2.msra.mxu0 0.0
    %1223 = vmatprep.subr.mxu0 0.0
    %1224 = vmatpush2.msra.mxu0 0.0
    %1225 = vmatprep.subr.mxu0 0.0
    %1226 = vmatpush2.msra.mxu0 0.0
    %1227 = vmatprep.subr.mxu0 0.0
    %1228 = vmatpush2.msra.mxu0 0.0
    %1229 = vmatprep.subr.mxu0 0.0
    %1230 = vmatpush2.msra.mxu0 0.0
    %1231 = vmatprep.subr.mxu0 0.0
    %1232 = vmatpush2.msra.mxu0 0.0
    %1233 = vmatprep.subr.mxu0 0.0
    %1234 = vmatpush2.msra.mxu0 0.0
    %1235 = vmatprep.subr.mxu0 0.0
    %1236 = vmatpush2.msra.mxu0 0.0
    %1237 = vmatprep.subr.mxu0 0.0
    %1238 = vmatpush2.msra.mxu0 0.0
    %1239 = vmatprep.subr.mxu0 0.0
    %1240 = vmatpush2.msra.mxu0 0.0
    %1241 = vmatprep.subr.mxu0 0.0
    %1242 = vmatpush2.msra.mxu0 0.0
    %1243 = vmatprep.subr.mxu0 0.0
    %1244 = vmatpush2.msra.mxu0 0.0
    %1245 = vmatprep.mubr.f32.mxu0 0.0
    %1246 = vmatmul.mubr.f32.gmra.mxu0 %v1179
    %v1247 = vpop.f32.mrf.mxu0
    %v1248 = vadd.f32 0.0, %v1247
    %v1249 = vpop.f32.mrf.mxu0
    %1250 = vdwg.mxu0
    %1251 = vmatprep.subr.mxu0 0.0
    %1252 = vmatpush1.msra.mxu0 0.0
    %1253 = vmatprep.subr.mxu0 0.0
    %1254 = vmatpush1.msra.mxu0 0.0
    %1255 = vmatprep.subr.mxu0 0.0
    %1256 = vmatpush1.msra.mxu0 0.0
    %1257 = vmatprep.subr.mxu0 0.0
    %1258 = vmatpush1.msra.mxu0 0.0
    %1259 = vmatprep.subr.mxu0 0.0
    %1260 = vmatpush1.msra.mxu0 0.0
    %1261 = vmatprep.subr.mxu0 0.0
    %1262 = vmatpush1.msra.mxu0 0.0
    %1263 = vmatprep.subr.mxu0 0.0
    %1264 = vmatpush1.msra.mxu0 0.0
    %1265 = vmatprep.subr.mxu0 0.0
    %1266 = vmatpush1.msra.mxu0 0.0
    %1267 = vmatprep.subr.mxu0 0.0
    %1268 = vmatpush1.msra.mxu0 %v458
    %1269 = vmatprep.subr.mxu0 0.0
    %1270 = vmatpush1.msra.mxu0 %v457
    %1271 = vmatprep.subr.mxu0 0.0
    %1272 = vmatpush1.msra.mxu0 %v456
    %1273 = vmatprep.subr.mxu0 0.0
    %1274 = vmatpush1.msra.mxu0 %v455
    %1275 = vmatprep.subr.mxu0 0.0
    %1276 = vmatpush1.msra.mxu0 %v454
    %1277 = vmatprep.subr.mxu0 0.0
    %1278 = vmatpush1.msra.mxu0 %v453
    %1279 = vmatprep.subr.mxu0 0.0
    %1280 = vmatpush1.msra.mxu0 %v452
    %1281 = vmatprep.subr.mxu0 0.0
    %1282 = vmatpush1.msra.mxu0 %v451
    %1283 = vmatprep.subr.mxu0 0.0
    %1284 = vmatpush2.msra.mxu0 0.0
    %1285 = vmatprep.subr.mxu0 0.0
    %1286 = vmatpush2.msra.mxu0 0.0
    %1287 = vmatprep.subr.mxu0 0.0
    %1288 = vmatpush2.msra.mxu0 0.0
    %1289 = vmatprep.subr.mxu0 0.0
    %1290 = vmatpush2.msra.mxu0 0.0
    %1291 = vmatprep.subr.mxu0 0.0
    %1292 = vmatpush2.msra.mxu0 0.0
    %1293 = vmatprep.subr.mxu0 0.0
    %1294 = vmatpush2.msra.mxu0 0.0
    %1295 = vmatprep.subr.mxu0 0.0
    %1296 = vmatpush2.msra.mxu0 0.0
    %1297 = vmatprep.subr.mxu0 0.0
    %1298 = vmatpush2.msra.mxu0 0.0
    %1299 = vmatprep.subr.mxu0 0.0
    %1300 = vmatpush2.msra.mxu0 0.0
    %1301 = vmatprep.subr.mxu0 0.0
    %1302 = vmatpush2.msra.mxu0 0.0
    %1303 = vmatprep.subr.mxu0 0.0
    %1304 = vmatpush2.msra.mxu0 0.0
    %1305 = vmatprep.subr.mxu0 0.0
    %1306 = vmatpush2.msra.mxu0 0.0
    %1307 = vmatprep.subr.mxu0 0.0
    %1308 = vmatpush2.msra.mxu0 0.0
    %1309 = vmatprep.subr.mxu0 0.0
    %1310 = vmatpush2.msra.mxu0 0.0
    %1311 = vmatprep.subr.mxu0 0.0
    %1312 = vmatpush2.msra.mxu0 0.0
    %1313 = vmatprep.subr.mxu0 0.0
    %1314 = vmatpush2.msra.mxu0 0.0
    %1315 = vmatprep.mubr.f32.mxu0 0.0
    %1316 = vmatmul.mubr.f32.gmra.mxu0 %v1179
    %v1317 = vpop.f32.mrf.mxu0
    %v1318 = vadd.f32 0.0, %v1317
    %v1319 = vpop.f32.mrf.mxu0
    %1320 = vdwg.mxu0
    %1321 = vmatprep.subr.mxu0 0.0
    %1322 = vmatpush1.msra.mxu0 0.0
    %1323 = vmatprep.subr.mxu0 0.0
    %1324 = vmatpush1.msra.mxu0 0.0
    %1325 = vmatprep.subr.mxu0 0.0
    %1326 = vmatpush1.msra.mxu0 0.0
    %1327 = vmatprep.subr.mxu0 0.0
    %1328 = vmatpush1.msra.mxu0 0.0
    %1329 = vmatprep.subr.mxu0 0.0
    %1330 = vmatpush1.msra.mxu0 0.0
    %1331 = vmatprep.subr.mxu0 0.0
    %1332 = vmatpush1.msra.mxu0 0.0
    %1333 = vmatprep.subr.mxu0 0.0
    %1334 = vmatpush1.msra.mxu0 0.0
    %1335 = vmatprep.subr.mxu0 0.0
    %1336 = vmatpush1.msra.mxu0 0.0
    %1337 = vmatprep.subr.mxu0 0.0
    %1338 = vmatpush1.msra.mxu0 %v467
    %1339 = vmatprep.subr.mxu0 0.0
    %1340 = vmatpush1.msra.mxu0 %v466
    %1341 = vmatprep.subr.mxu0 0.0
    %1342 = vmatpush1.msra.mxu0 %v465
    %1343 = vmatprep.subr.mxu0 0.0
    %1344 = vmatpush1.msra.mxu0 %v464
    %1345 = vmatprep.subr.mxu0 0.0
    %1346 = vmatpush1.msra.mxu0 %v463
    %1347 = vmatprep.subr.mxu0 0.0
    %1348 = vmatpush1.msra.mxu0 %v462
    %1349 = vmatprep.subr.mxu0 0.0
    %1350 = vmatpush1.msra.mxu0 %v461
    %1351 = vmatprep.subr.mxu0 0.0
    %1352 = vmatpush1.msra.mxu0 %v460
    %1353 = vmatprep.subr.mxu0 0.0
    %1354 = vmatpush2.msra.mxu0 0.0
    %1355 = vmatprep.subr.mxu0 0.0
    %1356 = vmatpush2.msra.mxu0 0.0
    %1357 = vmatprep.subr.mxu0 0.0
    %1358 = vmatpush2.msra.mxu0 0.0
    %1359 = vmatprep.subr.mxu0 0.0
    %1360 = vmatpush2.msra.mxu0 0.0
    %1361 = vmatprep.subr.mxu0 0.0
    %1362 = vmatpush2.msra.mxu0 0.0
    %1363 = vmatprep.subr.mxu0 0.0
    %1364 = vmatpush2.msra.mxu0 0.0
    %1365 = vmatprep.subr.mxu0 0.0
    %1366 = vmatpush2.msra.mxu0 0.0
    %1367 = vmatprep.subr.mxu0 0.0
    %1368 = vmatpush2.msra.mxu0 0.0
    %1369 = vmatprep.subr.mxu0 0.0
    %1370 = vmatpush2.msra.mxu0 0.0
    %1371 = vmatprep.subr.mxu0 0.0
    %1372 = vmatpush2.msra.mxu0 0.0
    %1373 = vmatprep.subr.mxu0 0.0
    %1374 = vmatpush2.msra.mxu0 0.0
    %1375 = vmatprep.subr.mxu0 0.0
    %1376 = vmatpush2.msra.mxu0 0.0
    %1377 = vmatprep.subr.mxu0 0.0
    %1378 = vmatpush2.msra.mxu0 0.0
    %1379 = vmatprep.subr.mxu0 0.0
    %1380 = vmatpush2.msra.mxu0 0.0
    %1381 = vmatprep.subr.mxu0 0.0
    %1382 = vmatpush2.msra.mxu0 0.0
    %1383 = vmatprep.subr.mxu0 0.0
    %1384 = vmatpush2.msra.mxu0 0.0
    %1385 = vmatprep.mubr.f32.mxu0 0.0
    %1386 = vmatmul.mubr.f32.gmra.mxu0 %v1179
    %v1387 = vpop.f32.mrf.mxu0
    %v1388 = vadd.f32 %v617, %v1387
    %v1389 = vpop.f32.mrf.mxu0
    %1390 = vdwg.mxu0
    %v1391 = vadd.f32 %v189, %v1248
    %v1392 = vsub.f32 0.0, %v1391
    %v1393 = vmul.f32 %v1392, 1.442695
    %v1394 = vpow.pop %v1393
    %v1395 = vadd.f32 %v1394, 1.0
    %v1396 = vrcp.pop %v1395
    %v1397 = vmul.f32 1.0, %v1396
    %v1398 = vadd.f32 %v304, %v1318
    %v1399 = vsub.f32 0.0, %v1398
    %v1400 = vmul.f32 %v1399, 1.442695
    %v1401 = vpow.pop %v1400
    %v1402 = vadd.f32 %v1401, 1.0
    %v1403 = vrcp.pop %v1402
    %v1404 = vmul.f32 1.0, %v1403
    %v1405 = vmul.f32 %v1397, %v1388
    %v1406 = vadd.f32 %v419, %v1405
    %v1407 = vtanh.pop %v1406
    %v1408 = vsub.f32 1.0, %v1404
    %v1409 = vmul.f32 %v1408, %v1407
    %v1410 = vmul.f32 %v1404, %v1177
    %v1411 = vadd.f32 %v1409, %v1410
    %v1413 = vsel %vm469, %v1411, 0
    %1415 = vmatprep.subr.mxu0 0.0
    %1416 = vmatpush1.msra.mxu0 0.0
    %1417 = vmatprep.subr.mxu0 0.0
    %1418 = vmatpush1.msra.mxu0 0.0
    %1419 = vmatprep.subr.mxu0 0.0
    %1420 = vmatpush1.msra.mxu0 0.0
    %1421 = vmatprep.subr.mxu0 0.0
    %1422 = vmatpush1.msra.mxu0 0.0
    %1423 = vmatprep.subr.mxu0 0.0
    %1424 = vmatpush1.msra.mxu0 0.0
    %1425 = vmatprep.subr.mxu0 0.0
    %1426 = vmatpush1.msra.mxu0 0.0
    %1427 = vmatprep.subr.mxu0 0.0
    %1428 = vmatpush1.msra.mxu0 0.0
    %1429 = vmatprep.subr.mxu0 0.0
    %1430 = vmatpush1.msra.mxu0 0.0
    %1431 = vmatprep.subr.mxu0 0.0
    %1432 = vmatpush1.msra.mxu0 %v449
    %1433 = vmatprep.subr.mxu0 0.0
    %1434 = vmatpush1.msra.mxu0 %v448
    %1435 = vmatprep.subr.mxu0 0.0
    %1436 = vmatpush1.msra.mxu0 %v447
    %1437 = vmatprep.subr.mxu0 0.0
    %1438 = vmatpush1.msra.mxu0 %v446
    %1439 = vmatprep.subr.mxu0 0.0
    %1440 = vmatpush1.msra.mxu0 %v445
    %1441 = vmatprep.subr.mxu0 0.0
    %1442 = vmatpush1.msra.mxu0 %v444
    %1443 = vmatprep.subr.mxu0 0.0
    %1444 = vmatpush1.msra.mxu0 %v443
    %1445 = vmatprep.subr.mxu0 0.0
    %1446 = vmatpush1.msra.mxu0 %v442
    %1447 = vmatprep.subr.mxu0 0.0
    %1448 = vmatpush2.msra.mxu0 0.0
    %1449 = vmatprep.subr.mxu0 0.0
    %1450 = vmatpush2.msra.mxu0 0.0
    %1451 = vmatprep.subr.mxu0 0.0
    %1452 = vmatpush2.msra.mxu0 0.0
    %1453 = vmatprep.subr.mxu0 0.0
    %1454 = vmatpush2.msra.mxu0 0.0
    %1455 = vmatprep.subr.mxu0 0.0
    %1456 = vmatpush2.msra.mxu0 0.0
    %1457 = vmatprep.subr.mxu0 0.0
    %1458 = vmatpush2.msra.mxu0 0.0
    %1459 = vmatprep.subr.mxu0 0.0
    %1460 = vmatpush2.msra.mxu0 0.0
    %1461 = vmatprep.subr.mxu0 0.0
    %1462 = vmatpush2.msra.mxu0 0.0
    %1463 = vmatprep.subr.mxu0 0.0
    %1464 = vmatpush2.msra.mxu0 0.0
    %1465 = vmatprep.subr.mxu0 0.0
    %1466 = vmatpush2.msra.mxu0 0.0
    %1467 = vmatprep.subr.mxu0 0.0
    %1468 = vmatpush2.msra.mxu0 0.0
    %1469 = vmatprep.subr.mxu0 0.0
    %1470 = vmatpush2.msra.mxu0 0.0
    %1471 = vmatprep.subr.mxu0 0.0
    %1472 = vmatpush2.msra.mxu0 0.0
    %1473 = vmatprep.subr.mxu0 0.0
    %1474 = vmatpush2.msra.mxu0 0.0
    %1475 = vmatprep.subr.mxu0 0.0
    %1476 = vmatpush2.msra.mxu0 0.0
    %1477 = vmatprep.subr.mxu0 0.0
    %1478 = vmatpush2.msra.mxu0 0.0
    %1479 = vmatprep.mubr.f32.mxu0 0.0
    %1480 = vmatmul.mubr.f32.gmra.mxu0 %v1413
    %v1481 = vpop.f32.mrf.mxu0
    %v1482 = vadd.f32 0.0, %v1481
    %v1483 = vpop.f32.mrf.mxu0
    %1484 = vdwg.mxu0
    %1485 = vmatprep.subr.mxu0 0.0
    %1486 = vmatpush1.msra.mxu0 0.0
    %1487 = vmatprep.subr.mxu0 0.0
    %1488 = vmatpush1.msra.mxu0 0.0
    %1489 = vmatprep.subr.mxu0 0.0
    %1490 = vmatpush1.msra.mxu0 0.0
    %1491 = vmatprep.subr.mxu0 0.0
    %1492 = vmatpush1.msra.mxu0 0.0
    %1493 = vmatprep.subr.mxu0 0.0
    %1494 = vmatpush1.msra.mxu0 0.0
    %1495 = vmatprep.subr.mxu0 0.0
    %1496 = vmatpush1.msra.mxu0 0.0
    %1497 = vmatprep.subr.mxu0 0.0
    %1498 = vmatpush1.msra.mxu0 0.0
    %1499 = vmatprep.subr.mxu0 0.0
    %1500 = vmatpush1.msra.mxu0 0.0
    %1501 = vmatprep.subr.mxu0 0.0
    %1502 = vmatpush1.msra.mxu0 %v458
    %1503 = vmatprep.subr.mxu0 0.0
    %1504 = vmatpush1.msra.mxu0 %v457
    %1505 = vmatprep.subr.mxu0 0.0
    %1506 = vmatpush1.msra.mxu0 %v456
    %1507 = vmatprep.subr.mxu0 0.0
    %1508 = vmatpush1.msra.mxu0 %v455
    %1509 = vmatprep.subr.mxu0 0.0
    %1510 = vmatpush1.msra.mxu0 %v454
    %1511 = vmatprep.subr.mxu0 0.0
    %1512 = vmatpush1.msra.mxu0 %v453
    %1513 = vmatprep.subr.mxu0 0.0
    %1514 = vmatpush1.msra.mxu0 %v452
    %1515 = vmatprep.subr.mxu0 0.0
    %1516 = vmatpush1.msra.mxu0 %v451
    %1517 = vmatprep.subr.mxu0 0.0
    %1518 = vmatpush2.msra.mxu0 0.0
    %1519 = vmatprep.subr.mxu0 0.0
    %1520 = vmatpush2.msra.mxu0 0.0
    %1521 = vmatprep.subr.mxu0 0.0
    %1522 = vmatpush2.msra.mxu0 0.0
    %1523 = vmatprep.subr.mxu0 0.0
    %1524 = vmatpush2.msra.mxu0 0.0
    %1525 = vmatprep.subr.mxu0 0.0
    %1526 = vmatpush2.msra.mxu0 0.0
    %1527 = vmatprep.subr.mxu0 0.0
    %1528 = vmatpush2.msra.mxu0 0.0
    %1529 = vmatprep.subr.mxu0 0.0
    %1530 = vmatpush2.msra.mxu0 0.0
    %1531 = vmatprep.subr.mxu0 0.0
    %1532 = vmatpush2.msra.mxu0 0.0
    %1533 = vmatprep.subr.mxu0 0.0
    %1534 = vmatpush2.msra.mxu0 0.0
    %1535 = vmatprep.subr.mxu0 0.0
    %1536 = vmatpush2.msra.mxu0 0.0
    %1537 = vmatprep.subr.mxu0 0.0
    %1538 = vmatpush2.msra.mxu0 0.0
    %1539 = vmatprep.subr.mxu0 0.0
    %1540 = vmatpush2.msra.mxu0 0.0
    %1541 = vmatprep.subr.mxu0 0.0
    %1542 = vmatpush2.msra.mxu0 0.0
    %1543 = vmatprep.subr.mxu0 0.0
    %1544 = vmatpush2.msra.mxu0 0.0
    %1545 = vmatprep.subr.mxu0 0.0
    %1546 = vmatpush2.msra.mxu0 0.0
    %1547 = vmatprep.subr.mxu0 0.0
    %1548 = vmatpush2.msra.mxu0 0.0
    %1549 = vmatprep.mubr.f32.mxu0 0.0
    %1550 = vmatmul.mubr.f32.gmra.mxu0 %v1413
    %v1551 = vpop.f32.mrf.mxu0
    %v1552 = vadd.f32 0.0, %v1551
    %v1553 = vpop.f32.mrf.mxu0
    %1554 = vdwg.mxu0
    %1555 = vmatprep.subr.mxu0 0.0
    %1556 = vmatpush1.msra.mxu0 0.0
    %1557 = vmatprep.subr.mxu0 0.0
    %1558 = vmatpush1.msra.mxu0 0.0
    %1559 = vmatprep.subr.mxu0 0.0
    %1560 = vmatpush1.msra.mxu0 0.0
    %1561 = vmatprep.subr.mxu0 0.0
    %1562 = vmatpush1.msra.mxu0 0.0
    %1563 = vmatprep.subr.mxu0 0.0
    %1564 = vmatpush1.msra.mxu0 0.0
    %1565 = vmatprep.subr.mxu0 0.0
    %1566 = vmatpush1.msra.mxu0 0.0
    %1567 = vmatprep.subr.mxu0 0.0
    %1568 = vmatpush1.msra.mxu0 0.0
    %1569 = vmatprep.subr.mxu0 0.0
    %1570 = vmatpush1.msra.mxu0 0.0
    %1571 = vmatprep.subr.mxu0 0.0
    %1572 = vmatpush1.msra.mxu0 %v467
    %1573 = vmatprep.subr.mxu0 0.0
    %1574 = vmatpush1.msra.mxu0 %v466
    %1575 = vmatprep.subr.mxu0 0.0
    %1576 = vmatpush1.msra.mxu0 %v465
    %1577 = vmatprep.subr.mxu0 0.0
    %1578 = vmatpush1.msra.mxu0 %v464
    %1579 = vmatprep.subr.mxu0 0.0
    %1580 = vmatpush1.msra.mxu0 %v463
    %1581 = vmatprep.subr.mxu0 0.0
    %1582 = vmatpush1.msra.mxu0 %v462
    %1583 = vmatprep.subr.mxu0 0.0
    %1584 = vmatpush1.msra.mxu0 %v461
    %1585 = vmatprep.subr.mxu0 0.0
    %1586 = vmatpush1.msra.mxu0 %v460
    %1587 = vmatprep.subr.mxu0 0.0
    %1588 = vmatpush2.msra.mxu0 0.0
    %1589 = vmatprep.subr.mxu0 0.0
    %1590 = vmatpush2.msra.mxu0 0.0
    %1591 = vmatprep.subr.mxu0 0.0
    %1592 = vmatpush2.msra.mxu0 0.0
    %1593 = vmatprep.subr.mxu0 0.0
    %1594 = vmatpush2.msra.mxu0 0.0
    %1595 = vmatprep.subr.mxu0 0.0
    %1596 = vmatpush2.msra.mxu0 0.0
    %1597 = vmatprep.subr.mxu0 0.0
    %1598 = vmatpush2.msra.mxu0 0.0
    %1599 = vmatprep.subr.mxu0 0.0
    %1600 = vmatpush2.msra.mxu0 0.0
    %1601 = vmatprep.subr.mxu0 0.0
    %1602 = vmatpush2.msra.mxu0 0.0
    %1603 = vmatprep.subr.mxu0 0.0
    %1604 = vmatpush2.msra.mxu0 0.0
    %1605 = vmatprep.subr.mxu0 0.0
    %1606 = vmatpush2.msra.mxu0 0.0
    %1607 = vmatprep.subr.mxu0 0.0
    %1608 = vmatpush2.msra.mxu0 0.0
    %1609 = vmatprep.subr.mxu0 0.0
    %1610 = vmatpush2.msra.mxu0 0.0
    %1611 = vmatprep.subr.mxu0 0.0
    %1612 = vmatpush2.msra.mxu0 0.0
    %1613 = vmatprep.subr.mxu0 0.0
    %1614 = vmatpush2.msra.mxu0 0.0
    %1615 = vmatprep.subr.mxu0 0.0
    %1616 = vmatpush2.msra.mxu0 0.0
    %1617 = vmatprep.subr.mxu0 0.0
    %1618 = vmatpush2.msra.mxu0 0.0
    %1619 = vmatprep.mubr.f32.mxu0 0.0
    %1620 = vmatmul.mubr.f32.gmra.mxu0 %v1413
    %v1621 = vpop.f32.mrf.mxu0
    %v1622 = vadd.f32 %v617, %v1621
    %v1623 = vpop.f32.mrf.mxu0
    %1624 = vdwg.mxu0
    %v1625 = vadd.f32 %v194, %v1482
    %v1626 = vsub.f32 0.0, %v1625
    %v1627 = vmul.f32 %v1626, 1.442695
    %v1628 = vpow.pop %v1627
    %v1629 = vadd.f32 %v1628, 1.0
    %v1630 = vrcp.pop %v1629
    %v1631 = vmul.f32 1.0, %v1630
    %v1632 = vadd.f32 %v309, %v1552
    %v1633 = vsub.f32 0.0, %v1632
    %v1634 = vmul.f32 %v1633, 1.442695
    %v1635 = vpow.pop %v1634
    %v1636 = vadd.f32 %v1635, 1.0
    %v1637 = vrcp.pop %v1636
    %v1638 = vmul.f32 1.0, %v1637
    %v1639 = vmul.f32 %v1631, %v1622
    %v1640 = vadd.f32 %v424, %v1639
    %v1641 = vtanh.pop %v1640
    %v1642 = vsub.f32 1.0, %v1638
    %v1643 = vmul.f32 %v1642, %v1641
    %v1644 = vmul.f32 %v1638, %v1411
    %v1645 = vadd.f32 %v1643, %v1644
    %v1647 = vsel %vm469, %v1645, 0
    %1649 = vmatprep.subr.mxu0 0.0
    %1650 = vmatpush1.msra.mxu0 0.0
    %1651 = vmatprep.subr.mxu0 0.0
    %1652 = vmatpush1.msra.mxu0 0.0
    %1653 = vmatprep.subr.mxu0 0.0
    %1654 = vmatpush1.msra.mxu0 0.0
    %1655 = vmatprep.subr.mxu0 0.0
    %1656 = vmatpush1.msra.mxu0 0.0
    %1657 = vmatprep.subr.mxu0 0.0
    %1658 = vmatpush1.msra.mxu0 0.0
    %1659 = vmatprep.subr.mxu0 0.0
    %1660 = vmatpush1.msra.mxu0 0.0
    %1661 = vmatprep.subr.mxu0 0.0
    %1662 = vmatpush1.msra.mxu0 0.0
    %1663 = vmatprep.subr.mxu0 0.0
    %1664 = vmatpush1.msra.mxu0 0.0
    %1665 = vmatprep.subr.mxu0 0.0
    %1666 = vmatpush1.msra.mxu0 %v449
    %1667 = vmatprep.subr.mxu0 0.0
    %1668 = vmatpush1.msra.mxu0 %v448
    %1669 = vmatprep.subr.mxu0 0.0
    %1670 = vmatpush1.msra.mxu0 %v447
    %1671 = vmatprep.subr.mxu0 0.0
    %1672 = vmatpush1.msra.mxu0 %v446
    %1673 = vmatprep.subr.mxu0 0.0
    %1674 = vmatpush1.msra.mxu0 %v445
    %1675 = vmatprep.subr.mxu0 0.0
    %1676 = vmatpush1.msra.mxu0 %v444
    %1677 = vmatprep.subr.mxu0 0.0
    %1678 = vmatpush1.msra.mxu0 %v443
    %1679 = vmatprep.subr.mxu0 0.0
    %1680 = vmatpush1.msra.mxu0 %v442
    %1681 = vmatprep.subr.mxu0 0.0
    %1682 = vmatpush2.msra.mxu0 0.0
    %1683 = vmatprep.subr.mxu0 0.0
    %1684 = vmatpush2.msra.mxu0 0.0
    %1685 = vmatprep.subr.mxu0 0.0
    %1686 = vmatpush2.msra.mxu0 0.0
    %1687 = vmatprep.subr.mxu0 0.0
    %1688 = vmatpush2.msra.mxu0 0.0
    %1689 = vmatprep.subr.mxu0 0.0
    %1690 = vmatpush2.msra.mxu0 0.0
    %1691 = vmatprep.subr.mxu0 0.0
    %1692 = vmatpush2.msra.mxu0 0.0
    %1693 = vmatprep.subr.mxu0 0.0
    %1694 = vmatpush2.msra.mxu0 0.0
    %1695 = vmatprep.subr.mxu0 0.0
    %1696 = vmatpush2.msra.mxu0 0.0
    %1697 = vmatprep.subr.mxu0 0.0
    %1698 = vmatpush2.msra.mxu0 0.0
    %1699 = vmatprep.subr.mxu0 0.0
    %1700 = vmatpush2.msra.mxu0 0.0
    %1701 = vmatprep.subr.mxu0 0.0
    %1702 = vmatpush2.msra.mxu0 0.0
    %1703 = vmatprep.subr.mxu0 0.0
    %1704 = vmatpush2.msra.mxu0 0.0
    %1705 = vmatprep.subr.mxu0 0.0
    %1706 = vmatpush2.msra.mxu0 0.0
    %1707 = vmatprep.subr.mxu0 0.0
    %1708 = vmatpush2.msra.mxu0 0.0
    %1709 = vmatprep.subr.mxu0 0.0
    %1710 = vmatpush2.msra.mxu0 0.0
    %1711 = vmatprep.subr.mxu0 0.0
    %1712 = vmatpush2.msra.mxu0 0.0
    %1713 = vmatprep.mubr.f32.mxu0 0.0
    %1714 = vmatmul.mubr.f32.gmra.mxu0 %v1647
    %v1715 = vpop.f32.mrf.mxu0
    %v1716 = vadd.f32 0.0, %v1715
    %v1717 = vpop.f32.mrf.mxu0
    %1718 = vdwg.mxu0
    %1719 = vmatprep.subr.mxu0 0.0
    %1720 = vmatpush1.msra.mxu0 0.0
    %1721 = vmatprep.subr.mxu0 0.0
    %1722 = vmatpush1.msra.mxu0 0.0
    %1723 = vmatprep.subr.mxu0 0.0
    %1724 = vmatpush1.msra.mxu0 0.0
    %1725 = vmatprep.subr.mxu0 0.0
    %1726 = vmatpush1.msra.mxu0 0.0
    %1727 = vmatprep.subr.mxu0 0.0
    %1728 = vmatpush1.msra.mxu0 0.0
    %1729 = vmatprep.subr.mxu0 0.0
    %1730 = vmatpush1.msra.mxu0 0.0
    %1731 = vmatprep.subr.mxu0 0.0
    %1732 = vmatpush1.msra.mxu0 0.0
    %1733 = vmatprep.subr.mxu0 0.0
    %1734 = vmatpush1.msra.mxu0 0.0
    %1735 = vmatprep.subr.mxu0 0.0
    %1736 = vmatpush1.msra.mxu0 %v458
    %1737 = vmatprep.subr.mxu0 0.0
    %1738 = vmatpush1.msra.mxu0 %v457
    %1739 = vmatprep.subr.mxu0 0.0
    %1740 = vmatpush1.msra.mxu0 %v456
    %1741 = vmatprep.subr.mxu0 0.0
    %1742 = vmatpush1.msra.mxu0 %v455
    %1743 = vmatprep.subr.mxu0 0.0
    %1744 = vmatpush1.msra.mxu0 %v454
    %1745 = vmatprep.subr.mxu0 0.0
    %1746 = vmatpush1.msra.mxu0 %v453
    %1747 = vmatprep.subr.mxu0 0.0
    %1748 = vmatpush1.msra.mxu0 %v452
    %1749 = vmatprep.subr.mxu0 0.0
    %1750 = vmatpush1.msra.mxu0 %v451
    %1751 = vmatprep.subr.mxu0 0.0
    %1752 = vmatpush2.msra.mxu0 0.0
    %1753 = vmatprep.subr.mxu0 0.0
    %1754 = vmatpush2.msra.mxu0 0.0
    %1755 = vmatprep.subr.mxu0 0.0
    %1756 = vmatpush2.msra.mxu0 0.0
    %1757 = vmatprep.subr.mxu0 0.0
    %1758 = vmatpush2.msra.mxu0 0.0
    %1759 = vmatprep.subr.mxu0 0.0
    %1760 = vmatpush2.msra.mxu0 0.0
    %1761 = vmatprep.subr.mxu0 0.0
    %1762 = vmatpush2.msra.mxu0 0.0
    %1763 = vmatprep.subr.mxu0 0.0
    %1764 = vmatpush2.msra.mxu0 0.0
    %1765 = vmatprep.subr.mxu0 0.0
    %1766 = vmatpush2.msra.mxu0 0.0
    %1767 = vmatprep.subr.mxu0 0.0
    %1768 = vmatpush2.msra.mxu0 0.0
    %1769 = vmatprep.subr.mxu0 0.0
    %1770 = vmatpush2.msra.mxu0 0.0
    %1771 = vmatprep.subr.mxu0 0.0
    %1772 = vmatpush2.msra.mxu0 0.0
    %1773 = vmatprep.subr.mxu0 0.0
    %1774 = vmatpush2.msra.mxu0 0.0
    %1775 = vmatprep.subr.mxu0 0.0
    %1776 = vmatpush2.msra.mxu0 0.0
    %1777 = vmatprep.subr.mxu0 0.0
    %1778 = vmatpush2.msra.mxu0 0.0
    %1779 = vmatprep.subr.mxu0 0.0
    %1780 = vmatpush2.msra.mxu0 0.0
    %1781 = vmatprep.subr.mxu0 0.0
    %1782 = vmatpush2.msra.mxu0 0.0
    %1783 = vmatprep.mubr.f32.mxu0 0.0
    %1784 = vmatmul.mubr.f32.gmra.mxu0 %v1647
    %v1785 = vpop.f32.mrf.mxu0
    %v1786 = vadd.f32 0.0, %v1785
    %v1787 = vpop.f32.mrf.mxu0
    %1788 = vdwg.mxu0
    %1789 = vmatprep.subr.mxu0 0.0
    %1790 = vmatpush1.msra.mxu0 0.0
    %1791 = vmatprep.subr.mxu0 0.0
    %1792 = vmatpush1.msra.mxu0 0.0
    %1793 = vmatprep.subr.mxu0 0.0
    %1794 = vmatpush1.msra.mxu0 0.0
    %1795 = vmatprep.subr.mxu0 0.0
    %1796 = vmatpush1.msra.mxu0 0.0
    %1797 = vmatprep.subr.mxu0 0.0
    %1798 = vmatpush1.msra.mxu0 0.0
    %1799 = vmatprep.subr.mxu0 0.0
    %1800 = vmatpush1.msra.mxu0 0.0
    %1801 = vmatprep.subr.mxu0 0.0
    %1802 = vmatpush1.msra.mxu0 0.0
    %1803 = vmatprep.subr.mxu0 0.0
    %1804 = vmatpush1.msra.mxu0 0.0
    %1805 = vmatprep.subr.mxu0 0.0
    %1806 = vmatpush1.msra.mxu0 %v467
    %1807 = vmatprep.subr.mxu0 0.0
    %1808 = vmatpush1.msra.mxu0 %v466
    %1809 = vmatprep.subr.mxu0 0.0
    %1810 = vmatpush1.msra.mxu0 %v465
    %1811 = vmatprep.subr.mxu0 0.0
    %1812 = vmatpush1.msra.mxu0 %v464
    %1813 = vmatprep.subr.mxu0 0.0
    %1814 = vmatpush1.msra.mxu0 %v463
    %1815 = vmatprep.subr.mxu0 0.0
    %1816 = vmatpush1.msra.mxu0 %v462
    %1817 = vmatprep.subr.mxu0 0.0
    %1818 = vmatpush1.msra.mxu0 %v461
    %1819 = vmatprep.subr.mxu0 0.0
    %1820 = vmatpush1.msra.mxu0 %v460
    %1821 = vmatprep.subr.mxu0 0.0
    %1822 = vmatpush2.msra.mxu0 0.0
    %1823 = vmatprep.subr.mxu0 0.0
    %1824 = vmatpush2.msra.mxu0 0.0
    %1825 = vmatprep.subr.mxu0 0.0
    %1826 = vmatpush2.msra.mxu0 0.0
    %1827 = vmatprep.subr.mxu0 0.0
    %1828 = vmatpush2.msra.mxu0 0.0
    %1829 = vmatprep.subr.mxu0 0.0
    %1830 = vmatpush2.msra.mxu0 0.0
    %1831 = vmatprep.subr.mxu0 0.0
    %1832 = vmatpush2.msra.mxu0 0.0
    %1833 = vmatprep.subr.mxu0 0.0
    %1834 = vmatpush2.msra.mxu0 0.0
    %1835 = vmatprep.subr.mxu0 0.0
    %1836 = vmatpush2.msra.mxu0 0.0
    %1837 = vmatprep.subr.mxu0 0.0
    %1838 = vmatpush2.msra.mxu0 0.0
    %1839 = vmatprep.subr.mxu0 0.0
    %1840 = vmatpush2.msra.mxu0 0.0
    %1841 = vmatprep.subr.mxu0 0.0
    %1842 = vmatpush2.msra.mxu0 0.0
    %1843 = vmatprep.subr.mxu0 0.0
    %1844 = vmatpush2.msra.mxu0 0.0
    %1845 = vmatprep.subr.mxu0 0.0
    %1846 = vmatpush2.msra.mxu0 0.0
    %1847 = vmatprep.subr.mxu0 0.0
    %1848 = vmatpush2.msra.mxu0 0.0
    %1849 = vmatprep.subr.mxu0 0.0
    %1850 = vmatpush2.msra.mxu0 0.0
    %1851 = vmatprep.subr.mxu0 0.0
    %1852 = vmatpush2.msra.mxu0 0.0
    %1853 = vmatprep.mubr.f32.mxu0 0.0
    %1854 = vmatmul.mubr.f32.gmra.mxu0 %v1647
    %v1855 = vpop.f32.mrf.mxu0
    %v1856 = vadd.f32 %v617, %v1855
    %v1857 = vpop.f32.mrf.mxu0
    %1858 = vdwg.mxu0
    %v1859 = vadd.f32 %v199, %v1716
    %v1860 = vsub.f32 0.0, %v1859
    %v1861 = vmul.f32 %v1860, 1.442695
    %v1862 = vpow.pop %v1861
    %v1863 = vadd.f32 %v1862, 1.0
    %v1864 = vrcp.pop %v1863
    %v1865 = vmul.f32 1.0, %v1864
    %v1866 = vadd.f32 %v314, %v1786
    %v1867 = vsub.f32 0.0, %v1866
    %v1868 = vmul.f32 %v1867, 1.442695
    %v1869 = vpow.pop %v1868
    %v1870 = vadd.f32 %v1869, 1.0
    %v1871 = vrcp.pop %v1870
    %v1872 = vmul.f32 1.0, %v1871
    %v1873 = vmul.f32 %v1865, %v1856
    %v1874 = vadd.f32 %v429, %v1873
    %v1875 = vtanh.pop %v1874
    %v1876 = vsub.f32 1.0, %v1872
    %v1877 = vmul.f32 %v1876, %v1875
    %v1878 = vmul.f32 %v1872, %v1645
    %v1879 = vadd.f32 %v1877, %v1878
    %v1881 = vsel %vm469, %v1879, 0
    %1883 = vmatprep.subr.mxu0 0.0
    %1884 = vmatpush1.msra.mxu0 0.0
    %1885 = vmatprep.subr.mxu0 0.0
    %1886 = vmatpush1.msra.mxu0 0.0
    %1887 = vmatprep.subr.mxu0 0.0
    %1888 = vmatpush1.msra.mxu0 0.0
    %1889 = vmatprep.subr.mxu0 0.0
    %1890 = vmatpush1.msra.mxu0 0.0
    %1891 = vmatprep.subr.mxu0 0.0
    %1892 = vmatpush1.msra.mxu0 0.0
    %1893 = vmatprep.subr.mxu0 0.0
    %1894 = vmatpush1.msra.mxu0 0.0
    %1895 = vmatprep.subr.mxu0 0.0
    %1896 = vmatpush1.msra.mxu0 0.0
    %1897 = vmatprep.subr.mxu0 0.0
    %1898 = vmatpush1.msra.mxu0 0.0
    %1899 = vmatprep.subr.mxu0 0.0
    %1900 = vmatpush1.msra.mxu0 %v449
    %1901 = vmatprep.subr.mxu0 0.0
    %1902 = vmatpush1.msra.mxu0 %v448
    %1903 = vmatprep.subr.mxu0 0.0
    %1904 = vmatpush1.msra.mxu0 %v447
    %1905 = vmatprep.subr.mxu0 0.0
    %1906 = vmatpush1.msra.mxu0 %v446
    %1907 = vmatprep.subr.mxu0 0.0
    %1908 = vmatpush1.msra.mxu0 %v445
    %1909 = vmatprep.subr.mxu0 0.0
    %1910 = vmatpush1.msra.mxu0 %v444
    %1911 = vmatprep.subr.mxu0 0.0
    %1912 = vmatpush1.msra.mxu0 %v443
    %1913 = vmatprep.subr.mxu0 0.0
    %1914 = vmatpush1.msra.mxu0 %v442
    %1915 = vmatprep.subr.mxu0 0.0
    %1916 = vmatpush2.msra.mxu0 0.0
    %1917 = vmatprep.subr.mxu0 0.0
    %1918 = vmatpush2.msra.mxu0 0.0
    %1919 = vmatprep.subr.mxu0 0.0
    %1920 = vmatpush2.msra.mxu0 0.0
    %1921 = vmatprep.subr.mxu0 0.0
    %1922 = vmatpush2.msra.mxu0 0.0
    %1923 = vmatprep.subr.mxu0 0.0
    %1924 = vmatpush2.msra.mxu0 0.0
    %1925 = vmatprep.subr.mxu0 0.0
    %1926 = vmatpush2.msra.mxu0 0.0
    %1927 = vmatprep.subr.mxu0 0.0
    %1928 = vmatpush2.msra.mxu0 0.0
    %1929 = vmatprep.subr.mxu0 0.0
    %1930 = vmatpush2.msra.mxu0 0.0
    %1931 = vmatprep.subr.mxu0 0.0
    %1932 = vmatpush2.msra.mxu0 0.0
    %1933 = vmatprep.subr.mxu0 0.0
    %1934 = vmatpush2.msra.mxu0 0.0
    %1935 = vmatprep.subr.mxu0 0.0
    %1936 = vmatpush2.msra.mxu0 0.0
    %1937 = vmatprep.subr.mxu0 0.0
    %1938 = vmatpush2.msra.mxu0 0.0
    %1939 = vmatprep.subr.mxu0 0.0
    %1940 = vmatpush2.msra.mxu0 0.0
    %1941 = vmatprep.subr.mxu0 0.0
    %1942 = vmatpush2.msra.mxu0 0.0
    %1943 = vmatprep.subr.mxu0 0.0
    %1944 = vmatpush2.msra.mxu0 0.0
    %1945 = vmatprep.subr.mxu0 0.0
    %1946 = vmatpush2.msra.mxu0 0.0
    %1947 = vmatprep.mubr.f32.mxu0 0.0
    %1948 = vmatmul.mubr.f32.gmra.mxu0 %v1881
    %v1949 = vpop.f32.mrf.mxu0
    %v1950 = vadd.f32 0.0, %v1949
    %v1951 = vpop.f32.mrf.mxu0
    %1952 = vdwg.mxu0
    %1953 = vmatprep.subr.mxu0 0.0
    %1954 = vmatpush1.msra.mxu0 0.0
    %1955 = vmatprep.subr.mxu0 0.0
    %1956 = vmatpush1.msra.mxu0 0.0
    %1957 = vmatprep.subr.mxu0 0.0
    %1958 = vmatpush1.msra.mxu0 0.0
    %1959 = vmatprep.subr.mxu0 0.0
    %1960 = vmatpush1.msra.mxu0 0.0
    %1961 = vmatprep.subr.mxu0 0.0
    %1962 = vmatpush1.msra.mxu0 0.0
    %1963 = vmatprep.subr.mxu0 0.0
    %1964 = vmatpush1.msra.mxu0 0.0
    %1965 = vmatprep.subr.mxu0 0.0
    %1966 = vmatpush1.msra.mxu0 0.0
    %1967 = vmatprep.subr.mxu0 0.0
    %1968 = vmatpush1.msra.mxu0 0.0
    %1969 = vmatprep.subr.mxu0 0.0
    %1970 = vmatpush1.msra.mxu0 %v458
    %1971 = vmatprep.subr.mxu0 0.0
    %1972 = vmatpush1.msra.mxu0 %v457
    %1973 = vmatprep.subr.mxu0 0.0
    %1974 = vmatpush1.msra.mxu0 %v456
    %1975 = vmatprep.subr.mxu0 0.0
    %1976 = vmatpush1.msra.mxu0 %v455
    %1977 = vmatprep.subr.mxu0 0.0
    %1978 = vmatpush1.msra.mxu0 %v454
    %1979 = vmatprep.subr.mxu0 0.0
    %1980 = vmatpush1.msra.mxu0 %v453
    %1981 = vmatprep.subr.mxu0 0.0
    %1982 = vmatpush1.msra.mxu0 %v452
    %1983 = vmatprep.subr.mxu0 0.0
    %1984 = vmatpush1.msra.mxu0 %v451
    %1985 = vmatprep.subr.mxu0 0.0
    %1986 = vmatpush2.msra.mxu0 0.0
    %1987 = vmatprep.subr.mxu0 0.0
    %1988 = vmatpush2.msra.mxu0 0.0
    %1989 = vmatprep.subr.mxu0 0.0
    %1990 = vmatpush2.msra.mxu0 0.0
    %1991 = vmatprep.subr.mxu0 0.0
    %1992 = vmatpush2.msra.mxu0 0.0
    %1993 = vmatprep.subr.mxu0 0.0
    %1994 = vmatpush2.msra.mxu0 0.0
    %1995 = vmatprep.subr.mxu0 0.0
    %1996 = vmatpush2.msra.mxu0 0.0
    %1997 = vmatprep.subr.mxu0 0.0
    %1998 = vmatpush2.msra.mxu0 0.0
    %1999 = vmatprep.subr.mxu0 0.0
    %2000 = vmatpush2.msra.mxu0 0.0
    %2001 = vmatprep.subr.mxu0 0.0
    %2002 = vmatpush2.msra.mxu0 0.0
    %2003 = vmatprep.subr.mxu0 0.0
    %2004 = vmatpush2.msra.mxu0 0.0
    %2005 = vmatprep.subr.mxu0 0.0
    %2006 = vmatpush2.msra.mxu0 0.0
    %2007 = vmatprep.subr.mxu0 0.0
    %2008 = vmatpush2.msra.mxu0 0.0
    %2009 = vmatprep.subr.mxu0 0.0
    %2010 = vmatpush2.msra.mxu0 0.0
    %2011 = vmatprep.subr.mxu0 0.0
    %2012 = vmatpush2.msra.mxu0 0.0
    %2013 = vmatprep.subr.mxu0 0.0
    %2014 = vmatpush2.msra.mxu0 0.0
    %2015 = vmatprep.subr.mxu0 0.0
    %2016 = vmatpush2.msra.mxu0 0.0
    %2017 = vmatprep.mubr.f32.mxu0 0.0
    %2018 = vmatmul.mubr.f32.gmra.mxu0 %v1881
    %v2019 = vpop.f32.mrf.mxu0
    %v2020 = vadd.f32 0.0, %v2019
    %v2021 = vpop.f32.mrf.mxu0
    %2022 = vdwg.mxu0
    %2023 = vmatprep.subr.mxu0 0.0
    %2024 = vmatpush1.msra.mxu0 0.0
    %2025 = vmatprep.subr.mxu0 0.0
    %2026 = vmatpush1.msra.mxu0 0.0
    %2027 = vmatprep.subr.mxu0 0.0
    %2028 = vmatpush1.msra.mxu0 0.0
    %2029 = vmatprep.subr.mxu0 0.0
    %2030 = vmatpush1.msra.mxu0 0.0
    %2031 = vmatprep.subr.mxu0 0.0
    %2032 = vmatpush1.msra.mxu0 0.0
    %2033 = vmatprep.subr.mxu0 0.0
    %2034 = vmatpush1.msra.mxu0 0.0
    %2035 = vmatprep.subr.mxu0 0.0
    %2036 = vmatpush1.msra.mxu0 0.0
    %2037 = vmatprep.subr.mxu0 0.0
    %2038 = vmatpush1.msra.mxu0 0.0
    %2039 = vmatprep.subr.mxu0 0.0
    %2040 = vmatpush1.msra.mxu0 %v467
    %2041 = vmatprep.subr.mxu0 0.0
    %2042 = vmatpush1.msra.mxu0 %v466
    %2043 = vmatprep.subr.mxu0 0.0
    %2044 = vmatpush1.msra.mxu0 %v465
    %2045 = vmatprep.subr.mxu0 0.0
    %2046 = vmatpush1.msra.mxu0 %v464
    %2047 = vmatprep.subr.mxu0 0.0
    %2048 = vmatpush1.msra.mxu0 %v463
    %2049 = vmatprep.subr.mxu0 0.0
    %2050 = vmatpush1.msra.mxu0 %v462
    %2051 = vmatprep.subr.mxu0 0.0
    %2052 = vmatpush1.msra.mxu0 %v461
    %2053 = vmatprep.subr.mxu0 0.0
    %2054 = vmatpush1.msra.mxu0 %v460
    %2055 = vmatprep.subr.mxu0 0.0
    %2056 = vmatpush2.msra.mxu0 0.0
    %2057 = vmatprep.subr.mxu0 0.0
    %2058 = vmatpush2.msra.mxu0 0.0
    %2059 = vmatprep.subr.mxu0 0.0
    %2060 = vmatpush2.msra.mxu0 0.0
    %2061 = vmatprep.subr.mxu0 0.0
    %2062 = vmatpush2.msra.mxu0 0.0
    %2063 = vmatprep.subr.mxu0 0.0
    %2064 = vmatpush2.msra.mxu0 0.0
    %2065 = vmatprep.subr.mxu0 0.0
    %2066 = vmatpush2.msra.mxu0 0.0
    %2067 = vmatprep.subr.mxu0 0.0
    %2068 = vmatpush2.msra.mxu0 0.0
    %2069 = vmatprep.subr.mxu0 0.0
    %2070 = vmatpush2.msra.mxu0 0.0
    %2071 = vmatprep.subr.mxu0 0.0
    %2072 = vmatpush2.msra.mxu0 0.0
    %2073 = vmatprep.subr.mxu0 0.0
    %2074 = vmatpush2.msra.mxu0 0.0
    %2075 = vmatprep.subr.mxu0 0.0
    %2076 = vmatpush2.msra.mxu0 0.0
    %2077 = vmatprep.subr.mxu0 0.0
    %2078 = vmatpush2.msra.mxu0 0.0
    %2079 = vmatprep.subr.mxu0 0.0
    %2080 = vmatpush2.msra.mxu0 0.0
    %2081 = vmatprep.subr.mxu0 0.0
    %2082 = vmatpush2.msra.mxu0 0.0
    %2083 = vmatprep.subr.mxu0 0.0
    %2084 = vmatpush2.msra.mxu0 0.0
    %2085 = vmatprep.subr.mxu0 0.0
    %2086 = vmatpush2.msra.mxu0 0.0
    %2087 = vmatprep.mubr.f32.mxu0 0.0
    %2088 = vmatmul.mubr.f32.gmra.mxu0 %v1881
    %v2089 = vpop.f32.mrf.mxu0
    %v2090 = vadd.f32 %v617, %v2089
    %v2091 = vpop.f32.mrf.mxu0
    %2092 = vdwg.mxu0
    %v2093 = vadd.f32 %v204, %v1950
    %v2094 = vsub.f32 0.0, %v2093
    %v2095 = vmul.f32 %v2094, 1.442695
    %v2096 = vpow.pop %v2095
    %v2097 = vadd.f32 %v2096, 1.0
    %v2098 = vrcp.pop %v2097
    %v2099 = vmul.f32 1.0, %v2098
    %v2100 = vadd.f32 %v319, %v2020
    %v2101 = vsub.f32 0.0, %v2100
    %v2102 = vmul.f32 %v2101, 1.442695
    %v2103 = vpow.pop %v2102
    %v2104 = vadd.f32 %v2103, 1.0
    %v2105 = vrcp.pop %v2104
    %v2106 = vmul.f32 1.0, %v2105
    %v2107 = vmul.f32 %v2099, %v2090
    %v2108 = vadd.f32 %v434, %v2107
    %v2109 = vtanh.pop %v2108
    %v2110 = vsub.f32 1.0, %v2106
    %v2111 = vmul.f32 %v2110, %v2109
    %v2112 = vmul.f32 %v2106, %v1879
    %v2113 = vadd.f32 %v2111, %v2112
    %v2115 = vsel %vm469, %v2113, 0
    %2117 = vmatprep.subr.mxu0 0.0
    %2118 = vmatpush1.msra.mxu0 0.0
    %2119 = vmatprep.subr.mxu0 0.0
    %2120 = vmatpush1.msra.mxu0 0.0
    %2121 = vmatprep.subr.mxu0 0.0
    %2122 = vmatpush1.msra.mxu0 0.0
    %2123 = vmatprep.subr.mxu0 0.0
    %2124 = vmatpush1.msra.mxu0 0.0
    %2125 = vmatprep.subr.mxu0 0.0
    %2126 = vmatpush1.msra.mxu0 0.0
    %2127 = vmatprep.subr.mxu0 0.0
    %2128 = vmatpush1.msra.mxu0 0.0
    %2129 = vmatprep.subr.mxu0 0.0
    %2130 = vmatpush1.msra.mxu0 0.0
    %2131 = vmatprep.subr.mxu0 0.0
    %2132 = vmatpush1.msra.mxu0 0.0
    %2133 = vmatprep.subr.mxu0 0.0
    %2134 = vmatpush1.msra.mxu0 %v449
    %2135 = vmatprep.subr.mxu0 0.0
    %2136 = vmatpush1.msra.mxu0 %v448
    %2137 = vmatprep.subr.mxu0 0.0
    %2138 = vmatpush1.msra.mxu0 %v447
    %2139 = vmatprep.subr.mxu0 0.0
    %2140 = vmatpush1.msra.mxu0 %v446
    %2141 = vmatprep.subr.mxu0 0.0
    %2142 = vmatpush1.msra.mxu0 %v445
    %2143 = vmatprep.subr.mxu0 0.0
    %2144 = vmatpush1.msra.mxu0 %v444
    %2145 = vmatprep.subr.mxu0 0.0
    %2146 = vmatpush1.msra.mxu0 %v443
    %2147 = vmatprep.subr.mxu0 0.0
    %2148 = vmatpush1.msra.mxu0 %v442
    %2149 = vmatprep.subr.mxu0 0.0
    %2150 = vmatpush2.msra.mxu0 0.0
    %2151 = vmatprep.subr.mxu0 0.0
    %2152 = vmatpush2.msra.mxu0 0.0
    %2153 = vmatprep.subr.mxu0 0.0
    %2154 = vmatpush2.msra.mxu0 0.0
    %2155 = vmatprep.subr.mxu0 0.0
    %2156 = vmatpush2.msra.mxu0 0.0
    %2157 = vmatprep.subr.mxu0 0.0
    %2158 = vmatpush2.msra.mxu0 0.0
    %2159 = vmatprep.subr.mxu0 0.0
    %2160 = vmatpush2.msra.mxu0 0.0
    %2161 = vmatprep.subr.mxu0 0.0
    %2162 = vmatpush2.msra.mxu0 0.0
    %2163 = vmatprep.subr.mxu0 0.0
    %2164 = vmatpush2.msra.mxu0 0.0
    %2165 = vmatprep.subr.mxu0 0.0
    %2166 = vmatpush2.msra.mxu0 0.0
    %2167 = vmatprep.subr.mxu0 0.0
    %2168 = vmatpush2.msra.mxu0 0.0
    %2169 = vmatprep.subr.mxu0 0.0
    %2170 = vmatpush2.msra.mxu0 0.0
    %2171 = vmatprep.subr.mxu0 0.0
    %2172 = vmatpush2.msra.mxu0 0.0
    %2173 = vmatprep.subr.mxu0 0.0
    %2174 = vmatpush2.msra.mxu0 0.0
    %2175 = vmatprep.subr.mxu0 0.0
    %2176 = vmatpush2.msra.mxu0 0.0
    %2177 = vmatprep.subr.mxu0 0.0
    %2178 = vmatpush2.msra.mxu0 0.0
    %2179 = vmatprep.subr.mxu0 0.0
    %2180 = vmatpush2.msra.mxu0 0.0
    %2181 = vmatprep.mubr.f32.mxu0 0.0
    %2182 = vmatmul.mubr.f32.gmra.mxu0 %v2115
    %v2183 = vpop.f32.mrf.mxu0
    %v2184 = vadd.f32 0.0, %v2183
    %v2185 = vpop.f32.mrf.mxu0
    %2186 = vdwg.mxu0
    %2187 = vmatprep.subr.mxu0 0.0
    %2188 = vmatpush1.msra.mxu0 0.0
    %2189 = vmatprep.subr.mxu0 0.0
    %2190 = vmatpush1.msra.mxu0 0.0
    %2191 = vmatprep.subr.mxu0 0.0
    %2192 = vmatpush1.msra.mxu0 0.0
    %2193 = vmatprep.subr.mxu0 0.0
    %2194 = vmatpush1.msra.mxu0 0.0
    %2195 = vmatprep.subr.mxu0 0.0
    %2196 = vmatpush1.msra.mxu0 0.0
    %2197 = vmatprep.subr.mxu0 0.0
    %2198 = vmatpush1.msra.mxu0 0.0
    %2199 = vmatprep.subr.mxu0 0.0
    %2200 = vmatpush1.msra.mxu0 0.0
    %2201 = vmatprep.subr.mxu0 0.0
    %2202 = vmatpush1.msra.mxu0 0.0
    %2203 = vmatprep.subr.mxu0 0.0
    %2204 = vmatpush1.msra.mxu0 %v458
    %2205 = vmatprep.subr.mxu0 0.0
    %2206 = vmatpush1.msra.mxu0 %v457
    %2207 = vmatprep.subr.mxu0 0.0
    %2208 = vmatpush1.msra.mxu0 %v456
    %2209 = vmatprep.subr.mxu0 0.0
    %2210 = vmatpush1.msra.mxu0 %v455
    %2211 = vmatprep.subr.mxu0 0.0
    %2212 = vmatpush1.msra.mxu0 %v454
    %2213 = vmatprep.subr.mxu0 0.0
    %2214 = vmatpush1.msra.mxu0 %v453
    %2215 = vmatprep.subr.mxu0 0.0
    %2216 = vmatpush1.msra.mxu0 %v452
    %2217 = vmatprep.subr.mxu0 0.0
    %2218 = vmatpush1.msra.mxu0 %v451
    %2219 = vmatprep.subr.mxu0 0.0
    %2220 = vmatpush2.msra.mxu0 0.0
    %2221 = vmatprep.subr.mxu0 0.0
    %2222 = vmatpush2.msra.mxu0 0.0
    %2223 = vmatprep.subr.mxu0 0.0
    %2224 = vmatpush2.msra.mxu0 0.0
    %2225 = vmatprep.subr.mxu0 0.0
    %2226 = vmatpush2.msra.mxu0 0.0
    %2227 = vmatprep.subr.mxu0 0.0
    %2228 = vmatpush2.msra.mxu0 0.0
    %2229 = vmatprep.subr.mxu0 0.0
    %2230 = vmatpush2.msra.mxu0 0.0
    %2231 = vmatprep.subr.mxu0 0.0
    %2232 = vmatpush2.msra.mxu0 0.0
    %2233 = vmatprep.subr.mxu0 0.0
    %2234 = vmatpush2.msra.mxu0 0.0
    %2235 = vmatprep.subr.mxu0 0.0
    %2236 = vmatpush2.msra.mxu0 0.0
    %2237 = vmatprep.subr.mxu0 0.0
    %2238 = vmatpush2.msra.mxu0 0.0
    %2239 = vmatprep.subr.mxu0 0.0
    %2240 = vmatpush2.msra.mxu0 0.0
    %2241 = vmatprep.subr.mxu0 0.0
    %2242 = vmatpush2.msra.mxu0 0.0
    %2243 = vmatprep.subr.mxu0 0.0
    %2244 = vmatpush2.msra.mxu0 0.0
    %2245 = vmatprep.subr.mxu0 0.0
    %2246 = vmatpush2.msra.mxu0 0.0
    %2247 = vmatprep.subr.mxu0 0.0
    %2248 = vmatpush2.msra.mxu0 0.0
    %2249 = vmatprep.subr.mxu0 0.0
    %2250 = vmatpush2.msra.mxu0 0.0
    %2251 = vmatprep.mubr.f32.mxu0 0.0
    %2252 = vmatmul.mubr.f32.gmra.mxu0 %v2115
    %v2253 = vpop.f32.mrf.mxu0
    %v2254 = vadd.f32 0.0, %v2253
    %v2255 = vpop.f32.mrf.mxu0
    %2256 = vdwg.mxu0
    %2257 = vmatprep.subr.mxu0 0.0
    %2258 = vmatpush1.msra.mxu0 0.0
    %2259 = vmatprep.subr.mxu0 0.0
    %2260 = vmatpush1.msra.mxu0 0.0
    %2261 = vmatprep.subr.mxu0 0.0
    %2262 = vmatpush1.msra.mxu0 0.0
    %2263 = vmatprep.subr.mxu0 0.0
    %2264 = vmatpush1.msra.mxu0 0.0
    %2265 = vmatprep.subr.mxu0 0.0
    %2266 = vmatpush1.msra.mxu0 0.0
    %2267 = vmatprep.subr.mxu0 0.0
    %2268 = vmatpush1.msra.mxu0 0.0
    %2269 = vmatprep.subr.mxu0 0.0
    %2270 = vmatpush1.msra.mxu0 0.0
    %2271 = vmatprep.subr.mxu0 0.0
    %2272 = vmatpush1.msra.mxu0 0.0
    %2273 = vmatprep.subr.mxu0 0.0
    %2274 = vmatpush1.msra.mxu0 %v467
    %2275 = vmatprep.subr.mxu0 0.0
    %2276 = vmatpush1.msra.mxu0 %v466
    %2277 = vmatprep.subr.mxu0 0.0
    %2278 = vmatpush1.msra.mxu0 %v465
    %2279 = vmatprep.subr.mxu0 0.0
    %2280 = vmatpush1.msra.mxu0 %v464
    %2281 = vmatprep.subr.mxu0 0.0
    %2282 = vmatpush1.msra.mxu0 %v463
    %2283 = vmatprep.subr.mxu0 0.0
    %2284 = vmatpush1.msra.mxu0 %v462
    %2285 = vmatprep.subr.mxu0 0.0
    %2286 = vmatpush1.msra.mxu0 %v461
    %2287 = vmatprep.subr.mxu0 0.0
    %2288 = vmatpush1.msra.mxu0 %v460
    %2289 = vmatprep.subr.mxu0 0.0
    %2290 = vmatpush2.msra.mxu0 0.0
    %2291 = vmatprep.subr.mxu0 0.0
    %2292 = vmatpush2.msra.mxu0 0.0
    %2293 = vmatprep.subr.mxu0 0.0
    %2294 = vmatpush2.msra.mxu0 0.0
    %2295 = vmatprep.subr.mxu0 0.0
    %2296 = vmatpush2.msra.mxu0 0.0
    %2297 = vmatprep.subr.mxu0 0.0
    %2298 = vmatpush2.msra.mxu0 0.0
    %2299 = vmatprep.subr.mxu0 0.0
    %2300 = vmatpush2.msra.mxu0 0.0
    %2301 = vmatprep.subr.mxu0 0.0
    %2302 = vmatpush2.msra.mxu0 0.0
    %2303 = vmatprep.subr.mxu0 0.0
    %2304 = vmatpush2.msra.mxu0 0.0
    %2305 = vmatprep.subr.mxu0 0.0
    %2306 = vmatpush2.msra.mxu0 0.0
    %2307 = vmatprep.subr.mxu0 0.0
    %2308 = vmatpush2.msra.mxu0 0.0
    %2309 = vmatprep.subr.mxu0 0.0
    %2310 = vmatpush2.msra.mxu0 0.0
    %2311 = vmatprep.subr.mxu0 0.0
    %2312 = vmatpush2.msra.mxu0 0.0
    %2313 = vmatprep.subr.mxu0 0.0
    %2314 = vmatpush2.msra.mxu0 0.0
    %2315 = vmatprep.subr.mxu0 0.0
    %2316 = vmatpush2.msra.mxu0 0.0
    %2317 = vmatprep.subr.mxu0 0.0
    %2318 = vmatpush2.msra.mxu0 0.0
    %2319 = vmatprep.subr.mxu0 0.0
    %2320 = vmatpush2.msra.mxu0 0.0
    %2321 = vmatprep.mubr.f32.mxu0 0.0
    %2322 = vmatmul.mubr.f32.gmra.mxu0 %v2115
    %v2323 = vpop.f32.mrf.mxu0
    %v2324 = vadd.f32 %v617, %v2323
    %v2325 = vpop.f32.mrf.mxu0
    %2326 = vdwg.mxu0
    %v2327 = vadd.f32 %v209, %v2184
    %v2328 = vsub.f32 0.0, %v2327
    %v2329 = vmul.f32 %v2328, 1.442695
    %v2330 = vpow.pop %v2329
    %v2331 = vadd.f32 %v2330, 1.0
    %v2332 = vrcp.pop %v2331
    %v2333 = vmul.f32 1.0, %v2332
    %v2334 = vadd.f32 %v324, %v2254
    %v2335 = vsub.f32 0.0, %v2334
    %v2336 = vmul.f32 %v2335, 1.442695
    %v2337 = vpow.pop %v2336
    %v2338 = vadd.f32 %v2337, 1.0
    %v2339 = vrcp.pop %v2338
    %v2340 = vmul.f32 1.0, %v2339
    %v2341 = vmul.f32 %v2333, %v2324
    %v2342 = vadd.f32 %v439, %v2341
    %v2343 = vtanh.pop %v2342
    %v2344 = vsub.f32 1.0, %v2340
    %v2345 = vmul.f32 %v2344, %v2343
    %v2346 = vmul.f32 %v2340, %v2113
    %v2347 = vadd.f32 %v2345, %v2346
    %v2348 = vld [vmem:[%s5] sm:$0xff]
    %v2349 = vld [vmem:[%s5 + $0x8] sm:$0xff]
    %v2350 = vld [vmem:[%s5 + $0x10] sm:$0xff]
    %v2351 = vld [vmem:[%s5 + $0x18] sm:$0xff]
    %v2352 = vld [vmem:[%s5 + $0x20] sm:$0xff]
    %v2353 = vld [vmem:[%s5 + $0x28] sm:$0xff]
    %v2354 = vld [vmem:[%s5 + $0x30] sm:$0xff]
    %v2355 = vld [vmem:[%s5 + $0x38] sm:$0xff]
    %v2356 = vld [vmem:[%s7] sm:$0x1]
    %v2358 = vlaneseq
    %v2359 = vshrl.u32 %v2358, 7
    %v2360 = vsub.s32 0, %v2359
    %v2361 = vrot.slane %v2356, %v2360
    %v2364 = vsel %vm469, %v2347, 0
    %2366 = vmatprep.subr.mxu0 0.0
    %2367 = vmatpush1.msra.mxu0 0.0
    %2368 = vmatprep.subr.mxu0 0.0
    %2369 = vmatpush1.msra.mxu0 0.0
    %2370 = vmatprep.subr.mxu0 0.0
    %2371 = vmatpush1.msra.mxu0 0.0
    %2372 = vmatprep.subr.mxu0 0.0
    %2373 = vmatpush1.msra.mxu0 0.0
    %2374 = vmatprep.subr.mxu0 0.0
    %2375 = vmatpush1.msra.mxu0 0.0
    %2376 = vmatprep.subr.mxu0 0.0
    %2377 = vmatpush1.msra.mxu0 0.0
    %2378 = vmatprep.subr.mxu0 0.0
    %2379 = vmatpush1.msra.mxu0 0.0
    %2380 = vmatprep.subr.mxu0 0.0
    %2381 = vmatpush1.msra.mxu0 0.0
    %2382 = vmatprep.subr.mxu0 0.0
    %2383 = vmatpush1.msra.mxu0 %v2355
    %2384 = vmatprep.subr.mxu0 0.0
    %2385 = vmatpush1.msra.mxu0 %v2354
    %2386 = vmatprep.subr.mxu0 0.0
    %2387 = vmatpush1.msra.mxu0 %v2353
    %2388 = vmatprep.subr.mxu0 0.0
    %2389 = vmatpush1.msra.mxu0 %v2352
    %2390 = vmatprep.subr.mxu0 0.0
    %2391 = vmatpush1.msra.mxu0 %v2351
    %2392 = vmatprep.subr.mxu0 0.0
    %2393 = vmatpush1.msra.mxu0 %v2350
    %2394 = vmatprep.subr.mxu0 0.0
    %2395 = vmatpush1.msra.mxu0 %v2349
    %2396 = vmatprep.subr.mxu0 0.0
    %2397 = vmatpush1.msra.mxu0 %v2348
    %2398 = vmatprep.subr.mxu0 0.0
    %2399 = vmatpush2.msra.mxu0 0.0
    %2400 = vmatprep.subr.mxu0 0.0
    %2401 = vmatpush2.msra.mxu0 0.0
    %2402 = vmatprep.subr.mxu0 0.0
    %2403 = vmatpush2.msra.mxu0 0.0
    %2404 = vmatprep.subr.mxu0 0.0
    %2405 = vmatpush2.msra.mxu0 0.0
    %2406 = vmatprep.subr.mxu0 0.0
    %2407 = vmatpush2.msra.mxu0 0.0
    %2408 = vmatprep.subr.mxu0 0.0
    %2409 = vmatpush2.msra.mxu0 0.0
    %2410 = vmatprep.subr.mxu0 0.0
    %2411 = vmatpush2.msra.mxu0 0.0
    %2412 = vmatprep.subr.mxu0 0.0
    %2413 = vmatpush2.msra.mxu0 0.0
    %2414 = vmatprep.subr.mxu0 0.0
    %2415 = vmatpush2.msra.mxu0 0.0
    %2416 = vmatprep.subr.mxu0 0.0
    %2417 = vmatpush2.msra.mxu0 0.0
    %2418 = vmatprep.subr.mxu0 0.0
    %2419 = vmatpush2.msra.mxu0 0.0
    %2420 = vmatprep.subr.mxu0 0.0
    %2421 = vmatpush2.msra.mxu0 0.0
    %2422 = vmatprep.subr.mxu0 0.0
    %2423 = vmatpush2.msra.mxu0 0.0
    %2424 = vmatprep.subr.mxu0 0.0
    %2425 = vmatpush2.msra.mxu0 0.0
    %2426 = vmatprep.subr.mxu0 0.0
    %2427 = vmatpush2.msra.mxu0 0.0
    %2428 = vmatprep.subr.mxu0 0.0
    %2429 = vmatpush2.msra.mxu0 0.0
    %2430 = vmatprep.mubr.f32.mxu0 0.0
    %2431 = vmatmul.mubr.f32.gmra.mxu0 %v711
    %v2432 = vpop.f32.mrf.mxu0
    %v2433 = vadd.f32 %v2361, %v2432
    %v2434 = vpop.f32.mrf.mxu0
    %2435 = vmatprep.mubr.f32.mxu0 0.0
    %2436 = vmatmul.mubr.f32.gmra.mxu0 %v945
    %v2437 = vpop.f32.mrf.mxu0
    %v2438 = vadd.f32 %v2361, %v2437
    %v2439 = vpop.f32.mrf.mxu0
    %2440 = vmatprep.mubr.f32.mxu0 0.0
    %2441 = vmatmul.mubr.f32.gmra.mxu0 %v1179
    %v2442 = vpop.f32.mrf.mxu0
    %v2443 = vadd.f32 %v2361, %v2442
    %v2444 = vpop.f32.mrf.mxu0
    %2445 = vmatprep.mubr.f32.mxu0 0.0
    %2446 = vmatmul.mubr.f32.gmra.mxu0 %v1413
    %v2447 = vpop.f32.mrf.mxu0
    %v2448 = vadd.f32 %v2361, %v2447
    %v2449 = vpop.f32.mrf.mxu0
    %2450 = vmatprep.mubr.f32.mxu0 0.0
    %2451 = vmatmul.mubr.f32.gmra.mxu0 %v1647
    %v2452 = vpop.f32.mrf.mxu0
    %v2453 = vadd.f32 %v2361, %v2452
    %v2454 = vpop.f32.mrf.mxu0
    %2455 = vmatprep.mubr.f32.mxu0 0.0
    %2456 = vmatmul.mubr.f32.gmra.mxu0 %v1881
    %v2457 = vpop.f32.mrf.mxu0
    %v2458 = vadd.f32 %v2361, %v2457
    %v2459 = vpop.f32.mrf.mxu0
    %2460 = vmatprep.mubr.f32.mxu0 0.0
    %2461 = vmatmul.mubr.f32.gmra.mxu0 %v2115
    %v2462 = vpop.f32.mrf.mxu0
    %v2463 = vadd.f32 %v2361, %v2462
    %v2464 = vpop.f32.mrf.mxu0
    %2465 = vmatprep.mubr.f32.mxu0 0.0
    %2466 = vmatmul.mubr.f32.gmra.mxu0 %v2364
    %v2467 = vpop.f32.mrf.mxu0
    %v2468 = vadd.f32 %v2361, %v2467
    %v2469 = vpop.f32.mrf.mxu0
    %2470 = vdwg.mxu0
    %s2471 = scalar_lea.vmem %s5, 64
    %v2472 = vld [vmem:[%s2471] sm:$0xff]
    %v2473 = vld [vmem:[%s2471 + $0x8] sm:$0xff]
    %v2474 = vld [vmem:[%s2471 + $0x10] sm:$0xff]
    %v2475 = vld [vmem:[%s2471 + $0x18] sm:$0xff]
    %v2476 = vld [vmem:[%s2471 + $0x20] sm:$0xff]
    %v2477 = vld [vmem:[%s2471 + $0x28] sm:$0xff]
    %v2478 = vld [vmem:[%s2471 + $0x30] sm:$0xff]
    %v2479 = vld [vmem:[%s2471 + $0x38] sm:$0xff]
    %s2480 = scalar_lea.vmem %s7, 1
    %v2481 = vld [vmem:[%s2480] sm:$0x1]
    %v2483 = vlaneseq
    %v2484 = vshrl.u32 %v2483, 7
    %v2485 = vsub.s32 0, %v2484
    %v2486 = vrot.slane %v2481, %v2485
    %2488 = vmatprep.subr.mxu0 0.0
    %2489 = vmatpush1.msra.mxu0 0.0
    %2490 = vmatprep.subr.mxu0 0.0
    %2491 = vmatpush1.msra.mxu0 0.0
    %2492 = vmatprep.subr.mxu0 0.0
    %2493 = vmatpush1.msra.mxu0 0.0
    %2494 = vmatprep.subr.mxu0 0.0
    %2495 = vmatpush1.msra.mxu0 0.0
    %2496 = vmatprep.subr.mxu0 0.0
    %2497 = vmatpush1.msra.mxu0 0.0
    %2498 = vmatprep.subr.mxu0 0.0
    %2499 = vmatpush1.msra.mxu0 0.0
    %2500 = vmatprep.subr.mxu0 0.0
    %2501 = vmatpush1.msra.mxu0 0.0
    %2502 = vmatprep.subr.mxu0 0.0
    %2503 = vmatpush1.msra.mxu0 0.0
    %2504 = vmatprep.subr.mxu0 0.0
    %2505 = vmatpush1.msra.mxu0 %v2479
    %2506 = vmatprep.subr.mxu0 0.0
    %2507 = vmatpush1.msra.mxu0 %v2478
    %2508 = vmatprep.subr.mxu0 0.0
    %2509 = vmatpush1.msra.mxu0 %v2477
    %2510 = vmatprep.subr.mxu0 0.0
    %2511 = vmatpush1.msra.mxu0 %v2476
    %2512 = vmatprep.subr.mxu0 0.0
    %2513 = vmatpush1.msra.mxu0 %v2475
    %2514 = vmatprep.subr.mxu0 0.0
    %2515 = vmatpush1.msra.mxu0 %v2474
    %2516 = vmatprep.subr.mxu0 0.0
    %2517 = vmatpush1.msra.mxu0 %v2473
    %2518 = vmatprep.subr.mxu0 0.0
    %2519 = vmatpush1.msra.mxu0 %v2472
    %2520 = vmatprep.subr.mxu0 0.0
    %2521 = vmatpush2.msra.mxu0 0.0
    %2522 = vmatprep.subr.mxu0 0.0
    %2523 = vmatpush2.msra.mxu0 0.0
    %2524 = vmatprep.subr.mxu0 0.0
    %2525 = vmatpush2.msra.mxu0 0.0
    %2526 = vmatprep.subr.mxu0 0.0
    %2527 = vmatpush2.msra.mxu0 0.0
    %2528 = vmatprep.subr.mxu0 0.0
    %2529 = vmatpush2.msra.mxu0 0.0
    %2530 = vmatprep.subr.mxu0 0.0
    %2531 = vmatpush2.msra.mxu0 0.0
    %2532 = vmatprep.subr.mxu0 0.0
    %2533 = vmatpush2.msra.mxu0 0.0
    %2534 = vmatprep.subr.mxu0 0.0
    %2535 = vmatpush2.msra.mxu0 0.0
    %2536 = vmatprep.subr.mxu0 0.0
    %2537 = vmatpush2.msra.mxu0 0.0
    %2538 = vmatprep.subr.mxu0 0.0
    %2539 = vmatpush2.msra.mxu0 0.0
    %2540 = vmatprep.subr.mxu0 0.0
    %2541 = vmatpush2.msra.mxu0 0.0
    %2542 = vmatprep.subr.mxu0 0.0
    %2543 = vmatpush2.msra.mxu0 0.0
    %2544 = vmatprep.subr.mxu0 0.0
    %2545 = vmatpush2.msra.mxu0 0.0
    %2546 = vmatprep.subr.mxu0 0.0
    %2547 = vmatpush2.msra.mxu0 0.0
    %2548 = vmatprep.subr.mxu0 0.0
    %2549 = vmatpush2.msra.mxu0 0.0
    %2550 = vmatprep.subr.mxu0 0.0
    %2551 = vmatpush2.msra.mxu0 0.0
    %2552 = vmatprep.mubr.f32.mxu0 0.0
    %2553 = vmatmul.mubr.f32.gmra.mxu0 %v711
    %v2554 = vpop.f32.mrf.mxu0
    %v2555 = vadd.f32 %v2486, %v2554
    %v2556 = vpop.f32.mrf.mxu0
    %2557 = vmatprep.mubr.f32.mxu0 0.0
    %2558 = vmatmul.mubr.f32.gmra.mxu0 %v945
    %v2559 = vpop.f32.mrf.mxu0
    %v2560 = vadd.f32 %v2486, %v2559
    %v2561 = vpop.f32.mrf.mxu0
    %2562 = vmatprep.mubr.f32.mxu0 0.0
    %2563 = vmatmul.mubr.f32.gmra.mxu0 %v1179
    %v2564 = vpop.f32.mrf.mxu0
    %v2565 = vadd.f32 %v2486, %v2564
    %v2566 = vpop.f32.mrf.mxu0
    %2567 = vmatprep.mubr.f32.mxu0 0.0
    %2568 = vmatmul.mubr.f32.gmra.mxu0 %v1413
    %v2569 = vpop.f32.mrf.mxu0
    %v2570 = vadd.f32 %v2486, %v2569
    %v2571 = vpop.f32.mrf.mxu0
    %2572 = vmatprep.mubr.f32.mxu0 0.0
    %2573 = vmatmul.mubr.f32.gmra.mxu0 %v1647
    %v2574 = vpop.f32.mrf.mxu0
    %v2575 = vadd.f32 %v2486, %v2574
    %v2576 = vpop.f32.mrf.mxu0
    %2577 = vmatprep.mubr.f32.mxu0 0.0
    %2578 = vmatmul.mubr.f32.gmra.mxu0 %v1881
    %v2579 = vpop.f32.mrf.mxu0
    %v2580 = vadd.f32 %v2486, %v2579
    %v2581 = vpop.f32.mrf.mxu0
    %2582 = vmatprep.mubr.f32.mxu0 0.0
    %2583 = vmatmul.mubr.f32.gmra.mxu0 %v2115
    %v2584 = vpop.f32.mrf.mxu0
    %v2585 = vadd.f32 %v2486, %v2584
    %v2586 = vpop.f32.mrf.mxu0
    %2587 = vmatprep.mubr.f32.mxu0 0.0
    %2588 = vmatmul.mubr.f32.gmra.mxu0 %v2364
    %v2589 = vpop.f32.mrf.mxu0
    %v2590 = vadd.f32 %v2486, %v2589
    %v2591 = vpop.f32.mrf.mxu0
    %2592 = vdwg.mxu0
    %s2593 = scalar_lea.vmem %s5, 128
    %v2594 = vld [vmem:[%s2593] sm:$0xff]
    %v2595 = vld [vmem:[%s2593 + $0x8] sm:$0xff]
    %v2596 = vld [vmem:[%s2593 + $0x10] sm:$0xff]
    %v2597 = vld [vmem:[%s2593 + $0x18] sm:$0xff]
    %v2598 = vld [vmem:[%s2593 + $0x20] sm:$0xff]
    %v2599 = vld [vmem:[%s2593 + $0x28] sm:$0xff]
    %v2600 = vld [vmem:[%s2593 + $0x30] sm:$0xff]
    %v2601 = vld [vmem:[%s2593 + $0x38] sm:$0xff]
    %s2602 = scalar_lea.vmem %s7, 2
    %v2603 = vld [vmem:[%s2602] sm:$0x1]
    %v2605 = vlaneseq
    %v2606 = vshrl.u32 %v2605, 7
    %v2607 = vsub.s32 0, %v2606
    %v2608 = vrot.slane %v2603, %v2607
    %2610 = vmatprep.subr.mxu0 0.0
    %2611 = vmatpush1.msra.mxu0 0.0
    %2612 = vmatprep.subr.mxu0 0.0
    %2613 = vmatpush1.msra.mxu0 0.0
    %2614 = vmatprep.subr.mxu0 0.0
    %2615 = vmatpush1.msra.mxu0 0.0
    %2616 = vmatprep.subr.mxu0 0.0
    %2617 = vmatpush1.msra.mxu0 0.0
    %2618 = vmatprep.subr.mxu0 0.0
    %2619 = vmatpush1.msra.mxu0 0.0
    %2620 = vmatprep.subr.mxu0 0.0
    %2621 = vmatpush1.msra.mxu0 0.0
    %2622 = vmatprep.subr.mxu0 0.0
    %2623 = vmatpush1.msra.mxu0 0.0
    %2624 = vmatprep.subr.mxu0 0.0
    %2625 = vmatpush1.msra.mxu0 0.0
    %2626 = vmatprep.subr.mxu0 0.0
    %2627 = vmatpush1.msra.mxu0 %v2601
    %2628 = vmatprep.subr.mxu0 0.0
    %2629 = vmatpush1.msra.mxu0 %v2600
    %2630 = vmatprep.subr.mxu0 0.0
    %2631 = vmatpush1.msra.mxu0 %v2599
    %2632 = vmatprep.subr.mxu0 0.0
    %2633 = vmatpush1.msra.mxu0 %v2598
    %2634 = vmatprep.subr.mxu0 0.0
    %2635 = vmatpush1.msra.mxu0 %v2597
    %2636 = vmatprep.subr.mxu0 0.0
    %2637 = vmatpush1.msra.mxu0 %v2596
    %2638 = vmatprep.subr.mxu0 0.0
    %2639 = vmatpush1.msra.mxu0 %v2595
    %2640 = vmatprep.subr.mxu0 0.0
    %2641 = vmatpush1.msra.mxu0 %v2594
    %2642 = vmatprep.subr.mxu0 0.0
    %2643 = vmatpush2.msra.mxu0 0.0
    %2644 = vmatprep.subr.mxu0 0.0
    %2645 = vmatpush2.msra.mxu0 0.0
    %2646 = vmatprep.subr.mxu0 0.0
    %2647 = vmatpush2.msra.mxu0 0.0
    %2648 = vmatprep.subr.mxu0 0.0
    %2649 = vmatpush2.msra.mxu0 0.0
    %2650 = vmatprep.subr.mxu0 0.0
    %2651 = vmatpush2.msra.mxu0 0.0
    %2652 = vmatprep.subr.mxu0 0.0
    %2653 = vmatpush2.msra.mxu0 0.0
    %2654 = vmatprep.subr.mxu0 0.0
    %2655 = vmatpush2.msra.mxu0 0.0
    %2656 = vmatprep.subr.mxu0 0.0
    %2657 = vmatpush2.msra.mxu0 0.0
    %2658 = vmatprep.subr.mxu0 0.0
    %2659 = vmatpush2.msra.mxu0 0.0
    %2660 = vmatprep.subr.mxu0 0.0
    %2661 = vmatpush2.msra.mxu0 0.0
    %2662 = vmatprep.subr.mxu0 0.0
    %2663 = vmatpush2.msra.mxu0 0.0
    %2664 = vmatprep.subr.mxu0 0.0
    %2665 = vmatpush2.msra.mxu0 0.0
    %2666 = vmatprep.subr.mxu0 0.0
    %2667 = vmatpush2.msra.mxu0 0.0
    %2668 = vmatprep.subr.mxu0 0.0
    %2669 = vmatpush2.msra.mxu0 0.0
    %2670 = vmatprep.subr.mxu0 0.0
    %2671 = vmatpush2.msra.mxu0 0.0
    %2672 = vmatprep.subr.mxu0 0.0
    %2673 = vmatpush2.msra.mxu0 0.0
    %2674 = vmatprep.mubr.f32.mxu0 0.0
    %2675 = vmatmul.mubr.f32.gmra.mxu0 %v711
    %v2676 = vpop.f32.mrf.mxu0
    %v2677 = vadd.f32 %v2608, %v2676
    %v2678 = vpop.f32.mrf.mxu0
    %2679 = vmatprep.mubr.f32.mxu0 0.0
    %2680 = vmatmul.mubr.f32.gmra.mxu0 %v945
    %v2681 = vpop.f32.mrf.mxu0
    %v2682 = vadd.f32 %v2608, %v2681
    %v2683 = vpop.f32.mrf.mxu0
    %2684 = vmatprep.mubr.f32.mxu0 0.0
    %2685 = vmatmul.mubr.f32.gmra.mxu0 %v1179
    %v2686 = vpop.f32.mrf.mxu0
    %v2687 = vadd.f32 %v2608, %v2686
    %v2688 = vpop.f32.mrf.mxu0
    %2689 = vmatprep.mubr.f32.mxu0 0.0
    %2690 = vmatmul.mubr.f32.gmra.mxu0 %v1413
    %v2691 = vpop.f32.mrf.mxu0
    %v2692 = vadd.f32 %v2608, %v2691
    %v2693 = vpop.f32.mrf.mxu0
    %2694 = vmatprep.mubr.f32.mxu0 0.0
    %2695 = vmatmul.mubr.f32.gmra.mxu0 %v1647
    %v2696 = vpop.f32.mrf.mxu0
    %v2697 = vadd.f32 %v2608, %v2696
    %v2698 = vpop.f32.mrf.mxu0
    %2699 = vmatprep.mubr.f32.mxu0 0.0
    %2700 = vmatmul.mubr.f32.gmra.mxu0 %v1881
    %v2701 = vpop.f32.mrf.mxu0
    %v2702 = vadd.f32 %v2608, %v2701
    %v2703 = vpop.f32.mrf.mxu0
    %2704 = vmatprep.mubr.f32.mxu0 0.0
    %2705 = vmatmul.mubr.f32.gmra.mxu0 %v2115
    %v2706 = vpop.f32.mrf.mxu0
    %v2707 = vadd.f32 %v2608, %v2706
    %v2708 = vpop.f32.mrf.mxu0
    %2709 = vmatprep.mubr.f32.mxu0 0.0
    %2710 = vmatmul.mubr.f32.gmra.mxu0 %v2364
    %v2711 = vpop.f32.mrf.mxu0
    %v2712 = vadd.f32 %v2608, %v2711
    %v2713 = vpop.f32.mrf.mxu0
    %2714 = vdwg.mxu0
    %v2715 = vld [vmem:[%s6] sm:$0xff]
    %v2716 = vld [vmem:[%s6 + $0x8] sm:$0xff]
    %v2717 = vld [vmem:[%s6 + $0x10] sm:$0xff]
    %v2718 = vld [vmem:[%s6 + $0x18] sm:$0xff]
    %s2719 = scalar_lea.vmem %s6, 32
    %v2720 = vld [vmem:[%s2719] sm:$0xff]
    %v2721 = vld [vmem:[%s2719 + $0x8] sm:$0xff]
    %v2722 = vld [vmem:[%s2719 + $0x10] sm:$0xff]
    %v2723 = vld [vmem:[%s2719 + $0x18] sm:$0xff]
    %s2724 = scalar_lea.vmem %s6, 64
    %v2725 = vld [vmem:[%s2724] sm:$0xff]
    %v2726 = vld [vmem:[%s2724 + $0x8] sm:$0xff]
    %v2727 = vld [vmem:[%s2724 + $0x10] sm:$0xff]
    %v2728 = vld [vmem:[%s2724 + $0x18] sm:$0xff]
    %v2729 = vld [vmem:[%s8] sm:$0x1]
    %vm2730 = vcmask 261120
    %v2731 = vsel %vm2730, 0.0, 0
    %2733 = vmatprep.subr.mxu0 0.0
    %2734 = vmatpush1.msra.mxu0 0.0
    %2735 = vmatprep.subr.mxu0 0.0
    %2736 = vmatpush1.msra.mxu0 0.0
    %2737 = vmatprep.subr.mxu0 0.0
    %2738 = vmatpush1.msra.mxu0 0.0
    %2739 = vmatprep.subr.mxu0 0.0
    %2740 = vmatpush1.msra.mxu0 0.0
    %2741 = vmatprep.subr.mxu0 0.0
    %2742 = vmatpush1.msra.mxu0 0.0
    %2743 = vmatprep.subr.mxu0 0.0
    %2744 = vmatpush1.msra.mxu0 0.0
    %2745 = vmatprep.subr.mxu0 0.0
    %2746 = vmatpush1.msra.mxu0 0.0
    %2747 = vmatprep.subr.mxu0 0.0
    %2748 = vmatpush1.msra.mxu0 0.0
    %2749 = vmatprep.subr.mxu0 0.0
    %2750 = vmatpush1.msra.mxu0 0.0
    %2751 = vmatprep.subr.mxu0 0.0
    %2752 = vmatpush1.msra.mxu0 0.0
    %2753 = vmatprep.subr.mxu0 0.0
    %2754 = vmatpush1.msra.mxu0 0.0
    %2755 = vmatprep.subr.mxu0 0.0
    %2756 = vmatpush1.msra.mxu0 0.0
    %2757 = vmatprep.subr.mxu0 0.0
    %2758 = vmatpush1.msra.mxu0 %v2718
    %2759 = vmatprep.subr.mxu0 0.0
    %2760 = vmatpush1.msra.mxu0 %v2717
    %2761 = vmatprep.subr.mxu0 0.0
    %2762 = vmatpush1.msra.mxu0 %v2716
    %2763 = vmatprep.subr.mxu0 0.0
    %2764 = vmatpush1.msra.mxu0 %v2715
    %2765 = vmatprep.subr.mxu0 0.0
    %2766 = vmatpush2.msra.mxu0 0.0
    %2767 = vmatprep.subr.mxu0 0.0
    %2768 = vmatpush2.msra.mxu0 0.0
    %2769 = vmatprep.subr.mxu0 0.0
    %2770 = vmatpush2.msra.mxu0 0.0
    %2771 = vmatprep.subr.mxu0 0.0
    %2772 = vmatpush2.msra.mxu0 0.0
    %2773 = vmatprep.subr.mxu0 0.0
    %2774 = vmatpush2.msra.mxu0 0.0
    %2775 = vmatprep.subr.mxu0 0.0
    %2776 = vmatpush2.msra.mxu0 0.0
    %2777 = vmatprep.subr.mxu0 0.0
    %2778 = vmatpush2.msra.mxu0 0.0
    %2779 = vmatprep.subr.mxu0 0.0
    %2780 = vmatpush2.msra.mxu0 0.0
    %2781 = vmatprep.subr.mxu0 0.0
    %2782 = vmatpush2.msra.mxu0 0.0
    %2783 = vmatprep.subr.mxu0 0.0
    %2784 = vmatpush2.msra.mxu0 0.0
    %2785 = vmatprep.subr.mxu0 0.0
    %2786 = vmatpush2.msra.mxu0 0.0
    %2787 = vmatprep.subr.mxu0 0.0
    %2788 = vmatpush2.msra.mxu0 0.0
    %2789 = vmatprep.subr.mxu0 0.0
    %2790 = vmatpush2.msra.mxu0 0.0
    %2791 = vmatprep.subr.mxu0 0.0
    %2792 = vmatpush2.msra.mxu0 0.0
    %2793 = vmatprep.subr.mxu0 0.0
    %2794 = vmatpush2.msra.mxu0 0.0
    %2795 = vmatprep.subr.mxu0 0.0
    %2796 = vmatpush2.msra.mxu0 0.0
    %2797 = vmatprep.mubr.f32.mxu0 0.0
    %2798 = vmatmul.mubr.f32.gmra.mxu0 %v2731
    %v2799 = vpop.f32.mrf.mxu0
    %v2800 = vadd.f32 0.0, %v2799
    %v2801 = vpop.f32.mrf.mxu0
    %2802 = vdwg.mxu0
    %2803 = vmatprep.subr.mxu0 0.0
    %2804 = vmatpush1.msra.mxu0 0.0
    %2805 = vmatprep.subr.mxu0 0.0
    %2806 = vmatpush1.msra.mxu0 0.0
    %2807 = vmatprep.subr.mxu0 0.0
    %2808 = vmatpush1.msra.mxu0 0.0
    %2809 = vmatprep.subr.mxu0 0.0
    %2810 = vmatpush1.msra.mxu0 0.0
    %2811 = vmatprep.subr.mxu0 0.0
    %2812 = vmatpush1.msra.mxu0 0.0
    %2813 = vmatprep.subr.mxu0 0.0
    %2814 = vmatpush1.msra.mxu0 0.0
    %2815 = vmatprep.subr.mxu0 0.0
    %2816 = vmatpush1.msra.mxu0 0.0
    %2817 = vmatprep.subr.mxu0 0.0
    %2818 = vmatpush1.msra.mxu0 0.0
    %2819 = vmatprep.subr.mxu0 0.0
    %2820 = vmatpush1.msra.mxu0 0.0
    %2821 = vmatprep.subr.mxu0 0.0
    %2822 = vmatpush1.msra.mxu0 0.0
    %2823 = vmatprep.subr.mxu0 0.0
    %2824 = vmatpush1.msra.mxu0 0.0
    %2825 = vmatprep.subr.mxu0 0.0
    %2826 = vmatpush1.msra.mxu0 0.0
    %2827 = vmatprep.subr.mxu0 0.0
    %2828 = vmatpush1.msra.mxu0 %v2723
    %2829 = vmatprep.subr.mxu0 0.0
    %2830 = vmatpush1.msra.mxu0 %v2722
    %2831 = vmatprep.subr.mxu0 0.0
    %2832 = vmatpush1.msra.mxu0 %v2721
    %2833 = vmatprep.subr.mxu0 0.0
    %2834 = vmatpush1.msra.mxu0 %v2720
    %2835 = vmatprep.subr.mxu0 0.0
    %2836 = vmatpush2.msra.mxu0 0.0
    %2837 = vmatprep.subr.mxu0 0.0
    %2838 = vmatpush2.msra.mxu0 0.0
    %2839 = vmatprep.subr.mxu0 0.0
    %2840 = vmatpush2.msra.mxu0 0.0
    %2841 = vmatprep.subr.mxu0 0.0
    %2842 = vmatpush2.msra.mxu0 0.0
    %2843 = vmatprep.subr.mxu0 0.0
    %2844 = vmatpush2.msra.mxu0 0.0
    %2845 = vmatprep.subr.mxu0 0.0
    %2846 = vmatpush2.msra.mxu0 0.0
    %2847 = vmatprep.subr.mxu0 0.0
    %2848 = vmatpush2.msra.mxu0 0.0
    %2849 = vmatprep.subr.mxu0 0.0
    %2850 = vmatpush2.msra.mxu0 0.0
    %2851 = vmatprep.subr.mxu0 0.0
    %2852 = vmatpush2.msra.mxu0 0.0
    %2853 = vmatprep.subr.mxu0 0.0
    %2854 = vmatpush2.msra.mxu0 0.0
    %2855 = vmatprep.subr.mxu0 0.0
    %2856 = vmatpush2.msra.mxu0 0.0
    %2857 = vmatprep.subr.mxu0 0.0
    %2858 = vmatpush2.msra.mxu0 0.0
    %2859 = vmatprep.subr.mxu0 0.0
    %2860 = vmatpush2.msra.mxu0 0.0
    %2861 = vmatprep.subr.mxu0 0.0
    %2862 = vmatpush2.msra.mxu0 0.0
    %2863 = vmatprep.subr.mxu0 0.0
    %2864 = vmatpush2.msra.mxu0 0.0
    %2865 = vmatprep.subr.mxu0 0.0
    %2866 = vmatpush2.msra.mxu0 0.0
    %2867 = vmatprep.mubr.f32.mxu0 0.0
    %2868 = vmatmul.mubr.f32.gmra.mxu0 %v2731
    %v2869 = vpop.f32.mrf.mxu0
    %v2870 = vadd.f32 0.0, %v2869
    %v2871 = vpop.f32.mrf.mxu0
    %2872 = vdwg.mxu0
    %v2874 = vlaneseq
    %v2875 = vshrl.u32 %v2874, 7
    %v2876 = vsub.s32 0, %v2875
    %v2877 = vrot.slane %v2729, %v2876
    %2879 = vmatprep.subr.mxu0 0.0
    %2880 = vmatpush1.msra.mxu0 0.0
    %2881 = vmatprep.subr.mxu0 0.0
    %2882 = vmatpush1.msra.mxu0 0.0
    %2883 = vmatprep.subr.mxu0 0.0
    %2884 = vmatpush1.msra.mxu0 0.0
    %2885 = vmatprep.subr.mxu0 0.0
    %2886 = vmatpush1.msra.mxu0 0.0
    %2887 = vmatprep.subr.mxu0 0.0
    %2888 = vmatpush1.msra.mxu0 0.0
    %2889 = vmatprep.subr.mxu0 0.0
    %2890 = vmatpush1.msra.mxu0 0.0
    %2891 = vmatprep.subr.mxu0 0.0
    %2892 = vmatpush1.msra.mxu0 0.0
    %2893 = vmatprep.subr.mxu0 0.0
    %2894 = vmatpush1.msra.mxu0 0.0
    %2895 = vmatprep.subr.mxu0 0.0
    %2896 = vmatpush1.msra.mxu0 0.0
    %2897 = vmatprep.subr.mxu0 0.0
    %2898 = vmatpush1.msra.mxu0 0.0
    %2899 = vmatprep.subr.mxu0 0.0
    %2900 = vmatpush1.msra.mxu0 0.0
    %2901 = vmatprep.subr.mxu0 0.0
    %2902 = vmatpush1.msra.mxu0 0.0
    %2903 = vmatprep.subr.mxu0 0.0
    %2904 = vmatpush1.msra.mxu0 %v2728
    %2905 = vmatprep.subr.mxu0 0.0
    %2906 = vmatpush1.msra.mxu0 %v2727
    %2907 = vmatprep.subr.mxu0 0.0
    %2908 = vmatpush1.msra.mxu0 %v2726
    %2909 = vmatprep.subr.mxu0 0.0
    %2910 = vmatpush1.msra.mxu0 %v2725
    %2911 = vmatprep.subr.mxu0 0.0
    %2912 = vmatpush2.msra.mxu0 0.0
    %2913 = vmatprep.subr.mxu0 0.0
    %2914 = vmatpush2.msra.mxu0 0.0
    %2915 = vmatprep.subr.mxu0 0.0
    %2916 = vmatpush2.msra.mxu0 0.0
    %2917 = vmatprep.subr.mxu0 0.0
    %2918 = vmatpush2.msra.mxu0 0.0
    %2919 = vmatprep.subr.mxu0 0.0
    %2920 = vmatpush2.msra.mxu0 0.0
    %2921 = vmatprep.subr.mxu0 0.0
    %2922 = vmatpush2.msra.mxu0 0.0
    %2923 = vmatprep.subr.mxu0 0.0
    %2924 = vmatpush2.msra.mxu0 0.0
    %2925 = vmatprep.subr.mxu0 0.0
    %2926 = vmatpush2.msra.mxu0 0.0
    %2927 = vmatprep.subr.mxu0 0.0
    %2928 = vmatpush2.msra.mxu0 0.0
    %2929 = vmatprep.subr.mxu0 0.0
    %2930 = vmatpush2.msra.mxu0 0.0
    %2931 = vmatprep.subr.mxu0 0.0
    %2932 = vmatpush2.msra.mxu0 0.0
    %2933 = vmatprep.subr.mxu0 0.0
    %2934 = vmatpush2.msra.mxu0 0.0
    %2935 = vmatprep.subr.mxu0 0.0
    %2936 = vmatpush2.msra.mxu0 0.0
    %2937 = vmatprep.subr.mxu0 0.0
    %2938 = vmatpush2.msra.mxu0 0.0
    %2939 = vmatprep.subr.mxu0 0.0
    %2940 = vmatpush2.msra.mxu0 0.0
    %2941 = vmatprep.subr.mxu0 0.0
    %2942 = vmatpush2.msra.mxu0 0.0
    %2943 = vmatprep.mubr.f32.mxu0 0.0
    %2944 = vmatmul.mubr.f32.gmra.mxu0 %v2731
    %v2945 = vpop.f32.mrf.mxu0
    %v2946 = vadd.f32 %v2877, %v2945
    %v2947 = vpop.f32.mrf.mxu0
    %2948 = vdwg.mxu0
    %v2949 = vadd.f32 %v2433, %v2800
    %v2950 = vsub.f32 0.0, %v2949
    %v2951 = vmul.f32 %v2950, 1.442695
    %v2952 = vpow.pop %v2951
    %v2953 = vadd.f32 %v2952, 1.0
    %v2954 = vrcp.pop %v2953
    %v2955 = vmul.f32 1.0, %v2954
    %v2956 = vadd.f32 %v2555, %v2870
    %v2957 = vsub.f32 0.0, %v2956
    %v2958 = vmul.f32 %v2957, 1.442695
    %v2959 = vpow.pop %v2958
    %v2960 = vadd.f32 %v2959, 1.0
    %v2961 = vrcp.pop %v2960
    %v2962 = vmul.f32 1.0, %v2961
    %v2963 = vmul.f32 %v2955, %v2946
    %v2964 = vadd.f32 %v2677, %v2963
    %v2965 = vtanh.pop %v2964
    %v2966 = vsub.f32 1.0, %v2962
    %v2967 = vmul.f32 %v2966, %v2965
    %v2968 = vmul.f32 %v2962, 0.0
    %v2969 = vadd.f32 %v2967, %v2968
    %v2971 = vsel %vm2730, %v2969, 0
    %2973 = vmatprep.subr.mxu0 0.0
    %2974 = vmatpush1.msra.mxu0 0.0
    %2975 = vmatprep.subr.mxu0 0.0
    %2976 = vmatpush1.msra.mxu0 0.0
    %2977 = vmatprep.subr.mxu0 0.0
    %2978 = vmatpush1.msra.mxu0 0.0
    %2979 = vmatprep.subr.mxu0 0.0
    %2980 = vmatpush1.msra.mxu0 0.0
    %2981 = vmatprep.subr.mxu0 0.0
    %2982 = vmatpush1.msra.mxu0 0.0
    %2983 = vmatprep.subr.mxu0 0.0
    %2984 = vmatpush1.msra.mxu0 0.0
    %2985 = vmatprep.subr.mxu0 0.0
    %2986 = vmatpush1.msra.mxu0 0.0
    %2987 = vmatprep.subr.mxu0 0.0
    %2988 = vmatpush1.msra.mxu0 0.0
    %2989 = vmatprep.subr.mxu0 0.0
    %2990 = vmatpush1.msra.mxu0 0.0
    %2991 = vmatprep.subr.mxu0 0.0
    %2992 = vmatpush1.msra.mxu0 0.0
    %2993 = vmatprep.subr.mxu0 0.0
    %2994 = vmatpush1.msra.mxu0 0.0
    %2995 = vmatprep.subr.mxu0 0.0
    %2996 = vmatpush1.msra.mxu0 0.0
    %2997 = vmatprep.subr.mxu0 0.0
    %2998 = vmatpush1.msra.mxu0 %v2718
    %2999 = vmatprep.subr.mxu0 0.0
    %3000 = vmatpush1.msra.mxu0 %v2717
    %3001 = vmatprep.subr.mxu0 0.0
    %3002 = vmatpush1.msra.mxu0 %v2716
    %3003 = vmatprep.subr.mxu0 0.0
    %3004 = vmatpush1.msra.mxu0 %v2715
    %3005 = vmatprep.subr.mxu0 0.0
    %3006 = vmatpush2.msra.mxu0 0.0
    %3007 = vmatprep.subr.mxu0 0.0
    %3008 = vmatpush2.msra.mxu0 0.0
    %3009 = vmatprep.subr.mxu0 0.0
    %3010 = vmatpush2.msra.mxu0 0.0
    %3011 = vmatprep.subr.mxu0 0.0
    %3012 = vmatpush2.msra.mxu0 0.0
    %3013 = vmatprep.subr.mxu0 0.0
    %3014 = vmatpush2.msra.mxu0 0.0
    %3015 = vmatprep.subr.mxu0 0.0
    %3016 = vmatpush2.msra.mxu0 0.0
    %3017 = vmatprep.subr.mxu0 0.0
    %3018 = vmatpush2.msra.mxu0 0.0
    %3019 = vmatprep.subr.mxu0 0.0
    %3020 = vmatpush2.msra.mxu0 0.0
    %3021 = vmatprep.subr.mxu0 0.0
    %3022 = vmatpush2.msra.mxu0 0.0
    %3023 = vmatprep.subr.mxu0 0.0
    %3024 = vmatpush2.msra.mxu0 0.0
    %3025 = vmatprep.subr.mxu0 0.0
    %3026 = vmatpush2.msra.mxu0 0.0
    %3027 = vmatprep.subr.mxu0 0.0
    %3028 = vmatpush2.msra.mxu0 0.0
    %3029 = vmatprep.subr.mxu0 0.0
    %3030 = vmatpush2.msra.mxu0 0.0
    %3031 = vmatprep.subr.mxu0 0.0
    %3032 = vmatpush2.msra.mxu0 0.0
    %3033 = vmatprep.subr.mxu0 0.0
    %3034 = vmatpush2.msra.mxu0 0.0
    %3035 = vmatprep.subr.mxu0 0.0
    %3036 = vmatpush2.msra.mxu0 0.0
    %3037 = vmatprep.mubr.f32.mxu0 0.0
    %3038 = vmatmul.mubr.f32.gmra.mxu0 %v2971
    %v3039 = vpop.f32.mrf.mxu0
    %v3040 = vadd.f32 0.0, %v3039
    %v3041 = vpop.f32.mrf.mxu0
    %3042 = vdwg.mxu0
    %3043 = vmatprep.subr.mxu0 0.0
    %3044 = vmatpush1.msra.mxu0 0.0
    %3045 = vmatprep.subr.mxu0 0.0
    %3046 = vmatpush1.msra.mxu0 0.0
    %3047 = vmatprep.subr.mxu0 0.0
    %3048 = vmatpush1.msra.mxu0 0.0
    %3049 = vmatprep.subr.mxu0 0.0
    %3050 = vmatpush1.msra.mxu0 0.0
    %3051 = vmatprep.subr.mxu0 0.0
    %3052 = vmatpush1.msra.mxu0 0.0
    %3053 = vmatprep.subr.mxu0 0.0
    %3054 = vmatpush1.msra.mxu0 0.0
    %3055 = vmatprep.subr.mxu0 0.0
    %3056 = vmatpush1.msra.mxu0 0.0
    %3057 = vmatprep.subr.mxu0 0.0
    %3058 = vmatpush1.msra.mxu0 0.0
    %3059 = vmatprep.subr.mxu0 0.0
    %3060 = vmatpush1.msra.mxu0 0.0
    %3061 = vmatprep.subr.mxu0 0.0
    %3062 = vmatpush1.msra.mxu0 0.0
    %3063 = vmatprep.subr.mxu0 0.0
    %3064 = vmatpush1.msra.mxu0 0.0
    %3065 = vmatprep.subr.mxu0 0.0
    %3066 = vmatpush1.msra.mxu0 0.0
    %3067 = vmatprep.subr.mxu0 0.0
    %3068 = vmatpush1.msra.mxu0 %v2723
    %3069 = vmatprep.subr.mxu0 0.0
    %3070 = vmatpush1.msra.mxu0 %v2722
    %3071 = vmatprep.subr.mxu0 0.0
    %3072 = vmatpush1.msra.mxu0 %v2721
    %3073 = vmatprep.subr.mxu0 0.0
    %3074 = vmatpush1.msra.mxu0 %v2720
    %3075 = vmatprep.subr.mxu0 0.0
    %3076 = vmatpush2.msra.mxu0 0.0
    %3077 = vmatprep.subr.mxu0 0.0
    %3078 = vmatpush2.msra.mxu0 0.0
    %3079 = vmatprep.subr.mxu0 0.0
    %3080 = vmatpush2.msra.mxu0 0.0
    %3081 = vmatprep.subr.mxu0 0.0
    %3082 = vmatpush2.msra.mxu0 0.0
    %3083 = vmatprep.subr.mxu0 0.0
    %3084 = vmatpush2.msra.mxu0 0.0
    %3085 = vmatprep.subr.mxu0 0.0
    %3086 = vmatpush2.msra.mxu0 0.0
    %3087 = vmatprep.subr.mxu0 0.0
    %3088 = vmatpush2.msra.mxu0 0.0
    %3089 = vmatprep.subr.mxu0 0.0
    %3090 = vmatpush2.msra.mxu0 0.0
    %3091 = vmatprep.subr.mxu0 0.0
    %3092 = vmatpush2.msra.mxu0 0.0
    %3093 = vmatprep.subr.mxu0 0.0
    %3094 = vmatpush2.msra.mxu0 0.0
    %3095 = vmatprep.subr.mxu0 0.0
    %3096 = vmatpush2.msra.mxu0 0.0
    %3097 = vmatprep.subr.mxu0 0.0
    %3098 = vmatpush2.msra.mxu0 0.0
    %3099 = vmatprep.subr.mxu0 0.0
    %3100 = vmatpush2.msra.mxu0 0.0
    %3101 = vmatprep.subr.mxu0 0.0
    %3102 = vmatpush2.msra.mxu0 0.0
    %3103 = vmatprep.subr.mxu0 0.0
    %3104 = vmatpush2.msra.mxu0 0.0
    %3105 = vmatprep.subr.mxu0 0.0
    %3106 = vmatpush2.msra.mxu0 0.0
    %3107 = vmatprep.mubr.f32.mxu0 0.0
    %3108 = vmatmul.mubr.f32.gmra.mxu0 %v2971
    %v3109 = vpop.f32.mrf.mxu0
    %v3110 = vadd.f32 0.0, %v3109
    %v3111 = vpop.f32.mrf.mxu0
    %3112 = vdwg.mxu0
    %3113 = vmatprep.subr.mxu0 0.0
    %3114 = vmatpush1.msra.mxu0 0.0
    %3115 = vmatprep.subr.mxu0 0.0
    %3116 = vmatpush1.msra.mxu0 0.0
    %3117 = vmatprep.subr.mxu0 0.0
    %3118 = vmatpush1.msra.mxu0 0.0
    %3119 = vmatprep.subr.mxu0 0.0
    %3120 = vmatpush1.msra.mxu0 0.0
    %3121 = vmatprep.subr.mxu0 0.0
    %3122 = vmatpush1.msra.mxu0 0.0
    %3123 = vmatprep.subr.mxu0 0.0
    %3124 = vmatpush1.msra.mxu0 0.0
    %3125 = vmatprep.subr.mxu0 0.0
    %3126 = vmatpush1.msra.mxu0 0.0
    %3127 = vmatprep.subr.mxu0 0.0
    %3128 = vmatpush1.msra.mxu0 0.0
    %3129 = vmatprep.subr.mxu0 0.0
    %3130 = vmatpush1.msra.mxu0 0.0
    %3131 = vmatprep.subr.mxu0 0.0
    %3132 = vmatpush1.msra.mxu0 0.0
    %3133 = vmatprep.subr.mxu0 0.0
    %3134 = vmatpush1.msra.mxu0 0.0
    %3135 = vmatprep.subr.mxu0 0.0
    %3136 = vmatpush1.msra.mxu0 0.0
    %3137 = vmatprep.subr.mxu0 0.0
    %3138 = vmatpush1.msra.mxu0 %v2728
    %3139 = vmatprep.subr.mxu0 0.0
    %3140 = vmatpush1.msra.mxu0 %v2727
    %3141 = vmatprep.subr.mxu0 0.0
    %3142 = vmatpush1.msra.mxu0 %v2726
    %3143 = vmatprep.subr.mxu0 0.0
    %3144 = vmatpush1.msra.mxu0 %v2725
    %3145 = vmatprep.subr.mxu0 0.0
    %3146 = vmatpush2.msra.mxu0 0.0
    %3147 = vmatprep.subr.mxu0 0.0
    %3148 = vmatpush2.msra.mxu0 0.0
    %3149 = vmatprep.subr.mxu0 0.0
    %3150 = vmatpush2.msra.mxu0 0.0
    %3151 = vmatprep.subr.mxu0 0.0
    %3152 = vmatpush2.msra.mxu0 0.0
    %3153 = vmatprep.subr.mxu0 0.0
    %3154 = vmatpush2.msra.mxu0 0.0
    %3155 = vmatprep.subr.mxu0 0.0
    %3156 = vmatpush2.msra.mxu0 0.0
    %3157 = vmatprep.subr.mxu0 0.0
    %3158 = vmatpush2.msra.mxu0 0.0
    %3159 = vmatprep.subr.mxu0 0.0
    %3160 = vmatpush2.msra.mxu0 0.0
    %3161 = vmatprep.subr.mxu0 0.0
    %3162 = vmatpush2.msra.mxu0 0.0
    %3163 = vmatprep.subr.mxu0 0.0
    %3164 = vmatpush2.msra.mxu0 0.0
    %3165 = vmatprep.subr.mxu0 0.0
    %3166 = vmatpush2.msra.mxu0 0.0
    %3167 = vmatprep.subr.mxu0 0.0
    %3168 = vmatpush2.msra.mxu0 0.0
    %3169 = vmatprep.subr.mxu0 0.0
    %3170 = vmatpush2.msra.mxu0 0.0
    %3171 = vmatprep.subr.mxu0 0.0
    %3172 = vmatpush2.msra.mxu0 0.0
    %3173 = vmatprep.subr.mxu0 0.0
    %3174 = vmatpush2.msra.mxu0 0.0
    %3175 = vmatprep.subr.mxu0 0.0
    %3176 = vmatpush2.msra.mxu0 0.0
    %3177 = vmatprep.mubr.f32.mxu0 0.0
    %3178 = vmatmul.mubr.f32.gmra.mxu0 %v2971
    %v3179 = vpop.f32.mrf.mxu0
    %v3180 = vadd.f32 %v2877, %v3179
    %v3181 = vpop.f32.mrf.mxu0
    %3182 = vdwg.mxu0
    %v3183 = vadd.f32 %v2438, %v3040
    %v3184 = vsub.f32 0.0, %v3183
    %v3185 = vmul.f32 %v3184, 1.442695
    %v3186 = vpow.pop %v3185
    %v3187 = vadd.f32 %v3186, 1.0
    %v3188 = vrcp.pop %v3187
    %v3189 = vmul.f32 1.0, %v3188
    %v3190 = vadd.f32 %v2560, %v3110
    %v3191 = vsub.f32 0.0, %v3190
    %v3192 = vmul.f32 %v3191, 1.442695
    %v3193 = vpow.pop %v3192
    %v3194 = vadd.f32 %v3193, 1.0
    %v3195 = vrcp.pop %v3194
    %v3196 = vmul.f32 1.0, %v3195
    %v3197 = vmul.f32 %v3189, %v3180
    %v3198 = vadd.f32 %v2682, %v3197
    %v3199 = vtanh.pop %v3198
    %v3200 = vsub.f32 1.0, %v3196
    %v3201 = vmul.f32 %v3200, %v3199
    %v3202 = vmul.f32 %v3196, %v2969
    %v3203 = vadd.f32 %v3201, %v3202
    %v3205 = vsel %vm2730, %v3203, 0
    %3207 = vmatprep.subr.mxu0 0.0
    %3208 = vmatpush1.msra.mxu0 0.0
    %3209 = vmatprep.subr.mxu0 0.0
    %3210 = vmatpush1.msra.mxu0 0.0
    %3211 = vmatprep.subr.mxu0 0.0
    %3212 = vmatpush1.msra.mxu0 0.0
    %3213 = vmatprep.subr.mxu0 0.0
    %3214 = vmatpush1.msra.mxu0 0.0
    %3215 = vmatprep.subr.mxu0 0.0
    %3216 = vmatpush1.msra.mxu0 0.0
    %3217 = vmatprep.subr.mxu0 0.0
    %3218 = vmatpush1.msra.mxu0 0.0
    %3219 = vmatprep.subr.mxu0 0.0
    %3220 = vmatpush1.msra.mxu0 0.0
    %3221 = vmatprep.subr.mxu0 0.0
    %3222 = vmatpush1.msra.mxu0 0.0
    %3223 = vmatprep.subr.mxu0 0.0
    %3224 = vmatpush1.msra.mxu0 0.0
    %3225 = vmatprep.subr.mxu0 0.0
    %3226 = vmatpush1.msra.mxu0 0.0
    %3227 = vmatprep.subr.mxu0 0.0
    %3228 = vmatpush1.msra.mxu0 0.0
    %3229 = vmatprep.subr.mxu0 0.0
    %3230 = vmatpush1.msra.mxu0 0.0
    %3231 = vmatprep.subr.mxu0 0.0
    %3232 = vmatpush1.msra.mxu0 %v2718
    %3233 = vmatprep.subr.mxu0 0.0
    %3234 = vmatpush1.msra.mxu0 %v2717
    %3235 = vmatprep.subr.mxu0 0.0
    %3236 = vmatpush1.msra.mxu0 %v2716
    %3237 = vmatprep.subr.mxu0 0.0
    %3238 = vmatpush1.msra.mxu0 %v2715
    %3239 = vmatprep.subr.mxu0 0.0
    %3240 = vmatpush2.msra.mxu0 0.0
    %3241 = vmatprep.subr.mxu0 0.0
    %3242 = vmatpush2.msra.mxu0 0.0
    %3243 = vmatprep.subr.mxu0 0.0
    %3244 = vmatpush2.msra.mxu0 0.0
    %3245 = vmatprep.subr.mxu0 0.0
    %3246 = vmatpush2.msra.mxu0 0.0
    %3247 = vmatprep.subr.mxu0 0.0
    %3248 = vmatpush2.msra.mxu0 0.0
    %3249 = vmatprep.subr.mxu0 0.0
    %3250 = vmatpush2.msra.mxu0 0.0
    %3251 = vmatprep.subr.mxu0 0.0
    %3252 = vmatpush2.msra.mxu0 0.0
    %3253 = vmatprep.subr.mxu0 0.0
    %3254 = vmatpush2.msra.mxu0 0.0
    %3255 = vmatprep.subr.mxu0 0.0
    %3256 = vmatpush2.msra.mxu0 0.0
    %3257 = vmatprep.subr.mxu0 0.0
    %3258 = vmatpush2.msra.mxu0 0.0
    %3259 = vmatprep.subr.mxu0 0.0
    %3260 = vmatpush2.msra.mxu0 0.0
    %3261 = vmatprep.subr.mxu0 0.0
    %3262 = vmatpush2.msra.mxu0 0.0
    %3263 = vmatprep.subr.mxu0 0.0
    %3264 = vmatpush2.msra.mxu0 0.0
    %3265 = vmatprep.subr.mxu0 0.0
    %3266 = vmatpush2.msra.mxu0 0.0
    %3267 = vmatprep.subr.mxu0 0.0
    %3268 = vmatpush2.msra.mxu0 0.0
    %3269 = vmatprep.subr.mxu0 0.0
    %3270 = vmatpush2.msra.mxu0 0.0
    %3271 = vmatprep.mubr.f32.mxu0 0.0
    %3272 = vmatmul.mubr.f32.gmra.mxu0 %v3205
    %v3273 = vpop.f32.mrf.mxu0
    %v3274 = vadd.f32 0.0, %v3273
    %v3275 = vpop.f32.mrf.mxu0
    %3276 = vdwg.mxu0
    %3277 = vmatprep.subr.mxu0 0.0
    %3278 = vmatpush1.msra.mxu0 0.0
    %3279 = vmatprep.subr.mxu0 0.0
    %3280 = vmatpush1.msra.mxu0 0.0
    %3281 = vmatprep.subr.mxu0 0.0
    %3282 = vmatpush1.msra.mxu0 0.0
    %3283 = vmatprep.subr.mxu0 0.0
    %3284 = vmatpush1.msra.mxu0 0.0
    %3285 = vmatprep.subr.mxu0 0.0
    %3286 = vmatpush1.msra.mxu0 0.0
    %3287 = vmatprep.subr.mxu0 0.0
    %3288 = vmatpush1.msra.mxu0 0.0
    %3289 = vmatprep.subr.mxu0 0.0
    %3290 = vmatpush1.msra.mxu0 0.0
    %3291 = vmatprep.subr.mxu0 0.0
    %3292 = vmatpush1.msra.mxu0 0.0
    %3293 = vmatprep.subr.mxu0 0.0
    %3294 = vmatpush1.msra.mxu0 0.0
    %3295 = vmatprep.subr.mxu0 0.0
    %3296 = vmatpush1.msra.mxu0 0.0
    %3297 = vmatprep.subr.mxu0 0.0
    %3298 = vmatpush1.msra.mxu0 0.0
    %3299 = vmatprep.subr.mxu0 0.0
    %3300 = vmatpush1.msra.mxu0 0.0
    %3301 = vmatprep.subr.mxu0 0.0
    %3302 = vmatpush1.msra.mxu0 %v2723
    %3303 = vmatprep.subr.mxu0 0.0
    %3304 = vmatpush1.msra.mxu0 %v2722
    %3305 = vmatprep.subr.mxu0 0.0
    %3306 = vmatpush1.msra.mxu0 %v2721
    %3307 = vmatprep.subr.mxu0 0.0
    %3308 = vmatpush1.msra.mxu0 %v2720
    %3309 = vmatprep.subr.mxu0 0.0
    %3310 = vmatpush2.msra.mxu0 0.0
    %3311 = vmatprep.subr.mxu0 0.0
    %3312 = vmatpush2.msra.mxu0 0.0
    %3313 = vmatprep.subr.mxu0 0.0
    %3314 = vmatpush2.msra.mxu0 0.0
    %3315 = vmatprep.subr.mxu0 0.0
    %3316 = vmatpush2.msra.mxu0 0.0
    %3317 = vmatprep.subr.mxu0 0.0
    %3318 = vmatpush2.msra.mxu0 0.0
    %3319 = vmatprep.subr.mxu0 0.0
    %3320 = vmatpush2.msra.mxu0 0.0
    %3321 = vmatprep.subr.mxu0 0.0
    %3322 = vmatpush2.msra.mxu0 0.0
    %3323 = vmatprep.subr.mxu0 0.0
    %3324 = vmatpush2.msra.mxu0 0.0
    %3325 = vmatprep.subr.mxu0 0.0
    %3326 = vmatpush2.msra.mxu0 0.0
    %3327 = vmatprep.subr.mxu0 0.0
    %3328 = vmatpush2.msra.mxu0 0.0
    %3329 = vmatprep.subr.mxu0 0.0
    %3330 = vmatpush2.msra.mxu0 0.0
    %3331 = vmatprep.subr.mxu0 0.0
    %3332 = vmatpush2.msra.mxu0 0.0
    %3333 = vmatprep.subr.mxu0 0.0
    %3334 = vmatpush2.msra.mxu0 0.0
    %3335 = vmatprep.subr.mxu0 0.0
    %3336 = vmatpush2.msra.mxu0 0.0
    %3337 = vmatprep.subr.mxu0 0.0
    %3338 = vmatpush2.msra.mxu0 0.0
    %3339 = vmatprep.subr.mxu0 0.0
    %3340 = vmatpush2.msra.mxu0 0.0
    %3341 = vmatprep.mubr.f32.mxu0 0.0
    %3342 = vmatmul.mubr.f32.gmra.mxu0 %v3205
    %v3343 = vpop.f32.mrf.mxu0
    %v3344 = vadd.f32 0.0, %v3343
    %v3345 = vpop.f32.mrf.mxu0
    %3346 = vdwg.mxu0
    %3347 = vmatprep.subr.mxu0 0.0
    %3348 = vmatpush1.msra.mxu0 0.0
    %3349 = vmatprep.subr.mxu0 0.0
    %3350 = vmatpush1.msra.mxu0 0.0
    %3351 = vmatprep.subr.mxu0 0.0
    %3352 = vmatpush1.msra.mxu0 0.0
    %3353 = vmatprep.subr.mxu0 0.0
    %3354 = vmatpush1.msra.mxu0 0.0
    %3355 = vmatprep.subr.mxu0 0.0
    %3356 = vmatpush1.msra.mxu0 0.0
    %3357 = vmatprep.subr.mxu0 0.0
    %3358 = vmatpush1.msra.mxu0 0.0
    %3359 = vmatprep.subr.mxu0 0.0
    %3360 = vmatpush1.msra.mxu0 0.0
    %3361 = vmatprep.subr.mxu0 0.0
    %3362 = vmatpush1.msra.mxu0 0.0
    %3363 = vmatprep.subr.mxu0 0.0
    %3364 = vmatpush1.msra.mxu0 0.0
    %3365 = vmatprep.subr.mxu0 0.0
    %3366 = vmatpush1.msra.mxu0 0.0
    %3367 = vmatprep.subr.mxu0 0.0
    %3368 = vmatpush1.msra.mxu0 0.0
    %3369 = vmatprep.subr.mxu0 0.0
    %3370 = vmatpush1.msra.mxu0 0.0
    %3371 = vmatprep.subr.mxu0 0.0
    %3372 = vmatpush1.msra.mxu0 %v2728
    %3373 = vmatprep.subr.mxu0 0.0
    %3374 = vmatpush1.msra.mxu0 %v2727
    %3375 = vmatprep.subr.mxu0 0.0
    %3376 = vmatpush1.msra.mxu0 %v2726
    %3377 = vmatprep.subr.mxu0 0.0
    %3378 = vmatpush1.msra.mxu0 %v2725
    %3379 = vmatprep.subr.mxu0 0.0
    %3380 = vmatpush2.msra.mxu0 0.0
    %3381 = vmatprep.subr.mxu0 0.0
    %3382 = vmatpush2.msra.mxu0 0.0
    %3383 = vmatprep.subr.mxu0 0.0
    %3384 = vmatpush2.msra.mxu0 0.0
    %3385 = vmatprep.subr.mxu0 0.0
    %3386 = vmatpush2.msra.mxu0 0.0
    %3387 = vmatprep.subr.mxu0 0.0
    %3388 = vmatpush2.msra.mxu0 0.0
    %3389 = vmatprep.subr.mxu0 0.0
    %3390 = vmatpush2.msra.mxu0 0.0
    %3391 = vmatprep.subr.mxu0 0.0
    %3392 = vmatpush2.msra.mxu0 0.0
    %3393 = vmatprep.subr.mxu0 0.0
    %3394 = vmatpush2.msra.mxu0 0.0
    %3395 = vmatprep.subr.mxu0 0.0
    %3396 = vmatpush2.msra.mxu0 0.0
    %3397 = vmatprep.subr.mxu0 0.0
    %3398 = vmatpush2.msra.mxu0 0.0
    %3399 = vmatprep.subr.mxu0 0.0
    %3400 = vmatpush2.msra.mxu0 0.0
    %3401 = vmatprep.subr.mxu0 0.0
    %3402 = vmatpush2.msra.mxu0 0.0
    %3403 = vmatprep.subr.mxu0 0.0
    %3404 = vmatpush2.msra.mxu0 0.0
    %3405 = vmatprep.subr.mxu0 0.0
    %3406 = vmatpush2.msra.mxu0 0.0
    %3407 = vmatprep.subr.mxu0 0.0
    %3408 = vmatpush2.msra.mxu0 0.0
    %3409 = vmatprep.subr.mxu0 0.0
    %3410 = vmatpush2.msra.mxu0 0.0
    %3411 = vmatprep.mubr.f32.mxu0 0.0
    %3412 = vmatmul.mubr.f32.gmra.mxu0 %v3205
    %v3413 = vpop.f32.mrf.mxu0
    %v3414 = vadd.f32 %v2877, %v3413
    %v3415 = vpop.f32.mrf.mxu0
    %3416 = vdwg.mxu0
    %v3417 = vadd.f32 %v2443, %v3274
    %v3418 = vsub.f32 0.0, %v3417
    %v3419 = vmul.f32 %v3418, 1.442695
    %v3420 = vpow.pop %v3419
    %v3421 = vadd.f32 %v3420, 1.0
    %v3422 = vrcp.pop %v3421
    %v3423 = vmul.f32 1.0, %v3422
    %v3424 = vadd.f32 %v2565, %v3344
    %v3425 = vsub.f32 0.0, %v3424
    %v3426 = vmul.f32 %v3425, 1.442695
    %v3427 = vpow.pop %v3426
    %v3428 = vadd.f32 %v3427, 1.0
    %v3429 = vrcp.pop %v3428
    %v3430 = vmul.f32 1.0, %v3429
    %v3431 = vmul.f32 %v3423, %v3414
    %v3432 = vadd.f32 %v2687, %v3431
    %v3433 = vtanh.pop %v3432
    %v3434 = vsub.f32 1.0, %v3430
    %v3435 = vmul.f32 %v3434, %v3433
    %v3436 = vmul.f32 %v3430, %v3203
    %v3437 = vadd.f32 %v3435, %v3436
    %v3439 = vsel %vm2730, %v3437, 0
    %3441 = vmatprep.subr.mxu0 0.0
    %3442 = vmatpush1.msra.mxu0 0.0
    %3443 = vmatprep.subr.mxu0 0.0
    %3444 = vmatpush1.msra.mxu0 0.0
    %3445 = vmatprep.subr.mxu0 0.0
    %3446 = vmatpush1.msra.mxu0 0.0
    %3447 = vmatprep.subr.mxu0 0.0
    %3448 = vmatpush1.msra.mxu0 0.0
    %3449 = vmatprep.subr.mxu0 0.0
    %3450 = vmatpush1.msra.mxu0 0.0
    %3451 = vmatprep.subr.mxu0 0.0
    %3452 = vmatpush1.msra.mxu0 0.0
    %3453 = vmatprep.subr.mxu0 0.0
    %3454 = vmatpush1.msra.mxu0 0.0
    %3455 = vmatprep.subr.mxu0 0.0
    %3456 = vmatpush1.msra.mxu0 0.0
    %3457 = vmatprep.subr.mxu0 0.0
    %3458 = vmatpush1.msra.mxu0 0.0
    %3459 = vmatprep.subr.mxu0 0.0
    %3460 = vmatpush1.msra.mxu0 0.0
    %3461 = vmatprep.subr.mxu0 0.0
    %3462 = vmatpush1.msra.mxu0 0.0
    %3463 = vmatprep.subr.mxu0 0.0
    %3464 = vmatpush1.msra.mxu0 0.0
    %3465 = vmatprep.subr.mxu0 0.0
    %3466 = vmatpush1.msra.mxu0 %v2718
    %3467 = vmatprep.subr.mxu0 0.0
    %3468 = vmatpush1.msra.mxu0 %v2717
    %3469 = vmatprep.subr.mxu0 0.0
    %3470 = vmatpush1.msra.mxu0 %v2716
    %3471 = vmatprep.subr.mxu0 0.0
    %3472 = vmatpush1.msra.mxu0 %v2715
    %3473 = vmatprep.subr.mxu0 0.0
    %3474 = vmatpush2.msra.mxu0 0.0
    %3475 = vmatprep.subr.mxu0 0.0
    %3476 = vmatpush2.msra.mxu0 0.0
    %3477 = vmatprep.subr.mxu0 0.0
    %3478 = vmatpush2.msra.mxu0 0.0
    %3479 = vmatprep.subr.mxu0 0.0
    %3480 = vmatpush2.msra.mxu0 0.0
    %3481 = vmatprep.subr.mxu0 0.0
    %3482 = vmatpush2.msra.mxu0 0.0
    %3483 = vmatprep.subr.mxu0 0.0
    %3484 = vmatpush2.msra.mxu0 0.0
    %3485 = vmatprep.subr.mxu0 0.0
    %3486 = vmatpush2.msra.mxu0 0.0
    %3487 = vmatprep.subr.mxu0 0.0
    %3488 = vmatpush2.msra.mxu0 0.0
    %3489 = vmatprep.subr.mxu0 0.0
    %3490 = vmatpush2.msra.mxu0 0.0
    %3491 = vmatprep.subr.mxu0 0.0
    %3492 = vmatpush2.msra.mxu0 0.0
    %3493 = vmatprep.subr.mxu0 0.0
    %3494 = vmatpush2.msra.mxu0 0.0
    %3495 = vmatprep.subr.mxu0 0.0
    %3496 = vmatpush2.msra.mxu0 0.0
    %3497 = vmatprep.subr.mxu0 0.0
    %3498 = vmatpush2.msra.mxu0 0.0
    %3499 = vmatprep.subr.mxu0 0.0
    %3500 = vmatpush2.msra.mxu0 0.0
    %3501 = vmatprep.subr.mxu0 0.0
    %3502 = vmatpush2.msra.mxu0 0.0
    %3503 = vmatprep.subr.mxu0 0.0
    %3504 = vmatpush2.msra.mxu0 0.0
    %3505 = vmatprep.mubr.f32.mxu0 0.0
    %3506 = vmatmul.mubr.f32.gmra.mxu0 %v3439
    %v3507 = vpop.f32.mrf.mxu0
    %v3508 = vadd.f32 0.0, %v3507
    %v3509 = vpop.f32.mrf.mxu0
    %3510 = vdwg.mxu0
    %3511 = vmatprep.subr.mxu0 0.0
    %3512 = vmatpush1.msra.mxu0 0.0
    %3513 = vmatprep.subr.mxu0 0.0
    %3514 = vmatpush1.msra.mxu0 0.0
    %3515 = vmatprep.subr.mxu0 0.0
    %3516 = vmatpush1.msra.mxu0 0.0
    %3517 = vmatprep.subr.mxu0 0.0
    %3518 = vmatpush1.msra.mxu0 0.0
    %3519 = vmatprep.subr.mxu0 0.0
    %3520 = vmatpush1.msra.mxu0 0.0
    %3521 = vmatprep.subr.mxu0 0.0
    %3522 = vmatpush1.msra.mxu0 0.0
    %3523 = vmatprep.subr.mxu0 0.0
    %3524 = vmatpush1.msra.mxu0 0.0
    %3525 = vmatprep.subr.mxu0 0.0
    %3526 = vmatpush1.msra.mxu0 0.0
    %3527 = vmatprep.subr.mxu0 0.0
    %3528 = vmatpush1.msra.mxu0 0.0
    %3529 = vmatprep.subr.mxu0 0.0
    %3530 = vmatpush1.msra.mxu0 0.0
    %3531 = vmatprep.subr.mxu0 0.0
    %3532 = vmatpush1.msra.mxu0 0.0
    %3533 = vmatprep.subr.mxu0 0.0
    %3534 = vmatpush1.msra.mxu0 0.0
    %3535 = vmatprep.subr.mxu0 0.0
    %3536 = vmatpush1.msra.mxu0 %v2723
    %3537 = vmatprep.subr.mxu0 0.0
    %3538 = vmatpush1.msra.mxu0 %v2722
    %3539 = vmatprep.subr.mxu0 0.0
    %3540 = vmatpush1.msra.mxu0 %v2721
    %3541 = vmatprep.subr.mxu0 0.0
    %3542 = vmatpush1.msra.mxu0 %v2720
    %3543 = vmatprep.subr.mxu0 0.0
    %3544 = vmatpush2.msra.mxu0 0.0
    %3545 = vmatprep.subr.mxu0 0.0
    %3546 = vmatpush2.msra.mxu0 0.0
    %3547 = vmatprep.subr.mxu0 0.0
    %3548 = vmatpush2.msra.mxu0 0.0
    %3549 = vmatprep.subr.mxu0 0.0
    %3550 = vmatpush2.msra.mxu0 0.0
    %3551 = vmatprep.subr.mxu0 0.0
    %3552 = vmatpush2.msra.mxu0 0.0
    %3553 = vmatprep.subr.mxu0 0.0
    %3554 = vmatpush2.msra.mxu0 0.0
    %3555 = vmatprep.subr.mxu0 0.0
    %3556 = vmatpush2.msra.mxu0 0.0
    %3557 = vmatprep.subr.mxu0 0.0
    %3558 = vmatpush2.msra.mxu0 0.0
    %3559 = vmatprep.subr.mxu0 0.0
    %3560 = vmatpush2.msra.mxu0 0.0
    %3561 = vmatprep.subr.mxu0 0.0
    %3562 = vmatpush2.msra.mxu0 0.0
    %3563 = vmatprep.subr.mxu0 0.0
    %3564 = vmatpush2.msra.mxu0 0.0
    %3565 = vmatprep.subr.mxu0 0.0
    %3566 = vmatpush2.msra.mxu0 0.0
    %3567 = vmatprep.subr.mxu0 0.0
    %3568 = vmatpush2.msra.mxu0 0.0
    %3569 = vmatprep.subr.mxu0 0.0
    %3570 = vmatpush2.msra.mxu0 0.0
    %3571 = vmatprep.subr.mxu0 0.0
    %3572 = vmatpush2.msra.mxu0 0.0
    %3573 = vmatprep.subr.mxu0 0.0
    %3574 = vmatpush2.msra.mxu0 0.0
    %3575 = vmatprep.mubr.f32.mxu0 0.0
    %3576 = vmatmul.mubr.f32.gmra.mxu0 %v3439
    %v3577 = vpop.f32.mrf.mxu0
    %v3578 = vadd.f32 0.0, %v3577
    %v3579 = vpop.f32.mrf.mxu0
    %3580 = vdwg.mxu0
    %3581 = vmatprep.subr.mxu0 0.0
    %3582 = vmatpush1.msra.mxu0 0.0
    %3583 = vmatprep.subr.mxu0 0.0
    %3584 = vmatpush1.msra.mxu0 0.0
    %3585 = vmatprep.subr.mxu0 0.0
    %3586 = vmatpush1.msra.mxu0 0.0
    %3587 = vmatprep.subr.mxu0 0.0
    %3588 = vmatpush1.msra.mxu0 0.0
    %3589 = vmatprep.subr.mxu0 0.0
    %3590 = vmatpush1.msra.mxu0 0.0
    %3591 = vmatprep.subr.mxu0 0.0
    %3592 = vmatpush1.msra.mxu0 0.0
    %3593 = vmatprep.subr.mxu0 0.0
    %3594 = vmatpush1.msra.mxu0 0.0
    %3595 = vmatprep.subr.mxu0 0.0
    %3596 = vmatpush1.msra.mxu0 0.0
    %3597 = vmatprep.subr.mxu0 0.0
    %3598 = vmatpush1.msra.mxu0 0.0
    %3599 = vmatprep.subr.mxu0 0.0
    %3600 = vmatpush1.msra.mxu0 0.0
    %3601 = vmatprep.subr.mxu0 0.0
    %3602 = vmatpush1.msra.mxu0 0.0
    %3603 = vmatprep.subr.mxu0 0.0
    %3604 = vmatpush1.msra.mxu0 0.0
    %3605 = vmatprep.subr.mxu0 0.0
    %3606 = vmatpush1.msra.mxu0 %v2728
    %3607 = vmatprep.subr.mxu0 0.0
    %3608 = vmatpush1.msra.mxu0 %v2727
    %3609 = vmatprep.subr.mxu0 0.0
    %3610 = vmatpush1.msra.mxu0 %v2726
    %3611 = vmatprep.subr.mxu0 0.0
    %3612 = vmatpush1.msra.mxu0 %v2725
    %3613 = vmatprep.subr.mxu0 0.0
    %3614 = vmatpush2.msra.mxu0 0.0
    %3615 = vmatprep.subr.mxu0 0.0
    %3616 = vmatpush2.msra.mxu0 0.0
    %3617 = vmatprep.subr.mxu0 0.0
    %3618 = vmatpush2.msra.mxu0 0.0
    %3619 = vmatprep.subr.mxu0 0.0
    %3620 = vmatpush2.msra.mxu0 0.0
    %3621 = vmatprep.subr.mxu0 0.0
    %3622 = vmatpush2.msra.mxu0 0.0
    %3623 = vmatprep.subr.mxu0 0.0
    %3624 = vmatpush2.msra.mxu0 0.0
    %3625 = vmatprep.subr.mxu0 0.0
    %3626 = vmatpush2.msra.mxu0 0.0
    %3627 = vmatprep.subr.mxu0 0.0
    %3628 = vmatpush2.msra.mxu0 0.0
    %3629 = vmatprep.subr.mxu0 0.0
    %3630 = vmatpush2.msra.mxu0 0.0
    %3631 = vmatprep.subr.mxu0 0.0
    %3632 = vmatpush2.msra.mxu0 0.0
    %3633 = vmatprep.subr.mxu0 0.0
    %3634 = vmatpush2.msra.mxu0 0.0
    %3635 = vmatprep.subr.mxu0 0.0
    %3636 = vmatpush2.msra.mxu0 0.0
    %3637 = vmatprep.subr.mxu0 0.0
    %3638 = vmatpush2.msra.mxu0 0.0
    %3639 = vmatprep.subr.mxu0 0.0
    %3640 = vmatpush2.msra.mxu0 0.0
    %3641 = vmatprep.subr.mxu0 0.0
    %3642 = vmatpush2.msra.mxu0 0.0
    %3643 = vmatprep.subr.mxu0 0.0
    %3644 = vmatpush2.msra.mxu0 0.0
    %3645 = vmatprep.mubr.f32.mxu0 0.0
    %3646 = vmatmul.mubr.f32.gmra.mxu0 %v3439
    %v3647 = vpop.f32.mrf.mxu0
    %v3648 = vadd.f32 %v2877, %v3647
    %v3649 = vpop.f32.mrf.mxu0
    %3650 = vdwg.mxu0
    %v3651 = vadd.f32 %v2448, %v3508
    %v3652 = vsub.f32 0.0, %v3651
    %v3653 = vmul.f32 %v3652, 1.442695
    %v3654 = vpow.pop %v3653
    %v3655 = vadd.f32 %v3654, 1.0
    %v3656 = vrcp.pop %v3655
    %v3657 = vmul.f32 1.0, %v3656
    %v3658 = vadd.f32 %v2570, %v3578
    %v3659 = vsub.f32 0.0, %v3658
    %v3660 = vmul.f32 %v3659, 1.442695
    %v3661 = vpow.pop %v3660
    %v3662 = vadd.f32 %v3661, 1.0
    %v3663 = vrcp.pop %v3662
    %v3664 = vmul.f32 1.0, %v3663
    %v3665 = vmul.f32 %v3657, %v3648
    %v3666 = vadd.f32 %v2692, %v3665
    %v3667 = vtanh.pop %v3666
    %v3668 = vsub.f32 1.0, %v3664
    %v3669 = vmul.f32 %v3668, %v3667
    %v3670 = vmul.f32 %v3664, %v3437
    %v3671 = vadd.f32 %v3669, %v3670
    %v3673 = vsel %vm2730, %v3671, 0
    %3675 = vmatprep.subr.mxu0 0.0
    %3676 = vmatpush1.msra.mxu0 0.0
    %3677 = vmatprep.subr.mxu0 0.0
    %3678 = vmatpush1.msra.mxu0 0.0
    %3679 = vmatprep.subr.mxu0 0.0
    %3680 = vmatpush1.msra.mxu0 0.0
    %3681 = vmatprep.subr.mxu0 0.0
    %3682 = vmatpush1.msra.mxu0 0.0
    %3683 = vmatprep.subr.mxu0 0.0
    %3684 = vmatpush1.msra.mxu0 0.0
    %3685 = vmatprep.subr.mxu0 0.0
    %3686 = vmatpush1.msra.mxu0 0.0
    %3687 = vmatprep.subr.mxu0 0.0
    %3688 = vmatpush1.msra.mxu0 0.0
    %3689 = vmatprep.subr.mxu0 0.0
    %3690 = vmatpush1.msra.mxu0 0.0
    %3691 = vmatprep.subr.mxu0 0.0
    %3692 = vmatpush1.msra.mxu0 0.0
    %3693 = vmatprep.subr.mxu0 0.0
    %3694 = vmatpush1.msra.mxu0 0.0
    %3695 = vmatprep.subr.mxu0 0.0
    %3696 = vmatpush1.msra.mxu0 0.0
    %3697 = vmatprep.subr.mxu0 0.0
    %3698 = vmatpush1.msra.mxu0 0.0
    %3699 = vmatprep.subr.mxu0 0.0
    %3700 = vmatpush1.msra.mxu0 %v2718
    %3701 = vmatprep.subr.mxu0 0.0
    %3702 = vmatpush1.msra.mxu0 %v2717
    %3703 = vmatprep.subr.mxu0 0.0
    %3704 = vmatpush1.msra.mxu0 %v2716
    %3705 = vmatprep.subr.mxu0 0.0
    %3706 = vmatpush1.msra.mxu0 %v2715
    %3707 = vmatprep.subr.mxu0 0.0
    %3708 = vmatpush2.msra.mxu0 0.0
    %3709 = vmatprep.subr.mxu0 0.0
    %3710 = vmatpush2.msra.mxu0 0.0
    %3711 = vmatprep.subr.mxu0 0.0
    %3712 = vmatpush2.msra.mxu0 0.0
    %3713 = vmatprep.subr.mxu0 0.0
    %3714 = vmatpush2.msra.mxu0 0.0
    %3715 = vmatprep.subr.mxu0 0.0
    %3716 = vmatpush2.msra.mxu0 0.0
    %3717 = vmatprep.subr.mxu0 0.0
    %3718 = vmatpush2.msra.mxu0 0.0
    %3719 = vmatprep.subr.mxu0 0.0
    %3720 = vmatpush2.msra.mxu0 0.0
    %3721 = vmatprep.subr.mxu0 0.0
    %3722 = vmatpush2.msra.mxu0 0.0
    %3723 = vmatprep.subr.mxu0 0.0
    %3724 = vmatpush2.msra.mxu0 0.0
    %3725 = vmatprep.subr.mxu0 0.0
    %3726 = vmatpush2.msra.mxu0 0.0
    %3727 = vmatprep.subr.mxu0 0.0
    %3728 = vmatpush2.msra.mxu0 0.0
    %3729 = vmatprep.subr.mxu0 0.0
    %3730 = vmatpush2.msra.mxu0 0.0
    %3731 = vmatprep.subr.mxu0 0.0
    %3732 = vmatpush2.msra.mxu0 0.0
    %3733 = vmatprep.subr.mxu0 0.0
    %3734 = vmatpush2.msra.mxu0 0.0
    %3735 = vmatprep.subr.mxu0 0.0
    %3736 = vmatpush2.msra.mxu0 0.0
    %3737 = vmatprep.subr.mxu0 0.0
    %3738 = vmatpush2.msra.mxu0 0.0
    %3739 = vmatprep.mubr.f32.mxu0 0.0
    %3740 = vmatmul.mubr.f32.gmra.mxu0 %v3673
    %v3741 = vpop.f32.mrf.mxu0
    %v3742 = vadd.f32 0.0, %v3741
    %v3743 = vpop.f32.mrf.mxu0
    %3744 = vdwg.mxu0
    %3745 = vmatprep.subr.mxu0 0.0
    %3746 = vmatpush1.msra.mxu0 0.0
    %3747 = vmatprep.subr.mxu0 0.0
    %3748 = vmatpush1.msra.mxu0 0.0
    %3749 = vmatprep.subr.mxu0 0.0
    %3750 = vmatpush1.msra.mxu0 0.0
    %3751 = vmatprep.subr.mxu0 0.0
    %3752 = vmatpush1.msra.mxu0 0.0
    %3753 = vmatprep.subr.mxu0 0.0
    %3754 = vmatpush1.msra.mxu0 0.0
    %3755 = vmatprep.subr.mxu0 0.0
    %3756 = vmatpush1.msra.mxu0 0.0
    %3757 = vmatprep.subr.mxu0 0.0
    %3758 = vmatpush1.msra.mxu0 0.0
    %3759 = vmatprep.subr.mxu0 0.0
    %3760 = vmatpush1.msra.mxu0 0.0
    %3761 = vmatprep.subr.mxu0 0.0
    %3762 = vmatpush1.msra.mxu0 0.0
    %3763 = vmatprep.subr.mxu0 0.0
    %3764 = vmatpush1.msra.mxu0 0.0
    %3765 = vmatprep.subr.mxu0 0.0
    %3766 = vmatpush1.msra.mxu0 0.0
    %3767 = vmatprep.subr.mxu0 0.0
    %3768 = vmatpush1.msra.mxu0 0.0
    %3769 = vmatprep.subr.mxu0 0.0
    %3770 = vmatpush1.msra.mxu0 %v2723
    %3771 = vmatprep.subr.mxu0 0.0
    %3772 = vmatpush1.msra.mxu0 %v2722
    %3773 = vmatprep.subr.mxu0 0.0
    %3774 = vmatpush1.msra.mxu0 %v2721
    %3775 = vmatprep.subr.mxu0 0.0
    %3776 = vmatpush1.msra.mxu0 %v2720
    %3777 = vmatprep.subr.mxu0 0.0
    %3778 = vmatpush2.msra.mxu0 0.0
    %3779 = vmatprep.subr.mxu0 0.0
    %3780 = vmatpush2.msra.mxu0 0.0
    %3781 = vmatprep.subr.mxu0 0.0
    %3782 = vmatpush2.msra.mxu0 0.0
    %3783 = vmatprep.subr.mxu0 0.0
    %3784 = vmatpush2.msra.mxu0 0.0
    %3785 = vmatprep.subr.mxu0 0.0
    %3786 = vmatpush2.msra.mxu0 0.0
    %3787 = vmatprep.subr.mxu0 0.0
    %3788 = vmatpush2.msra.mxu0 0.0
    %3789 = vmatprep.subr.mxu0 0.0
    %3790 = vmatpush2.msra.mxu0 0.0
    %3791 = vmatprep.subr.mxu0 0.0
    %3792 = vmatpush2.msra.mxu0 0.0
    %3793 = vmatprep.subr.mxu0 0.0
    %3794 = vmatpush2.msra.mxu0 0.0
    %3795 = vmatprep.subr.mxu0 0.0
    %3796 = vmatpush2.msra.mxu0 0.0
    %3797 = vmatprep.subr.mxu0 0.0
    %3798 = vmatpush2.msra.mxu0 0.0
    %3799 = vmatprep.subr.mxu0 0.0
    %3800 = vmatpush2.msra.mxu0 0.0
    %3801 = vmatprep.subr.mxu0 0.0
    %3802 = vmatpush2.msra.mxu0 0.0
    %3803 = vmatprep.subr.mxu0 0.0
    %3804 = vmatpush2.msra.mxu0 0.0
    %3805 = vmatprep.subr.mxu0 0.0
    %3806 = vmatpush2.msra.mxu0 0.0
    %3807 = vmatprep.subr.mxu0 0.0
    %3808 = vmatpush2.msra.mxu0 0.0
    %3809 = vmatprep.mubr.f32.mxu0 0.0
    %3810 = vmatmul.mubr.f32.gmra.mxu0 %v3673
    %v3811 = vpop.f32.mrf.mxu0
    %v3812 = vadd.f32 0.0, %v3811
    %v3813 = vpop.f32.mrf.mxu0
    %3814 = vdwg.mxu0
    %3815 = vmatprep.subr.mxu0 0.0
    %3816 = vmatpush1.msra.mxu0 0.0
    %3817 = vmatprep.subr.mxu0 0.0
    %3818 = vmatpush1.msra.mxu0 0.0
    %3819 = vmatprep.subr.mxu0 0.0
    %3820 = vmatpush1.msra.mxu0 0.0
    %3821 = vmatprep.subr.mxu0 0.0
    %3822 = vmatpush1.msra.mxu0 0.0
    %3823 = vmatprep.subr.mxu0 0.0
    %3824 = vmatpush1.msra.mxu0 0.0
    %3825 = vmatprep.subr.mxu0 0.0
    %3826 = vmatpush1.msra.mxu0 0.0
    %3827 = vmatprep.subr.mxu0 0.0
    %3828 = vmatpush1.msra.mxu0 0.0
    %3829 = vmatprep.subr.mxu0 0.0
    %3830 = vmatpush1.msra.mxu0 0.0
    %3831 = vmatprep.subr.mxu0 0.0
    %3832 = vmatpush1.msra.mxu0 0.0
    %3833 = vmatprep.subr.mxu0 0.0
    %3834 = vmatpush1.msra.mxu0 0.0
    %3835 = vmatprep.subr.mxu0 0.0
    %3836 = vmatpush1.msra.mxu0 0.0
    %3837 = vmatprep.subr.mxu0 0.0
    %3838 = vmatpush1.msra.mxu0 0.0
    %3839 = vmatprep.subr.mxu0 0.0
    %3840 = vmatpush1.msra.mxu0 %v2728
    %3841 = vmatprep.subr.mxu0 0.0
    %3842 = vmatpush1.msra.mxu0 %v2727
    %3843 = vmatprep.subr.mxu0 0.0
    %3844 = vmatpush1.msra.mxu0 %v2726
    %3845 = vmatprep.subr.mxu0 0.0
    %3846 = vmatpush1.msra.mxu0 %v2725
    %3847 = vmatprep.subr.mxu0 0.0
    %3848 = vmatpush2.msra.mxu0 0.0
    %3849 = vmatprep.subr.mxu0 0.0
    %3850 = vmatpush2.msra.mxu0 0.0
    %3851 = vmatprep.subr.mxu0 0.0
    %3852 = vmatpush2.msra.mxu0 0.0
    %3853 = vmatprep.subr.mxu0 0.0
    %3854 = vmatpush2.msra.mxu0 0.0
    %3855 = vmatprep.subr.mxu0 0.0
    %3856 = vmatpush2.msra.mxu0 0.0
    %3857 = vmatprep.subr.mxu0 0.0
    %3858 = vmatpush2.msra.mxu0 0.0
    %3859 = vmatprep.subr.mxu0 0.0
    %3860 = vmatpush2.msra.mxu0 0.0
    %3861 = vmatprep.subr.mxu0 0.0
    %3862 = vmatpush2.msra.mxu0 0.0
    %3863 = vmatprep.subr.mxu0 0.0
    %3864 = vmatpush2.msra.mxu0 0.0
    %3865 = vmatprep.subr.mxu0 0.0
    %3866 = vmatpush2.msra.mxu0 0.0
    %3867 = vmatprep.subr.mxu0 0.0
    %3868 = vmatpush2.msra.mxu0 0.0
    %3869 = vmatprep.subr.mxu0 0.0
    %3870 = vmatpush2.msra.mxu0 0.0
    %3871 = vmatprep.subr.mxu0 0.0
    %3872 = vmatpush2.msra.mxu0 0.0
    %3873 = vmatprep.subr.mxu0 0.0
    %3874 = vmatpush2.msra.mxu0 0.0
    %3875 = vmatprep.subr.mxu0 0.0
    %3876 = vmatpush2.msra.mxu0 0.0
    %3877 = vmatprep.subr.mxu0 0.0
    %3878 = vmatpush2.msra.mxu0 0.0
    %3879 = vmatprep.mubr.f32.mxu0 0.0
    %3880 = vmatmul.mubr.f32.gmra.mxu0 %v3673
    %v3881 = vpop.f32.mrf.mxu0
    %v3882 = vadd.f32 %v2877, %v3881
    %v3883 = vpop.f32.mrf.mxu0
    %3884 = vdwg.mxu0
    %v3885 = vadd.f32 %v2453, %v3742
    %v3886 = vsub.f32 0.0, %v3885
    %v3887 = vmul.f32 %v3886, 1.442695
    %v3888 = vpow.pop %v3887
    %v3889 = vadd.f32 %v3888, 1.0
    %v3890 = vrcp.pop %v3889
    %v3891 = vmul.f32 1.0, %v3890
    %v3892 = vadd.f32 %v2575, %v3812
    %v3893 = vsub.f32 0.0, %v3892
    %v3894 = vmul.f32 %v3893, 1.442695
    %v3895 = vpow.pop %v3894
    %v3896 = vadd.f32 %v3895, 1.0
    %v3897 = vrcp.pop %v3896
    %v3898 = vmul.f32 1.0, %v3897
    %v3899 = vmul.f32 %v3891, %v3882
    %v3900 = vadd.f32 %v2697, %v3899
    %v3901 = vtanh.pop %v3900
    %v3902 = vsub.f32 1.0, %v3898
    %v3903 = vmul.f32 %v3902, %v3901
    %v3904 = vmul.f32 %v3898, %v3671
    %v3905 = vadd.f32 %v3903, %v3904
    %v3907 = vsel %vm2730, %v3905, 0
    %3909 = vmatprep.subr.mxu0 0.0
    %3910 = vmatpush1.msra.mxu0 0.0
    %3911 = vmatprep.subr.mxu0 0.0
    %3912 = vmatpush1.msra.mxu0 0.0
    %3913 = vmatprep.subr.mxu0 0.0
    %3914 = vmatpush1.msra.mxu0 0.0
    %3915 = vmatprep.subr.mxu0 0.0
    %3916 = vmatpush1.msra.mxu0 0.0
    %3917 = vmatprep.subr.mxu0 0.0
    %3918 = vmatpush1.msra.mxu0 0.0
    %3919 = vmatprep.subr.mxu0 0.0
    %3920 = vmatpush1.msra.mxu0 0.0
    %3921 = vmatprep.subr.mxu0 0.0
    %3922 = vmatpush1.msra.mxu0 0.0
    %3923 = vmatprep.subr.mxu0 0.0
    %3924 = vmatpush1.msra.mxu0 0.0
    %3925 = vmatprep.subr.mxu0 0.0
    %3926 = vmatpush1.msra.mxu0 0.0
    %3927 = vmatprep.subr.mxu0 0.0
    %3928 = vmatpush1.msra.mxu0 0.0
    %3929 = vmatprep.subr.mxu0 0.0
    %3930 = vmatpush1.msra.mxu0 0.0
    %3931 = vmatprep.subr.mxu0 0.0
    %3932 = vmatpush1.msra.mxu0 0.0
    %3933 = vmatprep.subr.mxu0 0.0
    %3934 = vmatpush1.msra.mxu0 %v2718
    %3935 = vmatprep.subr.mxu0 0.0
    %3936 = vmatpush1.msra.mxu0 %v2717
    %3937 = vmatprep.subr.mxu0 0.0
    %3938 = vmatpush1.msra.mxu0 %v2716
    %3939 = vmatprep.subr.mxu0 0.0
    %3940 = vmatpush1.msra.mxu0 %v2715
    %3941 = vmatprep.subr.mxu0 0.0
    %3942 = vmatpush2.msra.mxu0 0.0
    %3943 = vmatprep.subr.mxu0 0.0
    %3944 = vmatpush2.msra.mxu0 0.0
    %3945 = vmatprep.subr.mxu0 0.0
    %3946 = vmatpush2.msra.mxu0 0.0
    %3947 = vmatprep.subr.mxu0 0.0
    %3948 = vmatpush2.msra.mxu0 0.0
    %3949 = vmatprep.subr.mxu0 0.0
    %3950 = vmatpush2.msra.mxu0 0.0
    %3951 = vmatprep.subr.mxu0 0.0
    %3952 = vmatpush2.msra.mxu0 0.0
    %3953 = vmatprep.subr.mxu0 0.0
    %3954 = vmatpush2.msra.mxu0 0.0
    %3955 = vmatprep.subr.mxu0 0.0
    %3956 = vmatpush2.msra.mxu0 0.0
    %3957 = vmatprep.subr.mxu0 0.0
    %3958 = vmatpush2.msra.mxu0 0.0
    %3959 = vmatprep.subr.mxu0 0.0
    %3960 = vmatpush2.msra.mxu0 0.0
    %3961 = vmatprep.subr.mxu0 0.0
    %3962 = vmatpush2.msra.mxu0 0.0
    %3963 = vmatprep.subr.mxu0 0.0
    %3964 = vmatpush2.msra.mxu0 0.0
    %3965 = vmatprep.subr.mxu0 0.0
    %3966 = vmatpush2.msra.mxu0 0.0
    %3967 = vmatprep.subr.mxu0 0.0
    %3968 = vmatpush2.msra.mxu0 0.0
    %3969 = vmatprep.subr.mxu0 0.0
    %3970 = vmatpush2.msra.mxu0 0.0
    %3971 = vmatprep.subr.mxu0 0.0
    %3972 = vmatpush2.msra.mxu0 0.0
    %3973 = vmatprep.mubr.f32.mxu0 0.0
    %3974 = vmatmul.mubr.f32.gmra.mxu0 %v3907
    %v3975 = vpop.f32.mrf.mxu0
    %v3976 = vadd.f32 0.0, %v3975
    %v3977 = vpop.f32.mrf.mxu0
    %3978 = vdwg.mxu0
    %3979 = vmatprep.subr.mxu0 0.0
    %3980 = vmatpush1.msra.mxu0 0.0
    %3981 = vmatprep.subr.mxu0 0.0
    %3982 = vmatpush1.msra.mxu0 0.0
    %3983 = vmatprep.subr.mxu0 0.0
    %3984 = vmatpush1.msra.mxu0 0.0
    %3985 = vmatprep.subr.mxu0 0.0
    %3986 = vmatpush1.msra.mxu0 0.0
    %3987 = vmatprep.subr.mxu0 0.0
    %3988 = vmatpush1.msra.mxu0 0.0
    %3989 = vmatprep.subr.mxu0 0.0
    %3990 = vmatpush1.msra.mxu0 0.0
    %3991 = vmatprep.subr.mxu0 0.0
    %3992 = vmatpush1.msra.mxu0 0.0
    %3993 = vmatprep.subr.mxu0 0.0
    %3994 = vmatpush1.msra.mxu0 0.0
    %3995 = vmatprep.subr.mxu0 0.0
    %3996 = vmatpush1.msra.mxu0 0.0
    %3997 = vmatprep.subr.mxu0 0.0
    %3998 = vmatpush1.msra.mxu0 0.0
    %3999 = vmatprep.subr.mxu0 0.0
    %4000 = vmatpush1.msra.mxu0 0.0
    %4001 = vmatprep.subr.mxu0 0.0
    %4002 = vmatpush1.msra.mxu0 0.0
    %4003 = vmatprep.subr.mxu0 0.0
    %4004 = vmatpush1.msra.mxu0 %v2723
    %4005 = vmatprep.subr.mxu0 0.0
    %4006 = vmatpush1.msra.mxu0 %v2722
    %4007 = vmatprep.subr.mxu0 0.0
    %4008 = vmatpush1.msra.mxu0 %v2721
    %4009 = vmatprep.subr.mxu0 0.0
    %4010 = vmatpush1.msra.mxu0 %v2720
    %4011 = vmatprep.subr.mxu0 0.0
    %4012 = vmatpush2.msra.mxu0 0.0
    %4013 = vmatprep.subr.mxu0 0.0
    %4014 = vmatpush2.msra.mxu0 0.0
    %4015 = vmatprep.subr.mxu0 0.0
    %4016 = vmatpush2.msra.mxu0 0.0
    %4017 = vmatprep.subr.mxu0 0.0
    %4018 = vmatpush2.msra.mxu0 0.0
    %4019 = vmatprep.subr.mxu0 0.0
    %4020 = vmatpush2.msra.mxu0 0.0
    %4021 = vmatprep.subr.mxu0 0.0
    %4022 = vmatpush2.msra.mxu0 0.0
    %4023 = vmatprep.subr.mxu0 0.0
    %4024 = vmatpush2.msra.mxu0 0.0
    %4025 = vmatprep.subr.mxu0 0.0
    %4026 = vmatpush2.msra.mxu0 0.0
    %4027 = vmatprep.subr.mxu0 0.0
    %4028 = vmatpush2.msra.mxu0 0.0
    %4029 = vmatprep.subr.mxu0 0.0
    %4030 = vmatpush2.msra.mxu0 0.0
    %4031 = vmatprep.subr.mxu0 0.0
    %4032 = vmatpush2.msra.mxu0 0.0
    %4033 = vmatprep.subr.mxu0 0.0
    %4034 = vmatpush2.msra.mxu0 0.0
    %4035 = vmatprep.subr.mxu0 0.0
    %4036 = vmatpush2.msra.mxu0 0.0
    %4037 = vmatprep.subr.mxu0 0.0
    %4038 = vmatpush2.msra.mxu0 0.0
    %4039 = vmatprep.subr.mxu0 0.0
    %4040 = vmatpush2.msra.mxu0 0.0
    %4041 = vmatprep.subr.mxu0 0.0
    %4042 = vmatpush2.msra.mxu0 0.0
    %4043 = vmatprep.mubr.f32.mxu0 0.0
    %4044 = vmatmul.mubr.f32.gmra.mxu0 %v3907
    %v4045 = vpop.f32.mrf.mxu0
    %v4046 = vadd.f32 0.0, %v4045
    %v4047 = vpop.f32.mrf.mxu0
    %4048 = vdwg.mxu0
    %4049 = vmatprep.subr.mxu0 0.0
    %4050 = vmatpush1.msra.mxu0 0.0
    %4051 = vmatprep.subr.mxu0 0.0
    %4052 = vmatpush1.msra.mxu0 0.0
    %4053 = vmatprep.subr.mxu0 0.0
    %4054 = vmatpush1.msra.mxu0 0.0
    %4055 = vmatprep.subr.mxu0 0.0
    %4056 = vmatpush1.msra.mxu0 0.0
    %4057 = vmatprep.subr.mxu0 0.0
    %4058 = vmatpush1.msra.mxu0 0.0
    %4059 = vmatprep.subr.mxu0 0.0
    %4060 = vmatpush1.msra.mxu0 0.0
    %4061 = vmatprep.subr.mxu0 0.0
    %4062 = vmatpush1.msra.mxu0 0.0
    %4063 = vmatprep.subr.mxu0 0.0
    %4064 = vmatpush1.msra.mxu0 0.0
    %4065 = vmatprep.subr.mxu0 0.0
    %4066 = vmatpush1.msra.mxu0 0.0
    %4067 = vmatprep.subr.mxu0 0.0
    %4068 = vmatpush1.msra.mxu0 0.0
    %4069 = vmatprep.subr.mxu0 0.0
    %4070 = vmatpush1.msra.mxu0 0.0
    %4071 = vmatprep.subr.mxu0 0.0
    %4072 = vmatpush1.msra.mxu0 0.0
    %4073 = vmatprep.subr.mxu0 0.0
    %4074 = vmatpush1.msra.mxu0 %v2728
    %4075 = vmatprep.subr.mxu0 0.0
    %4076 = vmatpush1.msra.mxu0 %v2727
    %4077 = vmatprep.subr.mxu0 0.0
    %4078 = vmatpush1.msra.mxu0 %v2726
    %4079 = vmatprep.subr.mxu0 0.0
    %4080 = vmatpush1.msra.mxu0 %v2725
    %4081 = vmatprep.subr.mxu0 0.0
    %4082 = vmatpush2.msra.mxu0 0.0
    %4083 = vmatprep.subr.mxu0 0.0
    %4084 = vmatpush2.msra.mxu0 0.0
    %4085 = vmatprep.subr.mxu0 0.0
    %4086 = vmatpush2.msra.mxu0 0.0
    %4087 = vmatprep.subr.mxu0 0.0
    %4088 = vmatpush2.msra.mxu0 0.0
    %4089 = vmatprep.subr.mxu0 0.0
    %4090 = vmatpush2.msra.mxu0 0.0
    %4091 = vmatprep.subr.mxu0 0.0
    %4092 = vmatpush2.msra.mxu0 0.0
    %4093 = vmatprep.subr.mxu0 0.0
    %4094 = vmatpush2.msra.mxu0 0.0
    %4095 = vmatprep.subr.mxu0 0.0
    %4096 = vmatpush2.msra.mxu0 0.0
    %4097 = vmatprep.subr.mxu0 0.0
    %4098 = vmatpush2.msra.mxu0 0.0
    %4099 = vmatprep.subr.mxu0 0.0
    %4100 = vmatpush2.msra.mxu0 0.0
    %4101 = vmatprep.subr.mxu0 0.0
    %4102 = vmatpush2.msra.mxu0 0.0
    %4103 = vmatprep.subr.mxu0 0.0
    %4104 = vmatpush2.msra.mxu0 0.0
    %4105 = vmatprep.subr.mxu0 0.0
    %4106 = vmatpush2.msra.mxu0 0.0
    %4107 = vmatprep.subr.mxu0 0.0
    %4108 = vmatpush2.msra.mxu0 0.0
    %4109 = vmatprep.subr.mxu0 0.0
    %4110 = vmatpush2.msra.mxu0 0.0
    %4111 = vmatprep.subr.mxu0 0.0
    %4112 = vmatpush2.msra.mxu0 0.0
    %4113 = vmatprep.mubr.f32.mxu0 0.0
    %4114 = vmatmul.mubr.f32.gmra.mxu0 %v3907
    %v4115 = vpop.f32.mrf.mxu0
    %v4116 = vadd.f32 %v2877, %v4115
    %v4117 = vpop.f32.mrf.mxu0
    %4118 = vdwg.mxu0
    %v4119 = vadd.f32 %v2458, %v3976
    %v4120 = vsub.f32 0.0, %v4119
    %v4121 = vmul.f32 %v4120, 1.442695
    %v4122 = vpow.pop %v4121
    %v4123 = vadd.f32 %v4122, 1.0
    %v4124 = vrcp.pop %v4123
    %v4125 = vmul.f32 1.0, %v4124
    %v4126 = vadd.f32 %v2580, %v4046
    %v4127 = vsub.f32 0.0, %v4126
    %v4128 = vmul.f32 %v4127, 1.442695
    %v4129 = vpow.pop %v4128
    %v4130 = vadd.f32 %v4129, 1.0
    %v4131 = vrcp.pop %v4130
    %v4132 = vmul.f32 1.0, %v4131
    %v4133 = vmul.f32 %v4125, %v4116
    %v4134 = vadd.f32 %v2702, %v4133
    %v4135 = vtanh.pop %v4134
    %v4136 = vsub.f32 1.0, %v4132
    %v4137 = vmul.f32 %v4136, %v4135
    %v4138 = vmul.f32 %v4132, %v3905
    %v4139 = vadd.f32 %v4137, %v4138
    %v4141 = vsel %vm2730, %v4139, 0
    %4143 = vmatprep.subr.mxu0 0.0
    %4144 = vmatpush1.msra.mxu0 0.0
    %4145 = vmatprep.subr.mxu0 0.0
    %4146 = vmatpush1.msra.mxu0 0.0
    %4147 = vmatprep.subr.mxu0 0.0
    %4148 = vmatpush1.msra.mxu0 0.0
    %4149 = vmatprep.subr.mxu0 0.0
    %4150 = vmatpush1.msra.mxu0 0.0
    %4151 = vmatprep.subr.mxu0 0.0
    %4152 = vmatpush1.msra.mxu0 0.0
    %4153 = vmatprep.subr.mxu0 0.0
    %4154 = vmatpush1.msra.mxu0 0.0
    %4155 = vmatprep.subr.mxu0 0.0
    %4156 = vmatpush1.msra.mxu0 0.0
    %4157 = vmatprep.subr.mxu0 0.0
    %4158 = vmatpush1.msra.mxu0 0.0
    %4159 = vmatprep.subr.mxu0 0.0
    %4160 = vmatpush1.msra.mxu0 0.0
    %4161 = vmatprep.subr.mxu0 0.0
    %4162 = vmatpush1.msra.mxu0 0.0
    %4163 = vmatprep.subr.mxu0 0.0
    %4164 = vmatpush1.msra.mxu0 0.0
    %4165 = vmatprep.subr.mxu0 0.0
    %4166 = vmatpush1.msra.mxu0 0.0
    %4167 = vmatprep.subr.mxu0 0.0
    %4168 = vmatpush1.msra.mxu0 %v2718
    %4169 = vmatprep.subr.mxu0 0.0
    %4170 = vmatpush1.msra.mxu0 %v2717
    %4171 = vmatprep.subr.mxu0 0.0
    %4172 = vmatpush1.msra.mxu0 %v2716
    %4173 = vmatprep.subr.mxu0 0.0
    %4174 = vmatpush1.msra.mxu0 %v2715
    %4175 = vmatprep.subr.mxu0 0.0
    %4176 = vmatpush2.msra.mxu0 0.0
    %4177 = vmatprep.subr.mxu0 0.0
    %4178 = vmatpush2.msra.mxu0 0.0
    %4179 = vmatprep.subr.mxu0 0.0
    %4180 = vmatpush2.msra.mxu0 0.0
    %4181 = vmatprep.subr.mxu0 0.0
    %4182 = vmatpush2.msra.mxu0 0.0
    %4183 = vmatprep.subr.mxu0 0.0
    %4184 = vmatpush2.msra.mxu0 0.0
    %4185 = vmatprep.subr.mxu0 0.0
    %4186 = vmatpush2.msra.mxu0 0.0
    %4187 = vmatprep.subr.mxu0 0.0
    %4188 = vmatpush2.msra.mxu0 0.0
    %4189 = vmatprep.subr.mxu0 0.0
    %4190 = vmatpush2.msra.mxu0 0.0
    %4191 = vmatprep.subr.mxu0 0.0
    %4192 = vmatpush2.msra.mxu0 0.0
    %4193 = vmatprep.subr.mxu0 0.0
    %4194 = vmatpush2.msra.mxu0 0.0
    %4195 = vmatprep.subr.mxu0 0.0
    %4196 = vmatpush2.msra.mxu0 0.0
    %4197 = vmatprep.subr.mxu0 0.0
    %4198 = vmatpush2.msra.mxu0 0.0
    %4199 = vmatprep.subr.mxu0 0.0
    %4200 = vmatpush2.msra.mxu0 0.0
    %4201 = vmatprep.subr.mxu0 0.0
    %4202 = vmatpush2.msra.mxu0 0.0
    %4203 = vmatprep.subr.mxu0 0.0
    %4204 = vmatpush2.msra.mxu0 0.0
    %4205 = vmatprep.subr.mxu0 0.0
    %4206 = vmatpush2.msra.mxu0 0.0
    %4207 = vmatprep.mubr.f32.mxu0 0.0
    %4208 = vmatmul.mubr.f32.gmra.mxu0 %v4141
    %v4209 = vpop.f32.mrf.mxu0
    %v4210 = vadd.f32 0.0, %v4209
    %v4211 = vpop.f32.mrf.mxu0
    %4212 = vdwg.mxu0
    %4213 = vmatprep.subr.mxu0 0.0
    %4214 = vmatpush1.msra.mxu0 0.0
    %4215 = vmatprep.subr.mxu0 0.0
    %4216 = vmatpush1.msra.mxu0 0.0
    %4217 = vmatprep.subr.mxu0 0.0
    %4218 = vmatpush1.msra.mxu0 0.0
    %4219 = vmatprep.subr.mxu0 0.0
    %4220 = vmatpush1.msra.mxu0 0.0
    %4221 = vmatprep.subr.mxu0 0.0
    %4222 = vmatpush1.msra.mxu0 0.0
    %4223 = vmatprep.subr.mxu0 0.0
    %4224 = vmatpush1.msra.mxu0 0.0
    %4225 = vmatprep.subr.mxu0 0.0
    %4226 = vmatpush1.msra.mxu0 0.0
    %4227 = vmatprep.subr.mxu0 0.0
    %4228 = vmatpush1.msra.mxu0 0.0
    %4229 = vmatprep.subr.mxu0 0.0
    %4230 = vmatpush1.msra.mxu0 0.0
    %4231 = vmatprep.subr.mxu0 0.0
    %4232 = vmatpush1.msra.mxu0 0.0
    %4233 = vmatprep.subr.mxu0 0.0
    %4234 = vmatpush1.msra.mxu0 0.0
    %4235 = vmatprep.subr.mxu0 0.0
    %4236 = vmatpush1.msra.mxu0 0.0
    %4237 = vmatprep.subr.mxu0 0.0
    %4238 = vmatpush1.msra.mxu0 %v2723
    %4239 = vmatprep.subr.mxu0 0.0
    %4240 = vmatpush1.msra.mxu0 %v2722
    %4241 = vmatprep.subr.mxu0 0.0
    %4242 = vmatpush1.msra.mxu0 %v2721
    %4243 = vmatprep.subr.mxu0 0.0
    %4244 = vmatpush1.msra.mxu0 %v2720
    %4245 = vmatprep.subr.mxu0 0.0
    %4246 = vmatpush2.msra.mxu0 0.0
    %4247 = vmatprep.subr.mxu0 0.0
    %4248 = vmatpush2.msra.mxu0 0.0
    %4249 = vmatprep.subr.mxu0 0.0
    %4250 = vmatpush2.msra.mxu0 0.0
    %4251 = vmatprep.subr.mxu0 0.0
    %4252 = vmatpush2.msra.mxu0 0.0
    %4253 = vmatprep.subr.mxu0 0.0
    %4254 = vmatpush2.msra.mxu0 0.0
    %4255 = vmatprep.subr.mxu0 0.0
    %4256 = vmatpush2.msra.mxu0 0.0
    %4257 = vmatprep.subr.mxu0 0.0
    %4258 = vmatpush2.msra.mxu0 0.0
    %4259 = vmatprep.subr.mxu0 0.0
    %4260 = vmatpush2.msra.mxu0 0.0
    %4261 = vmatprep.subr.mxu0 0.0
    %4262 = vmatpush2.msra.mxu0 0.0
    %4263 = vmatprep.subr.mxu0 0.0
    %4264 = vmatpush2.msra.mxu0 0.0
    %4265 = vmatprep.subr.mxu0 0.0
    %4266 = vmatpush2.msra.mxu0 0.0
    %4267 = vmatprep.subr.mxu0 0.0
    %4268 = vmatpush2.msra.mxu0 0.0
    %4269 = vmatprep.subr.mxu0 0.0
    %4270 = vmatpush2.msra.mxu0 0.0
    %4271 = vmatprep.subr.mxu0 0.0
    %4272 = vmatpush2.msra.mxu0 0.0
    %4273 = vmatprep.subr.mxu0 0.0
    %4274 = vmatpush2.msra.mxu0 0.0
    %4275 = vmatprep.subr.mxu0 0.0
    %4276 = vmatpush2.msra.mxu0 0.0
    %4277 = vmatprep.mubr.f32.mxu0 0.0
    %4278 = vmatmul.mubr.f32.gmra.mxu0 %v4141
    %v4279 = vpop.f32.mrf.mxu0
    %v4280 = vadd.f32 0.0, %v4279
    %v4281 = vpop.f32.mrf.mxu0
    %4282 = vdwg.mxu0
    %4283 = vmatprep.subr.mxu0 0.0
    %4284 = vmatpush1.msra.mxu0 0.0
    %4285 = vmatprep.subr.mxu0 0.0
    %4286 = vmatpush1.msra.mxu0 0.0
    %4287 = vmatprep.subr.mxu0 0.0
    %4288 = vmatpush1.msra.mxu0 0.0
    %4289 = vmatprep.subr.mxu0 0.0
    %4290 = vmatpush1.msra.mxu0 0.0
    %4291 = vmatprep.subr.mxu0 0.0
    %4292 = vmatpush1.msra.mxu0 0.0
    %4293 = vmatprep.subr.mxu0 0.0
    %4294 = vmatpush1.msra.mxu0 0.0
    %4295 = vmatprep.subr.mxu0 0.0
    %4296 = vmatpush1.msra.mxu0 0.0
    %4297 = vmatprep.subr.mxu0 0.0
    %4298 = vmatpush1.msra.mxu0 0.0
    %4299 = vmatprep.subr.mxu0 0.0
    %4300 = vmatpush1.msra.mxu0 0.0
    %4301 = vmatprep.subr.mxu0 0.0
    %4302 = vmatpush1.msra.mxu0 0.0
    %4303 = vmatprep.subr.mxu0 0.0
    %4304 = vmatpush1.msra.mxu0 0.0
    %4305 = vmatprep.subr.mxu0 0.0
    %4306 = vmatpush1.msra.mxu0 0.0
    %4307 = vmatprep.subr.mxu0 0.0
    %4308 = vmatpush1.msra.mxu0 %v2728
    %4309 = vmatprep.subr.mxu0 0.0
    %4310 = vmatpush1.msra.mxu0 %v2727
    %4311 = vmatprep.subr.mxu0 0.0
    %4312 = vmatpush1.msra.mxu0 %v2726
    %4313 = vmatprep.subr.mxu0 0.0
    %4314 = vmatpush1.msra.mxu0 %v2725
    %4315 = vmatprep.subr.mxu0 0.0
    %4316 = vmatpush2.msra.mxu0 0.0
    %4317 = vmatprep.subr.mxu0 0.0
    %4318 = vmatpush2.msra.mxu0 0.0
    %4319 = vmatprep.subr.mxu0 0.0
    %4320 = vmatpush2.msra.mxu0 0.0
    %4321 = vmatprep.subr.mxu0 0.0
    %4322 = vmatpush2.msra.mxu0 0.0
    %4323 = vmatprep.subr.mxu0 0.0
    %4324 = vmatpush2.msra.mxu0 0.0
    %4325 = vmatprep.subr.mxu0 0.0
    %4326 = vmatpush2.msra.mxu0 0.0
    %4327 = vmatprep.subr.mxu0 0.0
    %4328 = vmatpush2.msra.mxu0 0.0
    %4329 = vmatprep.subr.mxu0 0.0
    %4330 = vmatpush2.msra.mxu0 0.0
    %4331 = vmatprep.subr.mxu0 0.0
    %4332 = vmatpush2.msra.mxu0 0.0
    %4333 = vmatprep.subr.mxu0 0.0
    %4334 = vmatpush2.msra.mxu0 0.0
    %4335 = vmatprep.subr.mxu0 0.0
    %4336 = vmatpush2.msra.mxu0 0.0
    %4337 = vmatprep.subr.mxu0 0.0
    %4338 = vmatpush2.msra.mxu0 0.0
    %4339 = vmatprep.subr.mxu0 0.0
    %4340 = vmatpush2.msra.mxu0 0.0
    %4341 = vmatprep.subr.mxu0 0.0
    %4342 = vmatpush2.msra.mxu0 0.0
    %4343 = vmatprep.subr.mxu0 0.0
    %4344 = vmatpush2.msra.mxu0 0.0
    %4345 = vmatprep.subr.mxu0 0.0
    %4346 = vmatpush2.msra.mxu0 0.0
    %4347 = vmatprep.mubr.f32.mxu0 0.0
    %4348 = vmatmul.mubr.f32.gmra.mxu0 %v4141
    %v4349 = vpop.f32.mrf.mxu0
    %v4350 = vadd.f32 %v2877, %v4349
    %v4351 = vpop.f32.mrf.mxu0
    %4352 = vdwg.mxu0
    %v4353 = vadd.f32 %v2463, %v4210
    %v4354 = vsub.f32 0.0, %v4353
    %v4355 = vmul.f32 %v4354, 1.442695
    %v4356 = vpow.pop %v4355
    %v4357 = vadd.f32 %v4356, 1.0
    %v4358 = vrcp.pop %v4357
    %v4359 = vmul.f32 1.0, %v4358
    %v4360 = vadd.f32 %v2585, %v4280
    %v4361 = vsub.f32 0.0, %v4360
    %v4362 = vmul.f32 %v4361, 1.442695
    %v4363 = vpow.pop %v4362
    %v4364 = vadd.f32 %v4363, 1.0
    %v4365 = vrcp.pop %v4364
    %v4366 = vmul.f32 1.0, %v4365
    %v4367 = vmul.f32 %v4359, %v4350
    %v4368 = vadd.f32 %v2707, %v4367
    %v4369 = vtanh.pop %v4368
    %v4370 = vsub.f32 1.0, %v4366
    %v4371 = vmul.f32 %v4370, %v4369
    %v4372 = vmul.f32 %v4366, %v4139
    %v4373 = vadd.f32 %v4371, %v4372
    %v4375 = vsel %vm2730, %v4373, 0
    %4377 = vmatprep.subr.mxu0 0.0
    %4378 = vmatpush1.msra.mxu0 0.0
    %4379 = vmatprep.subr.mxu0 0.0
    %4380 = vmatpush1.msra.mxu0 0.0
    %4381 = vmatprep.subr.mxu0 0.0
    %4382 = vmatpush1.msra.mxu0 0.0
    %4383 = vmatprep.subr.mxu0 0.0
    %4384 = vmatpush1.msra.mxu0 0.0
    %4385 = vmatprep.subr.mxu0 0.0
    %4386 = vmatpush1.msra.mxu0 0.0
    %4387 = vmatprep.subr.mxu0 0.0
    %4388 = vmatpush1.msra.mxu0 0.0
    %4389 = vmatprep.subr.mxu0 0.0
    %4390 = vmatpush1.msra.mxu0 0.0
    %4391 = vmatprep.subr.mxu0 0.0
    %4392 = vmatpush1.msra.mxu0 0.0
    %4393 = vmatprep.subr.mxu0 0.0
    %4394 = vmatpush1.msra.mxu0 0.0
    %4395 = vmatprep.subr.mxu0 0.0
    %4396 = vmatpush1.msra.mxu0 0.0
    %4397 = vmatprep.subr.mxu0 0.0
    %4398 = vmatpush1.msra.mxu0 0.0
    %4399 = vmatprep.subr.mxu0 0.0
    %4400 = vmatpush1.msra.mxu0 0.0
    %4401 = vmatprep.subr.mxu0 0.0
    %4402 = vmatpush1.msra.mxu0 %v2718
    %4403 = vmatprep.subr.mxu0 0.0
    %4404 = vmatpush1.msra.mxu0 %v2717
    %4405 = vmatprep.subr.mxu0 0.0
    %4406 = vmatpush1.msra.mxu0 %v2716
    %4407 = vmatprep.subr.mxu0 0.0
    %4408 = vmatpush1.msra.mxu0 %v2715
    %4409 = vmatprep.subr.mxu0 0.0
    %4410 = vmatpush2.msra.mxu0 0.0
    %4411 = vmatprep.subr.mxu0 0.0
    %4412 = vmatpush2.msra.mxu0 0.0
    %4413 = vmatprep.subr.mxu0 0.0
    %4414 = vmatpush2.msra.mxu0 0.0
    %4415 = vmatprep.subr.mxu0 0.0
    %4416 = vmatpush2.msra.mxu0 0.0
    %4417 = vmatprep.subr.mxu0 0.0
    %4418 = vmatpush2.msra.mxu0 0.0
    %4419 = vmatprep.subr.mxu0 0.0
    %4420 = vmatpush2.msra.mxu0 0.0
    %4421 = vmatprep.subr.mxu0 0.0
    %4422 = vmatpush2.msra.mxu0 0.0
    %4423 = vmatprep.subr.mxu0 0.0
    %4424 = vmatpush2.msra.mxu0 0.0
    %4425 = vmatprep.subr.mxu0 0.0
    %4426 = vmatpush2.msra.mxu0 0.0
    %4427 = vmatprep.subr.mxu0 0.0
    %4428 = vmatpush2.msra.mxu0 0.0
    %4429 = vmatprep.subr.mxu0 0.0
    %4430 = vmatpush2.msra.mxu0 0.0
    %4431 = vmatprep.subr.mxu0 0.0
    %4432 = vmatpush2.msra.mxu0 0.0
    %4433 = vmatprep.subr.mxu0 0.0
    %4434 = vmatpush2.msra.mxu0 0.0
    %4435 = vmatprep.subr.mxu0 0.0
    %4436 = vmatpush2.msra.mxu0 0.0
    %4437 = vmatprep.subr.mxu0 0.0
    %4438 = vmatpush2.msra.mxu0 0.0
    %4439 = vmatprep.subr.mxu0 0.0
    %4440 = vmatpush2.msra.mxu0 0.0
    %4441 = vmatprep.mubr.f32.mxu0 0.0
    %4442 = vmatmul.mubr.f32.gmra.mxu0 %v4375
    %v4443 = vpop.f32.mrf.mxu0
    %v4444 = vadd.f32 0.0, %v4443
    %v4445 = vpop.f32.mrf.mxu0
    %4446 = vdwg.mxu0
    %4447 = vmatprep.subr.mxu0 0.0
    %4448 = vmatpush1.msra.mxu0 0.0
    %4449 = vmatprep.subr.mxu0 0.0
    %4450 = vmatpush1.msra.mxu0 0.0
    %4451 = vmatprep.subr.mxu0 0.0
    %4452 = vmatpush1.msra.mxu0 0.0
    %4453 = vmatprep.subr.mxu0 0.0
    %4454 = vmatpush1.msra.mxu0 0.0
    %4455 = vmatprep.subr.mxu0 0.0
    %4456 = vmatpush1.msra.mxu0 0.0
    %4457 = vmatprep.subr.mxu0 0.0
    %4458 = vmatpush1.msra.mxu0 0.0
    %4459 = vmatprep.subr.mxu0 0.0
    %4460 = vmatpush1.msra.mxu0 0.0
    %4461 = vmatprep.subr.mxu0 0.0
    %4462 = vmatpush1.msra.mxu0 0.0
    %4463 = vmatprep.subr.mxu0 0.0
    %4464 = vmatpush1.msra.mxu0 0.0
    %4465 = vmatprep.subr.mxu0 0.0
    %4466 = vmatpush1.msra.mxu0 0.0
    %4467 = vmatprep.subr.mxu0 0.0
    %4468 = vmatpush1.msra.mxu0 0.0
    %4469 = vmatprep.subr.mxu0 0.0
    %4470 = vmatpush1.msra.mxu0 0.0
    %4471 = vmatprep.subr.mxu0 0.0
    %4472 = vmatpush1.msra.mxu0 %v2723
    %4473 = vmatprep.subr.mxu0 0.0
    %4474 = vmatpush1.msra.mxu0 %v2722
    %4475 = vmatprep.subr.mxu0 0.0
    %4476 = vmatpush1.msra.mxu0 %v2721
    %4477 = vmatprep.subr.mxu0 0.0
    %4478 = vmatpush1.msra.mxu0 %v2720
    %4479 = vmatprep.subr.mxu0 0.0
    %4480 = vmatpush2.msra.mxu0 0.0
    %4481 = vmatprep.subr.mxu0 0.0
    %4482 = vmatpush2.msra.mxu0 0.0
    %4483 = vmatprep.subr.mxu0 0.0
    %4484 = vmatpush2.msra.mxu0 0.0
    %4485 = vmatprep.subr.mxu0 0.0
    %4486 = vmatpush2.msra.mxu0 0.0
    %4487 = vmatprep.subr.mxu0 0.0
    %4488 = vmatpush2.msra.mxu0 0.0
    %4489 = vmatprep.subr.mxu0 0.0
    %4490 = vmatpush2.msra.mxu0 0.0
    %4491 = vmatprep.subr.mxu0 0.0
    %4492 = vmatpush2.msra.mxu0 0.0
    %4493 = vmatprep.subr.mxu0 0.0
    %4494 = vmatpush2.msra.mxu0 0.0
    %4495 = vmatprep.subr.mxu0 0.0
    %4496 = vmatpush2.msra.mxu0 0.0
    %4497 = vmatprep.subr.mxu0 0.0
    %4498 = vmatpush2.msra.mxu0 0.0
    %4499 = vmatprep.subr.mxu0 0.0
    %4500 = vmatpush2.msra.mxu0 0.0
    %4501 = vmatprep.subr.mxu0 0.0
    %4502 = vmatpush2.msra.mxu0 0.0
    %4503 = vmatprep.subr.mxu0 0.0
    %4504 = vmatpush2.msra.mxu0 0.0
    %4505 = vmatprep.subr.mxu0 0.0
    %4506 = vmatpush2.msra.mxu0 0.0
    %4507 = vmatprep.subr.mxu0 0.0
    %4508 = vmatpush2.msra.mxu0 0.0
    %4509 = vmatprep.subr.mxu0 0.0
    %4510 = vmatpush2.msra.mxu0 0.0
    %4511 = vmatprep.mubr.f32.mxu0 0.0
    %4512 = vmatmul.mubr.f32.gmra.mxu0 %v4375
    %v4513 = vpop.f32.mrf.mxu0
    %v4514 = vadd.f32 0.0, %v4513
    %v4515 = vpop.f32.mrf.mxu0
    %4516 = vdwg.mxu0
    %4517 = vmatprep.subr.mxu0 0.0
    %4518 = vmatpush1.msra.mxu0 0.0
    %4519 = vmatprep.subr.mxu0 0.0
    %4520 = vmatpush1.msra.mxu0 0.0
    %4521 = vmatprep.subr.mxu0 0.0
    %4522 = vmatpush1.msra.mxu0 0.0
    %4523 = vmatprep.subr.mxu0 0.0
    %4524 = vmatpush1.msra.mxu0 0.0
    %4525 = vmatprep.subr.mxu0 0.0
    %4526 = vmatpush1.msra.mxu0 0.0
    %4527 = vmatprep.subr.mxu0 0.0
    %4528 = vmatpush1.msra.mxu0 0.0
    %4529 = vmatprep.subr.mxu0 0.0
    %4530 = vmatpush1.msra.mxu0 0.0
    %4531 = vmatprep.subr.mxu0 0.0
    %4532 = vmatpush1.msra.mxu0 0.0
    %4533 = vmatprep.subr.mxu0 0.0
    %4534 = vmatpush1.msra.mxu0 0.0
    %4535 = vmatprep.subr.mxu0 0.0
    %4536 = vmatpush1.msra.mxu0 0.0
    %4537 = vmatprep.subr.mxu0 0.0
    %4538 = vmatpush1.msra.mxu0 0.0
    %4539 = vmatprep.subr.mxu0 0.0
    %4540 = vmatpush1.msra.mxu0 0.0
    %4541 = vmatprep.subr.mxu0 0.0
    %4542 = vmatpush1.msra.mxu0 %v2728
    %4543 = vmatprep.subr.mxu0 0.0
    %4544 = vmatpush1.msra.mxu0 %v2727
    %4545 = vmatprep.subr.mxu0 0.0
    %4546 = vmatpush1.msra.mxu0 %v2726
    %4547 = vmatprep.subr.mxu0 0.0
    %4548 = vmatpush1.msra.mxu0 %v2725
    %4549 = vmatprep.subr.mxu0 0.0
    %4550 = vmatpush2.msra.mxu0 0.0
    %4551 = vmatprep.subr.mxu0 0.0
    %4552 = vmatpush2.msra.mxu0 0.0
    %4553 = vmatprep.subr.mxu0 0.0
    %4554 = vmatpush2.msra.mxu0 0.0
    %4555 = vmatprep.subr.mxu0 0.0
    %4556 = vmatpush2.msra.mxu0 0.0
    %4557 = vmatprep.subr.mxu0 0.0
    %4558 = vmatpush2.msra.mxu0 0.0
    %4559 = vmatprep.subr.mxu0 0.0
    %4560 = vmatpush2.msra.mxu0 0.0
    %4561 = vmatprep.subr.mxu0 0.0
    %4562 = vmatpush2.msra.mxu0 0.0
    %4563 = vmatprep.subr.mxu0 0.0
    %4564 = vmatpush2.msra.mxu0 0.0
    %4565 = vmatprep.subr.mxu0 0.0
    %4566 = vmatpush2.msra.mxu0 0.0
    %4567 = vmatprep.subr.mxu0 0.0
    %4568 = vmatpush2.msra.mxu0 0.0
    %4569 = vmatprep.subr.mxu0 0.0
    %4570 = vmatpush2.msra.mxu0 0.0
    %4571 = vmatprep.subr.mxu0 0.0
    %4572 = vmatpush2.msra.mxu0 0.0
    %4573 = vmatprep.subr.mxu0 0.0
    %4574 = vmatpush2.msra.mxu0 0.0
    %4575 = vmatprep.subr.mxu0 0.0
    %4576 = vmatpush2.msra.mxu0 0.0
    %4577 = vmatprep.subr.mxu0 0.0
    %4578 = vmatpush2.msra.mxu0 0.0
    %4579 = vmatprep.subr.mxu0 0.0
    %4580 = vmatpush2.msra.mxu0 0.0
    %4581 = vmatprep.mubr.f32.mxu0 0.0
    %4582 = vmatmul.mubr.f32.gmra.mxu0 %v4375
    %v4583 = vpop.f32.mrf.mxu0
    %v4584 = vadd.f32 %v2877, %v4583
    %v4585 = vpop.f32.mrf.mxu0
    %4586 = vdwg.mxu0
    %v4587 = vadd.f32 %v2468, %v4444
    %v4588 = vsub.f32 0.0, %v4587
    %v4589 = vmul.f32 %v4588, 1.442695
    %v4590 = vpow.pop %v4589
    %v4591 = vadd.f32 %v4590, 1.0
    %v4592 = vrcp.pop %v4591
    %v4593 = vmul.f32 1.0, %v4592
    %v4594 = vadd.f32 %v2590, %v4514
    %v4595 = vsub.f32 0.0, %v4594
    %v4596 = vmul.f32 %v4595, 1.442695
    %v4597 = vpow.pop %v4596
    %v4598 = vadd.f32 %v4597, 1.0
    %v4599 = vrcp.pop %v4598
    %v4600 = vmul.f32 1.0, %v4599
    %v4601 = vmul.f32 %v4593, %v4584
    %v4602 = vadd.f32 %v2712, %v4601
    %v4603 = vtanh.pop %v4602
    %v4604 = vsub.f32 1.0, %v4600
    %v4605 = vmul.f32 %v4604, %v4603
    %v4606 = vmul.f32 %v4600, %v4373
    %v4607 = vadd.f32 %v4605, %v4606
    %v4608 = vld [vmem:[%s9] sm:$0xff]
    %v4609 = vld [vmem:[%s9 + $0x8] sm:$0xff]
    %v4610 = vld [vmem:[%s9 + $0x10] sm:$0xff]
    %v4611 = vld [vmem:[%s9 + $0x18] sm:$0xff]
    %v4612 = vld [vmem:[%s10] sm:$0x1]
    %v4614 = vlaneseq
    %v4615 = vshrl.u32 %v4614, 7
    %v4616 = vsub.s32 0, %v4615
    %v4617 = vrot.slane %v4612, %v4616
    %v4620 = vsel %vm2730, %v4607, 0
    %4622 = vmatprep.subr.mxu0 0.0
    %4623 = vmatpush1.msra.mxu0 0.0
    %4624 = vmatprep.subr.mxu0 0.0
    %4625 = vmatpush1.msra.mxu0 0.0
    %4626 = vmatprep.subr.mxu0 0.0
    %4627 = vmatpush1.msra.mxu0 0.0
    %4628 = vmatprep.subr.mxu0 0.0
    %4629 = vmatpush1.msra.mxu0 0.0
    %4630 = vmatprep.subr.mxu0 0.0
    %4631 = vmatpush1.msra.mxu0 0.0
    %4632 = vmatprep.subr.mxu0 0.0
    %4633 = vmatpush1.msra.mxu0 0.0
    %4634 = vmatprep.subr.mxu0 0.0
    %4635 = vmatpush1.msra.mxu0 0.0
    %4636 = vmatprep.subr.mxu0 0.0
    %4637 = vmatpush1.msra.mxu0 0.0
    %4638 = vmatprep.subr.mxu0 0.0
    %4639 = vmatpush1.msra.mxu0 0.0
    %4640 = vmatprep.subr.mxu0 0.0
    %4641 = vmatpush1.msra.mxu0 0.0
    %4642 = vmatprep.subr.mxu0 0.0
    %4643 = vmatpush1.msra.mxu0 0.0
    %4644 = vmatprep.subr.mxu0 0.0
    %4645 = vmatpush1.msra.mxu0 0.0
    %4646 = vmatprep.subr.mxu0 0.0
    %4647 = vmatpush1.msra.mxu0 %v4611
    %4648 = vmatprep.subr.mxu0 0.0
    %4649 = vmatpush1.msra.mxu0 %v4610
    %4650 = vmatprep.subr.mxu0 0.0
    %4651 = vmatpush1.msra.mxu0 %v4609
    %4652 = vmatprep.subr.mxu0 0.0
    %4653 = vmatpush1.msra.mxu0 %v4608
    %4654 = vmatprep.subr.mxu0 0.0
    %4655 = vmatpush2.msra.mxu0 0.0
    %4656 = vmatprep.subr.mxu0 0.0
    %4657 = vmatpush2.msra.mxu0 0.0
    %4658 = vmatprep.subr.mxu0 0.0
    %4659 = vmatpush2.msra.mxu0 0.0
    %4660 = vmatprep.subr.mxu0 0.0
    %4661 = vmatpush2.msra.mxu0 0.0
    %4662 = vmatprep.subr.mxu0 0.0
    %4663 = vmatpush2.msra.mxu0 0.0
    %4664 = vmatprep.subr.mxu0 0.0
    %4665 = vmatpush2.msra.mxu0 0.0
    %4666 = vmatprep.subr.mxu0 0.0
    %4667 = vmatpush2.msra.mxu0 0.0
    %4668 = vmatprep.subr.mxu0 0.0
    %4669 = vmatpush2.msra.mxu0 0.0
    %4670 = vmatprep.subr.mxu0 0.0
    %4671 = vmatpush2.msra.mxu0 0.0
    %4672 = vmatprep.subr.mxu0 0.0
    %4673 = vmatpush2.msra.mxu0 0.0
    %4674 = vmatprep.subr.mxu0 0.0
    %4675 = vmatpush2.msra.mxu0 0.0
    %4676 = vmatprep.subr.mxu0 0.0
    %4677 = vmatpush2.msra.mxu0 0.0
    %4678 = vmatprep.subr.mxu0 0.0
    %4679 = vmatpush2.msra.mxu0 0.0
    %4680 = vmatprep.subr.mxu0 0.0
    %4681 = vmatpush2.msra.mxu0 0.0
    %4682 = vmatprep.subr.mxu0 0.0
    %4683 = vmatpush2.msra.mxu0 0.0
    %4684 = vmatprep.subr.mxu0 0.0
    %4685 = vmatpush2.msra.mxu0 0.0
    %4686 = vmatprep.mubr.f32.mxu0 0.0
    %4687 = vmatmul.mubr.f32.gmra.mxu0 %v4620
    %v4688 = vpop.f32.mrf.mxu0
    %v4689 = vadd.f32 %v4617, %v4688
    %v4690 = vpop.f32.mrf.mxu0
    %4691 = vdwg.mxu0
    %v4692 = vmax.f32 %v4689, 0.0
    %v4693 = vld [vmem:[%s11] sm:$0xff]
    %v4694 = vld [vmem:[%s11 + $0x8] sm:$0xff]
    %v4695 = vld [vmem:[%s12] sm:$0x1]
    %v4697 = vlaneseq
    %v4698 = vshrl.u32 %v4697, 7
    %v4699 = vsub.s32 0, %v4698
    %v4700 = vrot.slane %v4695, %v4699
    %vm4702 = vcmask 130048
    %v4704 = vsel %vm4702, %v4692, 0
    %4706 = vmatprep.subr.mxu0 0.0
    %4707 = vmatpush1.msra.mxu0 0.0
    %4708 = vmatprep.subr.mxu0 0.0
    %4709 = vmatpush1.msra.mxu0 0.0
    %4710 = vmatprep.subr.mxu0 0.0
    %4711 = vmatpush1.msra.mxu0 0.0
    %4712 = vmatprep.subr.mxu0 0.0
    %4713 = vmatpush1.msra.mxu0 0.0
    %4714 = vmatprep.subr.mxu0 0.0
    %4715 = vmatpush1.msra.mxu0 0.0
    %4716 = vmatprep.subr.mxu0 0.0
    %4717 = vmatpush1.msra.mxu0 0.0
    %4718 = vmatprep.subr.mxu0 0.0
    %4719 = vmatpush1.msra.mxu0 0.0
    %4720 = vmatprep.subr.mxu0 0.0
    %4721 = vmatpush1.msra.mxu0 0.0
    %4722 = vmatprep.subr.mxu0 0.0
    %4723 = vmatpush1.msra.mxu0 0.0
    %4724 = vmatprep.subr.mxu0 0.0
    %4725 = vmatpush1.msra.mxu0 0.0
    %4726 = vmatprep.subr.mxu0 0.0
    %4727 = vmatpush1.msra.mxu0 0.0
    %4728 = vmatprep.subr.mxu0 0.0
    %4729 = vmatpush1.msra.mxu0 0.0
    %4730 = vmatprep.subr.mxu0 0.0
    %4731 = vmatpush1.msra.mxu0 0.0
    %4732 = vmatprep.subr.mxu0 0.0
    %4733 = vmatpush1.msra.mxu0 0.0
    %4734 = vmatprep.subr.mxu0 0.0
    %4735 = vmatpush1.msra.mxu0 %v4694
    %4736 = vmatprep.subr.mxu0 0.0
    %4737 = vmatpush1.msra.mxu0 %v4693
    %4738 = vmatprep.subr.mxu0 0.0
    %4739 = vmatpush2.msra.mxu0 0.0
    %4740 = vmatprep.subr.mxu0 0.0
    %4741 = vmatpush2.msra.mxu0 0.0
    %4742 = vmatprep.subr.mxu0 0.0
    %4743 = vmatpush2.msra.mxu0 0.0
    %4744 = vmatprep.subr.mxu0 0.0
    %4745 = vmatpush2.msra.mxu0 0.0
    %4746 = vmatprep.subr.mxu0 0.0
    %4747 = vmatpush2.msra.mxu0 0.0
    %4748 = vmatprep.subr.mxu0 0.0
    %4749 = vmatpush2.msra.mxu0 0.0
    %4750 = vmatprep.subr.mxu0 0.0
    %4751 = vmatpush2.msra.mxu0 0.0
    %4752 = vmatprep.subr.mxu0 0.0
    %4753 = vmatpush2.msra.mxu0 0.0
    %4754 = vmatprep.subr.mxu0 0.0
    %4755 = vmatpush2.msra.mxu0 0.0
    %4756 = vmatprep.subr.mxu0 0.0
    %4757 = vmatpush2.msra.mxu0 0.0
    %4758 = vmatprep.subr.mxu0 0.0
    %4759 = vmatpush2.msra.mxu0 0.0
    %4760 = vmatprep.subr.mxu0 0.0
    %4761 = vmatpush2.msra.mxu0 0.0
    %4762 = vmatprep.subr.mxu0 0.0
    %4763 = vmatpush2.msra.mxu0 0.0
    %4764 = vmatprep.subr.mxu0 0.0
    %4765 = vmatpush2.msra.mxu0 0.0
    %4766 = vmatprep.subr.mxu0 0.0
    %4767 = vmatpush2.msra.mxu0 0.0
    %4768 = vmatprep.subr.mxu0 0.0
    %4769 = vmatpush2.msra.mxu0 0.0
    %4770 = vmatprep.mubr.f32.mxu0 0.0
    %4771 = vmatmul.mubr.f32.gmra.mxu0 %v4704
    %v4772 = vpop.f32.mrf.mxu0
    %v4773 = vadd.f32 %v4700, %v4772
    %v4774 = vpop.f32.mrf.mxu0
    %4775 = vdwg.mxu0
    %4776 = vst [vmem:[#allocation5] sm:$0xff] %v4773
    // Predicated region
    $region58: #{tpu_custom_call.1} parent=1 // pred_check
      _
    $region59: #{tpu_custom_call.1} parent=1 // pred_check_branch
      %4778 = sbr.rel (0) target = $region61
    $region60: #{tpu_custom_call.1} parent=1 // pred_region
      %s4780 = ssub.s32 128, 128
      %4781 = vsyncadd [#allocation4], %s4780
      %s4783 = sshll.u32 [#allocation5], 4
      %s4784 = int_to_ptr.vmem [resolvable:$true] %s4783
      %4786 = dma.vmem_to_hbm [thread:$0]  %s4784, 128, %s13, [#allocation4]
    $region61: #{tpu_custom_call.1} parent=1 // pred_fallthru
      _
    // Predicated region
    $region62: #{tpu_custom_call.1} parent=1 // pred_check
      _
    $region63: #{tpu_custom_call.1} parent=1 // pred_check_branch
      %4788 = sbr.rel (0) target = $region65
    $region64: #{tpu_custom_call.1} parent=1 // pred_region
      %4789 = dma.done [#allocation4], 128
    $region65: #{tpu_custom_call.1} parent=1 // pred_fallthru
      _
    %4790 = vsyncpa [#allocation3], 1
    %4791 = vsyncpa [#allocation4], 1

</llo_original>
